<compile_context>
chip_gen: v6e
topology: v6e:2x2x1
jax: 0.10.0
libtpu: 0.0.40
codegen_flags: <defaults>
</compile_context>

<pallas_src>
import functools

import jax
import jax.numpy as jnp
from jax.experimental import pallas as pl
from jax.experimental.pallas import tpu as pltpu


def custom_model_kernel(
    tok_ref,      # (B*S, 1) int32
    embqkv_ref,   # (Vp, 4E) bf16  : [table | table@Wq+bq | table@Wk+bk | table@Wv+bv]
    attn_ref,     # (2E, E)  f32   : rows 0:E  = block-diag per-head sum (pre-scaled)
                  #                  rows E:2E = attention output projection Wo
    w1_ref,       # (NC, E, CK)  bf16
    b1_ref,       # (NC, 1, CK)  f32
    w2_ref,       # (NC, CK, E)  bf16
    head_ref,     # (48, 128) f32 : rows 0:E = fc1w (bn1 folded), then one row each:
                  #   E+0 bo, E+1 ln1g, E+2 ln1b, E+3 ln2g, E+4 ln2b, E+5 b2(ffn),
                  #   E+6 fc1b (bn1 folded), E+7 fc2w (bn2 folded), E+8 fc2b (lane 0)
    out_ref,      # (B, 1) f32
    *, B, S, E, Vp, NC,
):
    f32, bf16 = jnp.float32, jnp.bfloat16
    BS = B * S

    # ---- fused embedding gather + QKV projection: one lane-dense bf16 matmul ----
    # Out-of-range token ids produce an all-zero one-hot row (embedding == 0),
    # same silent behavior as the previous version.
    tok = tok_ref[...]                                               # (BS, 1) int32
    vocab_iota = jax.lax.broadcasted_iota(jnp.int32, (BS, Vp), 1)    # (BS, Vp)
    onehot = (tok == vocab_iota).astype(f32).astype(bf16)            # exact 0/1 in bf16
    xqkv = jnp.dot(onehot, embqkv_ref[...], preferred_element_type=f32)  # (BS, 4E)
    x = xqkv[:, 0:E]
    q = xqkv[:, E:2 * E]
    k = xqkv[:, 2 * E:3 * E]
    v = xqkv[:, 3 * E:4 * E]

    # ---- multi-head self-attention over the B axis (batch_first=False), per s ----
    q4 = q.reshape(B, 1, S, E)
    k4 = k.reshape(1, B, S, E)
    v4 = v.reshape(1, B, S, E)

    qk = (q4 * k4).reshape(B * B * S, E)                             # (B*B*S, E)
    mseg = attn_ref[0:E, :]                                          # (E, E), pre-scaled
    # per-head score replicated across that head's Dh lanes
    s_lanes = jnp.dot(qk, mseg, preferred_element_type=f32).reshape(B, B, S, E)

    m_max = jnp.max(s_lanes, axis=1, keepdims=True)                  # (B, 1, S, E)
    exps = jnp.exp(s_lanes - m_max)
    denom = jnp.sum(exps, axis=1, keepdims=True)
    p = exps / denom                                                 # exact softmax (parity)

    att = jnp.sum(p * v4, axis=1).reshape(BS, E)                     # (BS, E)
    wo = attn_ref[E:2 * E, :]
    att = jnp.dot(att, wo, preferred_element_type=f32) + head_ref[E:E + 1, 0:E]

    def _layernorm(z, g, b):
        mu = jnp.mean(z, axis=-1, keepdims=True)
        zc = z - mu
        var = jnp.mean(zc * zc, axis=-1, keepdims=True)
        return zc * jax.lax.rsqrt(var + 1e-5) * g + b

    # post-norm transformer layer (norm_first=False); dropout = identity (eval)
    src = _layernorm(x + att, head_ref[E + 1:E + 2, 0:E], head_ref[E + 2:E + 3, 0:E])

    # ---- feed-forward, chunked over dim_feedforward (bf16 weights, f32 accumulate) ----
    src_bf = src.astype(bf16)

    def ffn_chunk(c, acc):
        h = jnp.dot(src_bf, w1_ref[c], preferred_element_type=f32) + b1_ref[c]
        h = jnp.maximum(h, 0.0).astype(bf16)                         # ReLU, cast in-vreg
        return acc + jnp.dot(h, w2_ref[c], preferred_element_type=f32)

    ff = jax.lax.fori_loop(0, NC, ffn_chunk, jnp.zeros((BS, E), f32), unroll=True)
    ff = ff + head_ref[E + 5:E + 6, 0:E]                             # FFN output bias b2
    src = _layernorm(src + ff, head_ref[E + 3:E + 4, 0:E], head_ref[E + 4:E + 5, 0:E])

    # transformer(x)[:, 1, :]  — static reshape + slice (no one-hot matmul)
    sel = src.reshape(B, S, E)[:, 1, :]                              # (B, E)

    # bn1 folded into fc1; bn2 folded into fc2 (eval-mode running stats)
    z = jnp.dot(sel, head_ref[0:E, :], preferred_element_type=f32) + head_ref[E + 6:E + 7, :]
    z = jnp.maximum(z, 0.0)
    # TODO(synk): nn.Dropout(0.5) is identity in eval mode; stochastic training-mode
    # dropout intentionally omitted.
    fc2w = head_ref[E + 7:E + 8, :]                                  # (1, 128)
    fc2b = head_ref[E + 8:E + 9, 0:1]                                # (1, 1)
    logit = jnp.sum(z * fc2w, axis=-1, keepdims=True) + fc2b         # (B, 1) lane reduction

    out_ref[...] = jax.nn.sigmoid(logit)                             # sigmoid(x[:, 0])


def init_params(key, vocab_size=100, hidden_size=64, ff_dim=2048, fc_hidden=128):
    E = hidden_size // 2           # num_feature
    ks = iter(jax.random.split(key, 64))

    def nrm(shape, scale):
        return scale * jax.random.normal(next(ks), shape, jnp.float32)

    return {
        "embedding": nrm((vocab_size, E), 1.0),
        # self-attention weights stored pre-transposed: y = x @ W + b
        "wq": nrm((E, E), E ** -0.5), "wk": nrm((E, E), E ** -0.5),
        "wv": nrm((E, E), E ** -0.5),
        "bq": nrm((1, E), 0.02), "bk": nrm((1, E), 0.02), "bv": nrm((1, E), 0.02),
        "wo": nrm((E, E), E ** -0.5), "bo": nrm((1, E), 0.02),
        # feed-forward (dim_feedforward = 2048, PyTorch default) — stored bf16
        "w1": nrm((E, ff_dim), E ** -0.5).astype(jnp.bfloat16),
        "b1": nrm((1, ff_dim), 0.02),
        "w2": nrm((ff_dim, E), ff_dim ** -0.5).astype(jnp.bfloat16),
        "b2": nrm((1, E), 0.02),
        # layer norms
        "ln1g": jnp.ones((1, E), jnp.float32), "ln1b": jnp.zeros((1, E), jnp.float32),
        "ln2g": jnp.ones((1, E), jnp.float32), "ln2b": jnp.zeros((1, E), jnp.float32),
        # batch norms (eval mode, running stats)
        "bn1g": jnp.ones((1, E), jnp.float32), "bn1b": jnp.zeros((1, E), jnp.float32),
        "bn1m": nrm((1, E), 0.05),
        "bn1v": 1.0 + 0.1 * jax.random.uniform(next(ks), (1, E), jnp.float32),
        "bn2g": jnp.ones((1, fc_hidden), jnp.float32),
        "bn2b": jnp.zeros((1, fc_hidden), jnp.float32),
        "bn2m": nrm((1, fc_hidden), 0.05),
        "bn2v": 1.0 + 0.1 * jax.random.uniform(next(ks), (1, fc_hidden), jnp.float32),
        # head (fc2 weight kept as a (1, fc_hidden) row for the lane reduction)
        "fc1w": nrm((E, fc_hidden), E ** -0.5), "fc1b": nrm((1, fc_hidden), 0.02),
        "fc2w": nrm((1, fc_hidden), fc_hidden ** -0.5), "fc2b": nrm((1, 1), 0.02),
    }


def pack_params(params, num_heads=8, ff_chunk=512):
    """One-time host-side folds / packing (free precompute, identical math)."""
    f32, bf16 = jnp.float32, jnp.bfloat16
    table = params["embedding"]
    V, E = table.shape
    H = num_heads
    FF = params["w1"].shape[1]
    FC = params["fc1w"].shape[1]
    eps = 1e-5
    assert FF % ff_chunk == 0 and E % H == 0 and FC <= 128

    # (1) fused embedding + QKV table, biases folded (one-hot rows sum to 1), bf16.
    tq = table @ params["wq"] + params["bq"]
    tk = table @ params["wk"] + params["bk"]
    tv = table @ params["wv"] + params["bv"]
    emb_qkv = jnp.concatenate([table, tq, tk, tv], axis=1)            # (V, 4E)
    Vp = max(128, ((V + 127) // 128) * 128)
    emb_qkv = jnp.pad(emb_qkv, ((0, Vp - V), (0, 0))).astype(bf16)

    # (2) attention slab: block-diag per-head segment-sum matrix (pre-scaled by
    #     1/sqrt(Dh)) stacked on the output projection weight.
    Dh = E // H
    head_ids = jnp.arange(E) // Dh
    mseg = (head_ids[:, None] == head_ids[None, :]).astype(f32) * (float(Dh) ** -0.5)
    attn_slab = jnp.concatenate([mseg, params["wo"].astype(f32)], axis=0)   # (2E, E)

    # (3) FFN chunks along dim_feedforward.
    NC = FF // ff_chunk
    w1c = params["w1"].astype(bf16).reshape(E, NC, ff_chunk).transpose(1, 0, 2)
    b1c = params["b1"].astype(f32).reshape(NC, 1, ff_chunk)
    w2c = params["w2"].astype(bf16).reshape(NC, ff_chunk, E)

    # (4) fold eval-mode BatchNorms into the FC head.
    s1 = params["bn1g"] * jax.lax.rsqrt(params["bn1v"] + eps)         # (1, E)
    fc1w_f = s1.reshape(E, 1) * params["fc1w"]                        # (E, FC)
    fc1b_f = params["fc1b"] + (params["bn1b"] - params["bn1m"] * s1) @ params["fc1w"]
    s2 = params["bn2g"] * jax.lax.rsqrt(params["bn2v"] + eps)         # (1, FC)
    fc2w_f = params["fc2w"] * s2                                      # (1, FC)
    fc2b_f = params["fc2b"] + jnp.sum(
        (params["bn2b"] - params["bn2m"] * s2) * params["fc2w"], axis=-1, keepdims=True)

    # (5) head slab: fc1w' rows, then every remaining small vector (one per row).
    def row(vec):
        vec = jnp.asarray(vec, f32).reshape(1, -1)
        return jnp.pad(vec, ((0, 0), (0, 128 - vec.shape[1])))

    head_slab = jnp.concatenate(
        [jnp.pad(fc1w_f.astype(f32), ((0, 0), (0, 128 - FC)))]
        + [row(v) for v in (params["bo"], params["ln1g"], params["ln1b"],
                            params["ln2g"], params["ln2b"], params["b2"],
                            fc1b_f, fc2w_f, fc2b_f)],
        axis=0)
    head_slab = jnp.pad(head_slab, ((0, (-head_slab.shape[0]) % 8), (0, 0)))

    return dict(emb_qkv=emb_qkv, attn=attn_slab, w1=w1c, b1=b1c, w2=w2c,
                head=head_slab, E=E, Vp=Vp, NC=NC)


def custom_model_forward(tokens, packed):
    B, S = tokens.shape
    E, Vp, NC = packed["E"], packed["Vp"], packed["NC"]
    tok_col = tokens.reshape(B * S, 1).astype(jnp.int32)

    inputs = [tok_col, packed["emb_qkv"], packed["attn"],
              packed["w1"], packed["b1"], packed["w2"], packed["head"]]

    kernel = functools.partial(custom_model_kernel, B=B, S=S, E=E, Vp=Vp, NC=NC)
    # Grid-less single invocation (tiny problem; <1 MiB VMEM footprint).  For a
    # much larger effective batch, add a 1-D "parallel" grid over batch tiles so
    # v7x's two TensorCores split the work; on v5e/v6e a grid is pure overhead here.
    out = pl.pallas_call(
        kernel,
        out_shape=jax.ShapeDtypeStruct((B, 1), jnp.float32),
        in_specs=[pl.BlockSpec(memory_space=pltpu.MemorySpace.VMEM)] * len(inputs),
        out_specs=pl.BlockSpec(memory_space=pltpu.MemorySpace.VMEM),
    )(*inputs)
    return out[:, 0]                                 # shape (B,), matches sigmoid(x[:, 0])


if __name__ == "__main__":
    key = jax.random.PRNGKey(0)
    B, S = 4, 8
    vocab_size, hidden_size = 100, 64                # num_feature = 32, 8 heads of dim 4

    params = init_params(key, vocab_size=vocab_size, hidden_size=hidden_size)
    packed = pack_params(params, num_heads=8, ff_chunk=512)
    tokens = jax.random.randint(jax.random.fold_in(key, 999), (B, S), 0,
                                vocab_size, dtype=jnp.int32)

    out = custom_model_forward(tokens, packed)
    out = jax.block_until_ready(out)
    assert out.shape == (B,)
    assert bool(jnp.all(jnp.isfinite(out)))
    print("KERNEL_OK")
</pallas_src>

<mosaic_0001>
module attributes {stable_mosaic.version = 11 : i64} {
  func.func @custom_model_kernel(%arg0: memref<32x1xi32, #tpu.memory_space<vmem>>, %arg1: memref<128x128xbf16, #tpu.memory_space<vmem>>, %arg2: memref<64x32xf32, #tpu.memory_space<vmem>>, %arg3: memref<4x32x512xbf16, #tpu.memory_space<vmem>>, %arg4: memref<4x1x512xf32, #tpu.memory_space<vmem>>, %arg5: memref<4x512x32xbf16, #tpu.memory_space<vmem>>, %arg6: memref<48x128xf32, #tpu.memory_space<vmem>>, %arg7: memref<4x1xf32, #tpu.memory_space<vmem>>) attributes {dimension_semantics = [], scalar_prefetch = 0 : i64, scratch_operands = 0 : i64, tpu.core_type = #tpu.core_type<tc>} {
    %c0 = arith.constant 0 : index
    %c0_0 = arith.constant 0 : index
    %0 = vector.load %arg0[%c0, %c0_0] : memref<32x1xi32, #tpu.memory_space<vmem>>, vector<32x1xi32>
    %1 = tpu.iota {dimensions = array<i32: 1>} : vector<32x128xi32>
    %2 = vector.broadcast %0 : vector<32x1xi32> to vector<32x128xi32>
    %3 = arith.cmpi eq, %2, %1 : vector<32x128xi32>
    %4 = arith.extui %3 : vector<32x128xi1> to vector<32x128xi32>
    %5 = arith.sitofp %4 : vector<32x128xi32> to vector<32x128xf32>
    %6 = arith.truncf %5 : vector<32x128xf32> to vector<32x128xbf16>
    %c0_1 = arith.constant 0 : index
    %c0_2 = arith.constant 0 : index
    %7 = vector.load %arg1[%c0_1, %c0_2] : memref<128x128xbf16, #tpu.memory_space<vmem>>, vector<128x128xbf16>
    %cst = arith.constant dense<0.000000e+00> : vector<32x128xf32>
    %8 = tpu.matmul %6, %7, %cst {dimension_numbers = #tpu.dot_dimension_numbers<[1], [0], [0], [1], [0, 0, 1, 1], [], []>} : vector<32x128xbf16>, vector<128x128xbf16>, vector<32x128xf32> -> vector<32x128xf32>
    %9 = vector.extract_strided_slice %8 {offsets = [0, 0], sizes = [32, 32], strides = [1, 1]} : vector<32x128xf32> to vector<32x32xf32>
    %10 = vector.extract_strided_slice %8 {offsets = [0, 32], sizes = [32, 32], strides = [1, 1]} : vector<32x128xf32> to vector<32x32xf32>
    %11 = vector.extract_strided_slice %8 {offsets = [0, 64], sizes = [32, 32], strides = [1, 1]} : vector<32x128xf32> to vector<32x32xf32>
    %12 = vector.extract_strided_slice %8 {offsets = [0, 96], sizes = [32, 32], strides = [1, 1]} : vector<32x128xf32> to vector<32x32xf32>
    %13 = vector.shape_cast %10 : vector<32x32xf32> to vector<4x1x8x32xf32>
    %14 = vector.shape_cast %11 : vector<32x32xf32> to vector<1x4x8x32xf32>
    %15 = vector.shape_cast %12 : vector<32x32xf32> to vector<1x4x8x32xf32>
    %16 = vector.broadcast %13 : vector<4x1x8x32xf32> to vector<4x4x8x32xf32>
    %17 = vector.broadcast %14 : vector<1x4x8x32xf32> to vector<4x4x8x32xf32>
    %18 = arith.mulf %16, %17 : vector<4x4x8x32xf32>
    %19 = vector.shape_cast %18 : vector<4x4x8x32xf32> to vector<128x32xf32>
    %c0_3 = arith.constant 0 : index
    %c0_4 = arith.constant 0 : index
    %20 = vector.load %arg2[%c0_3, %c0_4] : memref<64x32xf32, #tpu.memory_space<vmem>>, vector<32x32xf32>
    %cst_5 = arith.constant dense<0.000000e+00> : vector<128x32xf32>
    %21 = tpu.matmul %19, %20, %cst_5 {dimension_numbers = #tpu.dot_dimension_numbers<[1], [0], [0], [1], [0, 0, 1, 1], [], []>} : vector<128x32xf32>, vector<32x32xf32>, vector<128x32xf32> -> vector<128x32xf32>
    %22 = vector.shape_cast %21 : vector<128x32xf32> to vector<4x4x8x32xf32>
    %cst_6 = arith.constant dense<0xFF800000> : vector<4x8x32xf32>
    %23 = vector.multi_reduction <maximumf>, %22, %cst_6 [1] : vector<4x4x8x32xf32> to vector<4x8x32xf32>
    %24 = vector.shape_cast %23 : vector<4x8x32xf32> to vector<4x1x8x32xf32>
    %25 = vector.broadcast %24 : vector<4x1x8x32xf32> to vector<4x4x8x32xf32>
    %26 = arith.subf %22, %25 : vector<4x4x8x32xf32>
    %27 = math.exp %26 : vector<4x4x8x32xf32>
    %cst_7 = arith.constant dense<0.000000e+00> : vector<4x8x32xf32>
    %28 = vector.multi_reduction <add>, %27, %cst_7 [1] : vector<4x4x8x32xf32> to vector<4x8x32xf32>
    %29 = vector.shape_cast %28 : vector<4x8x32xf32> to vector<4x1x8x32xf32>
    %30 = vector.broadcast %29 : vector<4x1x8x32xf32> to vector<4x4x8x32xf32>
    %31 = arith.divf %27, %30 : vector<4x4x8x32xf32>
    %32 = vector.broadcast %15 : vector<1x4x8x32xf32> to vector<4x4x8x32xf32>
    %33 = arith.mulf %31, %32 : vector<4x4x8x32xf32>
    %cst_8 = arith.constant dense<0.000000e+00> : vector<4x8x32xf32>
    %34 = vector.multi_reduction <add>, %33, %cst_8 [1] : vector<4x4x8x32xf32> to vector<4x8x32xf32>
    %35 = vector.shape_cast %34 : vector<4x8x32xf32> to vector<32x32xf32>
    %c32 = arith.constant 32 : index
    %c0_9 = arith.constant 0 : index
    %36 = vector.load %arg2[%c32, %c0_9] : memref<64x32xf32, #tpu.memory_space<vmem>>, vector<32x32xf32>
    %cst_10 = arith.constant dense<0.000000e+00> : vector<32x32xf32>
    %37 = tpu.matmul %35, %36, %cst_10 {dimension_numbers = #tpu.dot_dimension_numbers<[1], [0], [0], [1], [0, 0, 1, 1], [], []>} : vector<32x32xf32>, vector<32x32xf32>, vector<32x32xf32> -> vector<32x32xf32>
    %c32_11 = arith.constant 32 : index
    %c0_12 = arith.constant 0 : index
    %38 = vector.load %arg6[%c32_11, %c0_12] : memref<48x128xf32, #tpu.memory_space<vmem>>, vector<1x32xf32>
    %39 = vector.broadcast %38 : vector<1x32xf32> to vector<32x32xf32>
    %40 = arith.addf %37, %39 : vector<32x32xf32>
    %41 = arith.addf %9, %40 : vector<32x32xf32>
    %c33 = arith.constant 33 : index
    %c0_13 = arith.constant 0 : index
    %42 = vector.load %arg6[%c33, %c0_13] : memref<48x128xf32, #tpu.memory_space<vmem>>, vector<1x32xf32>
    %c34 = arith.constant 34 : index
    %c0_14 = arith.constant 0 : index
    %43 = vector.load %arg6[%c34, %c0_14] : memref<48x128xf32, #tpu.memory_space<vmem>>, vector<1x32xf32>
    %cst_15 = arith.constant dense<0.000000e+00> : vector<32xf32>
    %44 = vector.multi_reduction <add>, %41, %cst_15 [1] : vector<32x32xf32> to vector<32xf32>
    %45 = vector.shape_cast %44 : vector<32xf32> to vector<32x1xf32>
    %cst_16 = arith.constant 3.200000e+01 : f32
    %46 = vector.broadcast %cst_16 : f32 to vector<32x1xf32>
    %47 = arith.divf %45, %46 : vector<32x1xf32>
    %48 = vector.broadcast %47 : vector<32x1xf32> to vector<32x32xf32>
    %49 = arith.subf %41, %48 : vector<32x32xf32>
    %50 = arith.mulf %49, %49 : vector<32x32xf32>
    %cst_17 = arith.constant dense<0.000000e+00> : vector<32xf32>
    %51 = vector.multi_reduction <add>, %50, %cst_17 [1] : vector<32x32xf32> to vector<32xf32>
    %52 = vector.shape_cast %51 : vector<32xf32> to vector<32x1xf32>
    %cst_18 = arith.constant 3.200000e+01 : f32
    %53 = vector.broadcast %cst_18 : f32 to vector<32x1xf32>
    %54 = arith.divf %52, %53 : vector<32x1xf32>
    %cst_19 = arith.constant 9.99999974E-6 : f32
    %55 = vector.broadcast %cst_19 : f32 to vector<32x1xf32>
    %56 = arith.addf %54, %55 : vector<32x1xf32>
    %57 = math.rsqrt %56 : vector<32x1xf32>
    %58 = vector.broadcast %57 : vector<32x1xf32> to vector<32x32xf32>
    %59 = arith.mulf %49, %58 : vector<32x32xf32>
    %60 = vector.broadcast %42 : vector<1x32xf32> to vector<32x32xf32>
    %61 = arith.mulf %59, %60 : vector<32x32xf32>
    %62 = vector.broadcast %43 : vector<1x32xf32> to vector<32x32xf32>
    %63 = arith.addf %61, %62 : vector<32x32xf32>
    %64 = arith.truncf %63 : vector<32x32xf32> to vector<32x32xbf16>
    %cst_20 = arith.constant 0.000000e+00 : f32
    %65 = vector.broadcast %cst_20 : f32 to vector<32x32xf32>
    %c0_i32 = arith.constant 0 : i32
    %66 = arith.index_cast %c0_i32 : i32 to index
    %c0_21 = arith.constant 0 : index
    %c0_22 = arith.constant 0 : index
    %67 = vector.load %arg3[%66, %c0_21, %c0_22] : memref<4x32x512xbf16, #tpu.memory_space<vmem>>, vector<1x32x512xbf16>
    %68 = vector.shape_cast %67 : vector<1x32x512xbf16> to vector<32x512xbf16>
    %cst_23 = arith.constant dense<0.000000e+00> : vector<32x512xf32>
    %69 = tpu.matmul %64, %68, %cst_23 {dimension_numbers = #tpu.dot_dimension_numbers<[1], [0], [0], [1], [0, 0, 1, 1], [], []>} : vector<32x32xbf16>, vector<32x512xbf16>, vector<32x512xf32> -> vector<32x512xf32>
    %70 = arith.index_cast %c0_i32 : i32 to index
    %c0_24 = arith.constant 0 : index
    %c0_25 = arith.constant 0 : index
    %71 = vector.load %arg4[%70, %c0_24, %c0_25] : memref<4x1x512xf32, #tpu.memory_space<vmem>>, vector<1x1x512xf32>
    %72 = vector.shape_cast %71 : vector<1x1x512xf32> to vector<1x512xf32>
    %73 = vector.broadcast %72 : vector<1x512xf32> to vector<32x512xf32>
    %74 = arith.addf %69, %73 : vector<32x512xf32>
    %cst_26 = arith.constant 0.000000e+00 : f32
    %75 = vector.broadcast %cst_26 : f32 to vector<32x512xf32>
    %76 = arith.maximumf %74, %75 : vector<32x512xf32>
    %77 = arith.truncf %76 : vector<32x512xf32> to vector<32x512xbf16>
    %78 = arith.index_cast %c0_i32 : i32 to index
    %c0_27 = arith.constant 0 : index
    %c0_28 = arith.constant 0 : index
    %79 = vector.load %arg5[%78, %c0_27, %c0_28] : memref<4x512x32xbf16, #tpu.memory_space<vmem>>, vector<1x512x32xbf16>
    %80 = vector.shape_cast %79 : vector<1x512x32xbf16> to vector<512x32xbf16>
    %cst_29 = arith.constant dense<0.000000e+00> : vector<32x32xf32>
    %81 = tpu.matmul %77, %80, %cst_29 {dimension_numbers = #tpu.dot_dimension_numbers<[1], [0], [0], [1], [0, 0, 1, 1], [], []>} : vector<32x512xbf16>, vector<512x32xbf16>, vector<32x32xf32> -> vector<32x32xf32>
    %82 = arith.addf %65, %81 : vector<32x32xf32>
    %c1_i32 = arith.constant 1 : i32
    %83 = arith.index_cast %c1_i32 : i32 to index
    %c0_30 = arith.constant 0 : index
    %c0_31 = arith.constant 0 : index
    %84 = vector.load %arg3[%83, %c0_30, %c0_31] : memref<4x32x512xbf16, #tpu.memory_space<vmem>>, vector<1x32x512xbf16>
    %85 = vector.shape_cast %84 : vector<1x32x512xbf16> to vector<32x512xbf16>
    %cst_32 = arith.constant dense<0.000000e+00> : vector<32x512xf32>
    %86 = tpu.matmul %64, %85, %cst_32 {dimension_numbers = #tpu.dot_dimension_numbers<[1], [0], [0], [1], [0, 0, 1, 1], [], []>} : vector<32x32xbf16>, vector<32x512xbf16>, vector<32x512xf32> -> vector<32x512xf32>
    %87 = arith.index_cast %c1_i32 : i32 to index
    %c0_33 = arith.constant 0 : index
    %c0_34 = arith.constant 0 : index
    %88 = vector.load %arg4[%87, %c0_33, %c0_34] : memref<4x1x512xf32, #tpu.memory_space<vmem>>, vector<1x1x512xf32>
    %89 = vector.shape_cast %88 : vector<1x1x512xf32> to vector<1x512xf32>
    %90 = vector.broadcast %89 : vector<1x512xf32> to vector<32x512xf32>
    %91 = arith.addf %86, %90 : vector<32x512xf32>
    %cst_35 = arith.constant 0.000000e+00 : f32
    %92 = vector.broadcast %cst_35 : f32 to vector<32x512xf32>
    %93 = arith.maximumf %91, %92 : vector<32x512xf32>
    %94 = arith.truncf %93 : vector<32x512xf32> to vector<32x512xbf16>
    %95 = arith.index_cast %c1_i32 : i32 to index
    %c0_36 = arith.constant 0 : index
    %c0_37 = arith.constant 0 : index
    %96 = vector.load %arg5[%95, %c0_36, %c0_37] : memref<4x512x32xbf16, #tpu.memory_space<vmem>>, vector<1x512x32xbf16>
    %97 = vector.shape_cast %96 : vector<1x512x32xbf16> to vector<512x32xbf16>
    %cst_38 = arith.constant dense<0.000000e+00> : vector<32x32xf32>
    %98 = tpu.matmul %94, %97, %cst_38 {dimension_numbers = #tpu.dot_dimension_numbers<[1], [0], [0], [1], [0, 0, 1, 1], [], []>} : vector<32x512xbf16>, vector<512x32xbf16>, vector<32x32xf32> -> vector<32x32xf32>
    %99 = arith.addf %82, %98 : vector<32x32xf32>
    %c2_i32 = arith.constant 2 : i32
    %100 = arith.index_cast %c2_i32 : i32 to index
    %c0_39 = arith.constant 0 : index
    %c0_40 = arith.constant 0 : index
    %101 = vector.load %arg3[%100, %c0_39, %c0_40] : memref<4x32x512xbf16, #tpu.memory_space<vmem>>, vector<1x32x512xbf16>
    %102 = vector.shape_cast %101 : vector<1x32x512xbf16> to vector<32x512xbf16>
    %cst_41 = arith.constant dense<0.000000e+00> : vector<32x512xf32>
    %103 = tpu.matmul %64, %102, %cst_41 {dimension_numbers = #tpu.dot_dimension_numbers<[1], [0], [0], [1], [0, 0, 1, 1], [], []>} : vector<32x32xbf16>, vector<32x512xbf16>, vector<32x512xf32> -> vector<32x512xf32>
    %104 = arith.index_cast %c2_i32 : i32 to index
    %c0_42 = arith.constant 0 : index
    %c0_43 = arith.constant 0 : index
    %105 = vector.load %arg4[%104, %c0_42, %c0_43] : memref<4x1x512xf32, #tpu.memory_space<vmem>>, vector<1x1x512xf32>
    %106 = vector.shape_cast %105 : vector<1x1x512xf32> to vector<1x512xf32>
    %107 = vector.broadcast %106 : vector<1x512xf32> to vector<32x512xf32>
    %108 = arith.addf %103, %107 : vector<32x512xf32>
    %cst_44 = arith.constant 0.000000e+00 : f32
    %109 = vector.broadcast %cst_44 : f32 to vector<32x512xf32>
    %110 = arith.maximumf %108, %109 : vector<32x512xf32>
    %111 = arith.truncf %110 : vector<32x512xf32> to vector<32x512xbf16>
    %112 = arith.index_cast %c2_i32 : i32 to index
    %c0_45 = arith.constant 0 : index
    %c0_46 = arith.constant 0 : index
    %113 = vector.load %arg5[%112, %c0_45, %c0_46] : memref<4x512x32xbf16, #tpu.memory_space<vmem>>, vector<1x512x32xbf16>
    %114 = vector.shape_cast %113 : vector<1x512x32xbf16> to vector<512x32xbf16>
    %cst_47 = arith.constant dense<0.000000e+00> : vector<32x32xf32>
    %115 = tpu.matmul %111, %114, %cst_47 {dimension_numbers = #tpu.dot_dimension_numbers<[1], [0], [0], [1], [0, 0, 1, 1], [], []>} : vector<32x512xbf16>, vector<512x32xbf16>, vector<32x32xf32> -> vector<32x32xf32>
    %116 = arith.addf %99, %115 : vector<32x32xf32>
    %c3_i32 = arith.constant 3 : i32
    %117 = arith.index_cast %c3_i32 : i32 to index
    %c0_48 = arith.constant 0 : index
    %c0_49 = arith.constant 0 : index
    %118 = vector.load %arg3[%117, %c0_48, %c0_49] : memref<4x32x512xbf16, #tpu.memory_space<vmem>>, vector<1x32x512xbf16>
    %119 = vector.shape_cast %118 : vector<1x32x512xbf16> to vector<32x512xbf16>
    %cst_50 = arith.constant dense<0.000000e+00> : vector<32x512xf32>
    %120 = tpu.matmul %64, %119, %cst_50 {dimension_numbers = #tpu.dot_dimension_numbers<[1], [0], [0], [1], [0, 0, 1, 1], [], []>} : vector<32x32xbf16>, vector<32x512xbf16>, vector<32x512xf32> -> vector<32x512xf32>
    %121 = arith.index_cast %c3_i32 : i32 to index
    %c0_51 = arith.constant 0 : index
    %c0_52 = arith.constant 0 : index
    %122 = vector.load %arg4[%121, %c0_51, %c0_52] : memref<4x1x512xf32, #tpu.memory_space<vmem>>, vector<1x1x512xf32>
    %123 = vector.shape_cast %122 : vector<1x1x512xf32> to vector<1x512xf32>
    %124 = vector.broadcast %123 : vector<1x512xf32> to vector<32x512xf32>
    %125 = arith.addf %120, %124 : vector<32x512xf32>
    %cst_53 = arith.constant 0.000000e+00 : f32
    %126 = vector.broadcast %cst_53 : f32 to vector<32x512xf32>
    %127 = arith.maximumf %125, %126 : vector<32x512xf32>
    %128 = arith.truncf %127 : vector<32x512xf32> to vector<32x512xbf16>
    %129 = arith.index_cast %c3_i32 : i32 to index
    %c0_54 = arith.constant 0 : index
    %c0_55 = arith.constant 0 : index
    %130 = vector.load %arg5[%129, %c0_54, %c0_55] : memref<4x512x32xbf16, #tpu.memory_space<vmem>>, vector<1x512x32xbf16>
    %131 = vector.shape_cast %130 : vector<1x512x32xbf16> to vector<512x32xbf16>
    %cst_56 = arith.constant dense<0.000000e+00> : vector<32x32xf32>
    %132 = tpu.matmul %128, %131, %cst_56 {dimension_numbers = #tpu.dot_dimension_numbers<[1], [0], [0], [1], [0, 0, 1, 1], [], []>} : vector<32x512xbf16>, vector<512x32xbf16>, vector<32x32xf32> -> vector<32x32xf32>
    %133 = arith.addf %116, %132 : vector<32x32xf32>
    %c4_i32 = arith.constant 4 : i32
    %c37 = arith.constant 37 : index
    %c0_57 = arith.constant 0 : index
    %134 = vector.load %arg6[%c37, %c0_57] : memref<48x128xf32, #tpu.memory_space<vmem>>, vector<1x32xf32>
    %135 = vector.broadcast %134 : vector<1x32xf32> to vector<32x32xf32>
    %136 = arith.addf %133, %135 : vector<32x32xf32>
    %137 = arith.addf %63, %136 : vector<32x32xf32>
    %c35 = arith.constant 35 : index
    %c0_58 = arith.constant 0 : index
    %138 = vector.load %arg6[%c35, %c0_58] : memref<48x128xf32, #tpu.memory_space<vmem>>, vector<1x32xf32>
    %c36 = arith.constant 36 : index
    %c0_59 = arith.constant 0 : index
    %139 = vector.load %arg6[%c36, %c0_59] : memref<48x128xf32, #tpu.memory_space<vmem>>, vector<1x32xf32>
    %cst_60 = arith.constant dense<0.000000e+00> : vector<32xf32>
    %140 = vector.multi_reduction <add>, %137, %cst_60 [1] : vector<32x32xf32> to vector<32xf32>
    %141 = vector.shape_cast %140 : vector<32xf32> to vector<32x1xf32>
    %cst_61 = arith.constant 3.200000e+01 : f32
    %142 = vector.broadcast %cst_61 : f32 to vector<32x1xf32>
    %143 = arith.divf %141, %142 : vector<32x1xf32>
    %144 = vector.broadcast %143 : vector<32x1xf32> to vector<32x32xf32>
    %145 = arith.subf %137, %144 : vector<32x32xf32>
    %146 = arith.mulf %145, %145 : vector<32x32xf32>
    %cst_62 = arith.constant dense<0.000000e+00> : vector<32xf32>
    %147 = vector.multi_reduction <add>, %146, %cst_62 [1] : vector<32x32xf32> to vector<32xf32>
    %148 = vector.shape_cast %147 : vector<32xf32> to vector<32x1xf32>
    %cst_63 = arith.constant 3.200000e+01 : f32
    %149 = vector.broadcast %cst_63 : f32 to vector<32x1xf32>
    %150 = arith.divf %148, %149 : vector<32x1xf32>
    %cst_64 = arith.constant 9.99999974E-6 : f32
    %151 = vector.broadcast %cst_64 : f32 to vector<32x1xf32>
    %152 = arith.addf %150, %151 : vector<32x1xf32>
    %153 = math.rsqrt %152 : vector<32x1xf32>
    %154 = vector.broadcast %153 : vector<32x1xf32> to vector<32x32xf32>
    %155 = arith.mulf %145, %154 : vector<32x32xf32>
    %156 = vector.broadcast %138 : vector<1x32xf32> to vector<32x32xf32>
    %157 = arith.mulf %155, %156 : vector<32x32xf32>
    %158 = vector.broadcast %139 : vector<1x32xf32> to vector<32x32xf32>
    %159 = arith.addf %157, %158 : vector<32x32xf32>
    %160 = vector.shape_cast %159 : vector<32x32xf32> to vector<4x8x32xf32>
    %161 = vector.extract_strided_slice %160 {offsets = [0, 1, 0], sizes = [4, 1, 32], strides = [1, 1, 1]} : vector<4x8x32xf32> to vector<4x1x32xf32>
    %162 = vector.shape_cast %161 : vector<4x1x32xf32> to vector<4x32xf32>
    %c0_65 = arith.constant 0 : index
    %c0_66 = arith.constant 0 : index
    %163 = vector.load %arg6[%c0_65, %c0_66] : memref<48x128xf32, #tpu.memory_space<vmem>>, vector<32x128xf32>
    %cst_67 = arith.constant dense<0.000000e+00> : vector<4x128xf32>
    %164 = tpu.matmul %162, %163, %cst_67 {dimension_numbers = #tpu.dot_dimension_numbers<[1], [0], [0], [1], [0, 0, 1, 1], [], []>} : vector<4x32xf32>, vector<32x128xf32>, vector<4x128xf32> -> vector<4x128xf32>
    %c38 = arith.constant 38 : index
    %c0_68 = arith.constant 0 : index
    %165 = vector.load %arg6[%c38, %c0_68] : memref<48x128xf32, #tpu.memory_space<vmem>>, vector<1x128xf32>
    %166 = vector.broadcast %165 : vector<1x128xf32> to vector<4x128xf32>
    %167 = arith.addf %164, %166 : vector<4x128xf32>
    %cst_69 = arith.constant 0.000000e+00 : f32
    %168 = vector.broadcast %cst_69 : f32 to vector<4x128xf32>
    %169 = arith.maximumf %167, %168 : vector<4x128xf32>
    %c39 = arith.constant 39 : index
    %c0_70 = arith.constant 0 : index
    %170 = vector.load %arg6[%c39, %c0_70] : memref<48x128xf32, #tpu.memory_space<vmem>>, vector<1x128xf32>
    %c40 = arith.constant 40 : index
    %c0_71 = arith.constant 0 : index
    %171 = vector.load %arg6[%c40, %c0_71] : memref<48x128xf32, #tpu.memory_space<vmem>>, vector<1x1xf32>
    %172 = vector.broadcast %170 : vector<1x128xf32> to vector<4x128xf32>
    %173 = arith.mulf %169, %172 : vector<4x128xf32>
    %cst_72 = arith.constant dense<0.000000e+00> : vector<4xf32>
    %174 = vector.multi_reduction <add>, %173, %cst_72 [1] : vector<4x128xf32> to vector<4xf32>
    %175 = vector.shape_cast %174 : vector<4xf32> to vector<4x1xf32>
    %176 = vector.broadcast %171 : vector<1x1xf32> to vector<4x1xf32>
    %177 = arith.addf %175, %176 : vector<4x1xf32>
    %178 = arith.negf %177 : vector<4x1xf32>
    %179 = math.exp %178 : vector<4x1xf32>
    %cst_73 = arith.constant 1.000000e+00 : f32
    %180 = vector.broadcast %cst_73 : f32 to vector<4x1xf32>
    %181 = arith.addf %180, %179 : vector<4x1xf32>
    %182 = arith.divf %180, %181 : vector<4x1xf32>
    %c0_74 = arith.constant 0 : index
    %c0_75 = arith.constant 0 : index
    %183 = vector.load %arg7[%c0_74, %c0_75] : memref<4x1xf32, #tpu.memory_space<vmem>>, vector<4x1xf32>
    tpu.vector_store %arg7[%c0_74, %c0_75], %182 {strides = array<i32>} : memref<4x1xf32, #tpu.memory_space<vmem>>, vector<4x1xf32>,
    return
  }
}

</mosaic_0001>

<llo_original>
// kernel: tpu_custom_call.1
$region0: #{tpu_custom_call.1}
  #allocation0 [shape = 'u32[]', space=smem, size = 0x4, offset = 0x4, fixed_abs, tag = 'smem constant byte address 0x4 - core index']
  #allocation1 [shape = 'u32[144,128]{1,0:T(1,128)}', space=vmem, size = 0x12000, scoped, tag = 'internal scratch']
  %s0 = inlined_call_operand.vmem [shape: s32[32,1], index: 0, kind: input, shape index: {}]
  %s1 = inlined_call_operand.vmem [shape: bf16[128,128], index: 1, kind: input, shape index: {}]
  %s2 = inlined_call_operand.vmem [shape: f32[64,32], index: 2, kind: input, shape index: {}]
  %s3 = inlined_call_operand.vmem [shape: bf16[4,32,512], index: 3, kind: input, shape index: {}]
  %s4 = inlined_call_operand.vmem [shape: f32[4,1,512], index: 4, kind: input, shape index: {}]
  %s5 = inlined_call_operand.vmem [shape: bf16[4,512,32], index: 5, kind: input, shape index: {}]
  %s6 = inlined_call_operand.vmem [shape: f32[48,128], index: 6, kind: input, shape index: {}]
  %s7 = inlined_call_operand.vmem [shape: f32[4,1], index: 7, kind: output, shape index: {}]
  %s8 = sld [smem:[#allocation0]]
  $region38: #{tpu_custom_call.1} parent=0
    _
  %s10 = ssub.s32 1, %s8
  %s11 = scalar_select 0, %s10, %s8
  // Predicated region
  $region2: #{tpu_custom_call.1} parent=0 // pred_check
    _
  $region3: #{tpu_custom_call.1} parent=0 // pred_check_branch
    %13 = sbr.rel (0) target = $region5
  $region4: #{tpu_custom_call.1} parent=0 // pred_region
    _
  $region5: #{tpu_custom_call.1} parent=0 // pred_fallthru
    _
  // Predicated region
  $region6: #{tpu_custom_call.1} parent=0 // pred_check
    _
  $region7: #{tpu_custom_call.1} parent=0 // pred_check_branch
    %15 = sbr.rel (0) target = $region9
  $region8: #{tpu_custom_call.1} parent=0 // pred_region
    _
  $region9: #{tpu_custom_call.1} parent=0 // pred_fallthru
    _
  // Predicated region
  $region10: #{tpu_custom_call.1} parent=0 // pred_check
    _
  $region11: #{tpu_custom_call.1} parent=0 // pred_check_branch
    %17 = sbr.rel (0) target = $region13
  $region12: #{tpu_custom_call.1} parent=0 // pred_region
    _
  $region13: #{tpu_custom_call.1} parent=0 // pred_fallthru
    _
  // Predicated region
  $region14: #{tpu_custom_call.1} parent=0 // pred_check
    _
  $region15: #{tpu_custom_call.1} parent=0 // pred_check_branch
    %19 = sbr.rel (0) target = $region17
  $region16: #{tpu_custom_call.1} parent=0 // pred_region
    _
  $region17: #{tpu_custom_call.1} parent=0 // pred_fallthru
    _
  // Predicated region
  $region18: #{tpu_custom_call.1} parent=0 // pred_check
    _
  $region19: #{tpu_custom_call.1} parent=0 // pred_check_branch
    %21 = sbr.rel (0) target = $region21
  $region20: #{tpu_custom_call.1} parent=0 // pred_region
    _
  $region21: #{tpu_custom_call.1} parent=0 // pred_fallthru
    _
  // Predicated region
  $region22: #{tpu_custom_call.1} parent=0 // pred_check
    _
  $region23: #{tpu_custom_call.1} parent=0 // pred_check_branch
    %23 = sbr.rel (0) target = $region25
  $region24: #{tpu_custom_call.1} parent=0 // pred_region
    _
  $region25: #{tpu_custom_call.1} parent=0 // pred_fallthru
    _
  // Predicated region
  $region26: #{tpu_custom_call.1} parent=0 // pred_check
    _
  $region27: #{tpu_custom_call.1} parent=0 // pred_check_branch
    %25 = sbr.rel (0) target = $region29
  $region28: #{tpu_custom_call.1} parent=0 // pred_region
    _
  $region29: #{tpu_custom_call.1} parent=0 // pred_fallthru
    _
  %v27 = vld [vmem:[%s0] sm:$0xff]
  %v28 = vld [vmem:[%s0 + $0x8] sm:$0xff]
  %v29 = vld [vmem:[%s0 + $0x10] sm:$0xff]
  %v30 = vld [vmem:[%s0 + $0x18] sm:$0xff]
  %v31 = vlaneseq
  %v32 = vand.u32 %v31, 127
  %33 = vset.pattern.permute.xlu0 0
  %34 = vperm.xlu0 %33, %v27
  %v35 = vpop.permute.xlu0 %34
  %36 = vset.pattern.permute.xlu0 0
  %37 = vperm.xlu0 %36, %v28
  %v38 = vpop.permute.xlu0 %37
  %39 = vset.pattern.permute.xlu0 0
  %40 = vperm.xlu0 %39, %v29
  %v41 = vpop.permute.xlu0 %40
  %42 = vset.pattern.permute.xlu0 0
  %43 = vperm.xlu0 %42, %v30
  %v44 = vpop.permute.xlu0 %43
  %vm45 = vcmp.eq.s32.totalorder %v35, %v32
  %vm46 = vcmp.eq.s32.totalorder %v38, %v32
  %vm47 = vcmp.eq.s32.totalorder %v41, %v32
  %vm48 = vcmp.eq.s32.totalorder %v44, %v32
  %v49 = vsel %vm45, 1, 0
  %v50 = vsel %vm46, 1, 0
  %v51 = vsel %vm47, 1, 0
  %v52 = vsel %vm48, 1, 0
  %v53 = vcvt.s32.f32 %v49
  %v54 = vcvt.s32.f32 %v50
  %v55 = vcvt.s32.f32 %v51
  %v56 = vcvt.s32.f32 %v52
  %v57 = vpack.c.bf16 %v54, %v53
  %v58 = vpack.c.bf16 %v56, %v55
  %v59 = vld [vmem:[%s1] sm:$0xf]
  %v60 = vld [vmem:[%s1 + $0x4] sm:$0xf]
  %v61 = vld [vmem:[%s1 + $0x8] sm:$0xf]
  %v62 = vld [vmem:[%s1 + $0xc] sm:$0xf]
  %v63 = vld [vmem:[%s1 + $0x10] sm:$0xf]
  %v64 = vld [vmem:[%s1 + $0x14] sm:$0xf]
  %v65 = vld [vmem:[%s1 + $0x18] sm:$0xf]
  %v66 = vld [vmem:[%s1 + $0x1c] sm:$0xf]
  %v67 = vld [vmem:[%s1 + $0x20] sm:$0xf]
  %v68 = vld [vmem:[%s1 + $0x24] sm:$0xf]
  %v69 = vld [vmem:[%s1 + $0x28] sm:$0xf]
  %v70 = vld [vmem:[%s1 + $0x2c] sm:$0xf]
  %v71 = vld [vmem:[%s1 + $0x30] sm:$0xf]
  %v72 = vld [vmem:[%s1 + $0x34] sm:$0xf]
  %v73 = vld [vmem:[%s1 + $0x38] sm:$0xf]
  %v74 = vld [vmem:[%s1 + $0x3c] sm:$0xf]
  %v91 = vunpack.c.l.b16 %v59
  %v92 = vunpack.c.l.b16 %v60
  %v93 = vunpack.c.l.b16 %v61
  %v94 = vunpack.c.l.b16 %v62
  %v95 = vunpack.c.l.b16 %v63
  %v96 = vunpack.c.l.b16 %v64
  %v97 = vunpack.c.l.b16 %v65
  %v98 = vunpack.c.l.b16 %v66
  %v99 = vunpack.c.l.b16 %v67
  %v100 = vunpack.c.l.b16 %v68
  %v101 = vunpack.c.l.b16 %v69
  %v102 = vunpack.c.l.b16 %v70
  %v103 = vunpack.c.l.b16 %v71
  %v104 = vunpack.c.l.b16 %v72
  %v105 = vunpack.c.l.b16 %v73
  %v106 = vunpack.c.l.b16 %v74
  %v107 = vpack.c.b16 %v92, %v91
  %v108 = vpack.c.b16 %v94, %v93
  %v109 = vpack.c.b16 %v96, %v95
  %v110 = vpack.c.b16 %v98, %v97
  %v111 = vpack.c.b16 %v100, %v99
  %v112 = vpack.c.b16 %v102, %v101
  %v113 = vpack.c.b16 %v104, %v103
  %v114 = vpack.c.b16 %v106, %v105
  %123 = vmatprep.subr.bf16.mxu0 0
  %124 = vmatpush1.bf16.msra.mxu0 %v114
  %125 = vmatprep.subr.bf16.mxu0 0
  %126 = vmatpush1.bf16.msra.mxu0 %v113
  %127 = vmatprep.subr.bf16.mxu0 0
  %128 = vmatpush1.bf16.msra.mxu0 %v112
  %129 = vmatprep.subr.bf16.mxu0 0
  %130 = vmatpush1.bf16.msra.mxu0 %v111
  %131 = vmatprep.subr.bf16.mxu0 0
  %132 = vmatpush1.bf16.msra.mxu0 %v110
  %133 = vmatprep.subr.bf16.mxu0 0
  %134 = vmatpush1.bf16.msra.mxu0 %v109
  %135 = vmatprep.subr.bf16.mxu0 0
  %136 = vmatpush1.bf16.msra.mxu0 %v108
  %137 = vmatprep.subr.bf16.mxu0 0
  %138 = vmatpush1.bf16.msra.mxu0 %v107
  %139 = vmatprep.subr.bf16.mxu0 0
  %140 = vmatpush2.bf16.msra.mxu0 0
  %141 = vmatprep.subr.bf16.mxu0 0
  %142 = vmatpush2.bf16.msra.mxu0 0
  %143 = vmatprep.subr.bf16.mxu0 0
  %144 = vmatpush2.bf16.msra.mxu0 0
  %145 = vmatprep.subr.bf16.mxu0 0
  %146 = vmatpush2.bf16.msra.mxu0 0
  %147 = vmatprep.subr.bf16.mxu0 0
  %148 = vmatpush2.bf16.msra.mxu0 0
  %149 = vmatprep.subr.bf16.mxu0 0
  %150 = vmatpush2.bf16.msra.mxu0 0
  %151 = vmatprep.subr.bf16.mxu0 0
  %152 = vmatpush2.bf16.msra.mxu0 0
  %153 = vmatprep.subr.bf16.mxu0 0
  %154 = vmatpush2.bf16.msra.mxu0 0
  %155 = vmatprep.mubr.bf16.mxu0 0
  %156 = vmatmul.mubr.bf16.gmra.mxu0 %v57
  %v157 = vpop.f32.mrf.mxu0
  %v158 = vadd.f32 0.0, %v157
  %v159 = vpop.f32.mrf.mxu0
  %v160 = vpop.f32.mrf.mxu0
  %v161 = vadd.f32 0.0, %v160
  %v162 = vpop.f32.mrf.mxu0
  %163 = vmatprep.mubr.bf16.mxu0 0
  %164 = vmatmul.mubr.bf16.gmra.mxu0 %v58
  %v165 = vpop.f32.mrf.mxu0
  %v166 = vadd.f32 0.0, %v165
  %v167 = vpop.f32.mrf.mxu0
  %v168 = vpop.f32.mrf.mxu0
  %v169 = vadd.f32 0.0, %v168
  %v170 = vpop.f32.mrf.mxu0
  %171 = vdwg.mxu0
  %176 = vrot.lane.b32.xlu0 %v158, 96
  %v177 = vpop.permute.xlu0 %176
  %178 = vrot.lane.b32.xlu0 %v161, 96
  %v179 = vpop.permute.xlu0 %178
  %180 = vrot.lane.b32.xlu0 %v166, 96
  %v181 = vpop.permute.xlu0 %180
  %182 = vrot.lane.b32.xlu0 %v169, 96
  %v183 = vpop.permute.xlu0 %182
  %v188 = vmul.f32 %v158, %v177
  %v189 = vmul.f32 %v158, %v179
  %v190 = vmul.f32 %v158, %v181
  %v191 = vmul.f32 %v158, %v183
  %v192 = vmul.f32 %v161, %v177
  %v193 = vmul.f32 %v161, %v179
  %v194 = vmul.f32 %v161, %v181
  %v195 = vmul.f32 %v161, %v183
  %v196 = vmul.f32 %v166, %v177
  %v197 = vmul.f32 %v166, %v179
  %v198 = vmul.f32 %v166, %v181
  %v199 = vmul.f32 %v166, %v183
  %v200 = vmul.f32 %v169, %v177
  %v201 = vmul.f32 %v169, %v179
  %v202 = vmul.f32 %v169, %v181
  %v203 = vmul.f32 %v169, %v183
  %v204 = vld [vmem:[%s2] sm:$0xff]
  %v205 = vld [vmem:[%s2 + $0x8] sm:$0xff]
  %v206 = vld [vmem:[%s2 + $0x10] sm:$0xff]
  %v207 = vld [vmem:[%s2 + $0x18] sm:$0xff]
  %224 = vrot.lane.b32.xlu0 %v188, 96
  %v225 = vpop.permute.xlu0 %224
  %226 = vrot.lane.b32.xlu0 %v189, 96
  %v227 = vpop.permute.xlu0 %226
  %228 = vrot.lane.b32.xlu0 %v190, 96
  %v229 = vpop.permute.xlu0 %228
  %230 = vrot.lane.b32.xlu0 %v191, 96
  %v231 = vpop.permute.xlu0 %230
  %232 = vrot.lane.b32.xlu0 %v192, 96
  %v233 = vpop.permute.xlu0 %232
  %234 = vrot.lane.b32.xlu0 %v193, 96
  %v235 = vpop.permute.xlu0 %234
  %236 = vrot.lane.b32.xlu0 %v194, 96
  %v237 = vpop.permute.xlu0 %236
  %238 = vrot.lane.b32.xlu0 %v195, 96
  %v239 = vpop.permute.xlu0 %238
  %240 = vrot.lane.b32.xlu0 %v196, 96
  %v241 = vpop.permute.xlu0 %240
  %242 = vrot.lane.b32.xlu0 %v197, 96
  %v243 = vpop.permute.xlu0 %242
  %244 = vrot.lane.b32.xlu0 %v198, 96
  %v245 = vpop.permute.xlu0 %244
  %246 = vrot.lane.b32.xlu0 %v199, 96
  %v247 = vpop.permute.xlu0 %246
  %248 = vrot.lane.b32.xlu0 %v200, 96
  %v249 = vpop.permute.xlu0 %248
  %250 = vrot.lane.b32.xlu0 %v201, 96
  %v251 = vpop.permute.xlu0 %250
  %252 = vrot.lane.b32.xlu0 %v202, 96
  %v253 = vpop.permute.xlu0 %252
  %254 = vrot.lane.b32.xlu0 %v203, 96
  %v255 = vpop.permute.xlu0 %254
  %vm256 = vcmask 261120
  %v257 = vsel %vm256, %v225, 0
  %v259 = vsel %vm256, %v227, 0
  %v261 = vsel %vm256, %v229, 0
  %v263 = vsel %vm256, %v231, 0
  %v265 = vsel %vm256, %v233, 0
  %v267 = vsel %vm256, %v235, 0
  %v269 = vsel %vm256, %v237, 0
  %v271 = vsel %vm256, %v239, 0
  %v273 = vsel %vm256, %v241, 0
  %v275 = vsel %vm256, %v243, 0
  %v277 = vsel %vm256, %v245, 0
  %v279 = vsel %vm256, %v247, 0
  %v281 = vsel %vm256, %v249, 0
  %v283 = vsel %vm256, %v251, 0
  %v285 = vsel %vm256, %v253, 0
  %v287 = vsel %vm256, %v255, 0
  %289 = vmatprep.subr.mxu0 0.0
  %290 = vmatpush1.msra.mxu0 0.0
  %291 = vmatprep.subr.mxu0 0.0
  %292 = vmatpush1.msra.mxu0 0.0
  %293 = vmatprep.subr.mxu0 0.0
  %294 = vmatpush1.msra.mxu0 0.0
  %295 = vmatprep.subr.mxu0 0.0
  %296 = vmatpush1.msra.mxu0 0.0
  %297 = vmatprep.subr.mxu0 0.0
  %298 = vmatpush1.msra.mxu0 0.0
  %299 = vmatprep.subr.mxu0 0.0
  %300 = vmatpush1.msra.mxu0 0.0
  %301 = vmatprep.subr.mxu0 0.0
  %302 = vmatpush1.msra.mxu0 0.0
  %303 = vmatprep.subr.mxu0 0.0
  %304 = vmatpush1.msra.mxu0 0.0
  %305 = vmatprep.subr.mxu0 0.0
  %306 = vmatpush1.msra.mxu0 0.0
  %307 = vmatprep.subr.mxu0 0.0
  %308 = vmatpush1.msra.mxu0 0.0
  %309 = vmatprep.subr.mxu0 0.0
  %310 = vmatpush1.msra.mxu0 0.0
  %311 = vmatprep.subr.mxu0 0.0
  %312 = vmatpush1.msra.mxu0 0.0
  %313 = vmatprep.subr.mxu0 0.0
  %314 = vmatpush1.msra.mxu0 %v207
  %315 = vmatprep.subr.mxu0 0.0
  %316 = vmatpush1.msra.mxu0 %v206
  %317 = vmatprep.subr.mxu0 0.0
  %318 = vmatpush1.msra.mxu0 %v205
  %319 = vmatprep.subr.mxu0 0.0
  %320 = vmatpush1.msra.mxu0 %v204
  %321 = vmatprep.subr.mxu0 0.0
  %322 = vmatpush2.msra.mxu0 0.0
  %323 = vmatprep.subr.mxu0 0.0
  %324 = vmatpush2.msra.mxu0 0.0
  %325 = vmatprep.subr.mxu0 0.0
  %326 = vmatpush2.msra.mxu0 0.0
  %327 = vmatprep.subr.mxu0 0.0
  %328 = vmatpush2.msra.mxu0 0.0
  %329 = vmatprep.subr.mxu0 0.0
  %330 = vmatpush2.msra.mxu0 0.0
  %331 = vmatprep.subr.mxu0 0.0
  %332 = vmatpush2.msra.mxu0 0.0
  %333 = vmatprep.subr.mxu0 0.0
  %334 = vmatpush2.msra.mxu0 0.0
  %335 = vmatprep.subr.mxu0 0.0
  %336 = vmatpush2.msra.mxu0 0.0
  %337 = vmatprep.subr.mxu0 0.0
  %338 = vmatpush2.msra.mxu0 0.0
  %339 = vmatprep.subr.mxu0 0.0
  %340 = vmatpush2.msra.mxu0 0.0
  %341 = vmatprep.subr.mxu0 0.0
  %342 = vmatpush2.msra.mxu0 0.0
  %343 = vmatprep.subr.mxu0 0.0
  %344 = vmatpush2.msra.mxu0 0.0
  %345 = vmatprep.subr.mxu0 0.0
  %346 = vmatpush2.msra.mxu0 0.0
  %347 = vmatprep.subr.mxu0 0.0
  %348 = vmatpush2.msra.mxu0 0.0
  %349 = vmatprep.subr.mxu0 0.0
  %350 = vmatpush2.msra.mxu0 0.0
  %351 = vmatprep.subr.mxu0 0.0
  %352 = vmatpush2.msra.mxu0 0.0
  %353 = vmatprep.mubr.f32.mxu0 0.0
  %354 = vmatmul.mubr.f32.gmra.mxu0 %v257
  %v355 = vpop.f32.mrf.mxu0
  %v356 = vadd.f32 0.0, %v355
  %v357 = vpop.f32.mrf.mxu0
  %358 = vmatprep.mubr.f32.mxu0 0.0
  %359 = vmatmul.mubr.f32.gmra.mxu0 %v259
  %v360 = vpop.f32.mrf.mxu0
  %v361 = vadd.f32 0.0, %v360
  %v362 = vpop.f32.mrf.mxu0
  %363 = vmatprep.mubr.f32.mxu0 0.0
  %364 = vmatmul.mubr.f32.gmra.mxu0 %v261
  %v365 = vpop.f32.mrf.mxu0
  %v366 = vadd.f32 0.0, %v365
  %v367 = vpop.f32.mrf.mxu0
  %368 = vmatprep.mubr.f32.mxu0 0.0
  %369 = vmatmul.mubr.f32.gmra.mxu0 %v263
  %v370 = vpop.f32.mrf.mxu0
  %v371 = vadd.f32 0.0, %v370
  %v372 = vpop.f32.mrf.mxu0
  %373 = vmatprep.mubr.f32.mxu0 0.0
  %374 = vmatmul.mubr.f32.gmra.mxu0 %v265
  %v375 = vpop.f32.mrf.mxu0
  %v376 = vadd.f32 0.0, %v375
  %v377 = vpop.f32.mrf.mxu0
  %378 = vmatprep.mubr.f32.mxu0 0.0
  %379 = vmatmul.mubr.f32.gmra.mxu0 %v267
  %v380 = vpop.f32.mrf.mxu0
  %v381 = vadd.f32 0.0, %v380
  %v382 = vpop.f32.mrf.mxu0
  %383 = vmatprep.mubr.f32.mxu0 0.0
  %384 = vmatmul.mubr.f32.gmra.mxu0 %v269
  %v385 = vpop.f32.mrf.mxu0
  %v386 = vadd.f32 0.0, %v385
  %v387 = vpop.f32.mrf.mxu0
  %388 = vmatprep.mubr.f32.mxu0 0.0
  %389 = vmatmul.mubr.f32.gmra.mxu0 %v271
  %v390 = vpop.f32.mrf.mxu0
  %v391 = vadd.f32 0.0, %v390
  %v392 = vpop.f32.mrf.mxu0
  %393 = vmatprep.mubr.f32.mxu0 0.0
  %394 = vmatmul.mubr.f32.gmra.mxu0 %v273
  %v395 = vpop.f32.mrf.mxu0
  %v396 = vadd.f32 0.0, %v395
  %v397 = vpop.f32.mrf.mxu0
  %398 = vmatprep.mubr.f32.mxu0 0.0
  %399 = vmatmul.mubr.f32.gmra.mxu0 %v275
  %v400 = vpop.f32.mrf.mxu0
  %v401 = vadd.f32 0.0, %v400
  %v402 = vpop.f32.mrf.mxu0
  %403 = vmatprep.mubr.f32.mxu0 0.0
  %404 = vmatmul.mubr.f32.gmra.mxu0 %v277
  %v405 = vpop.f32.mrf.mxu0
  %v406 = vadd.f32 0.0, %v405
  %v407 = vpop.f32.mrf.mxu0
  %408 = vmatprep.mubr.f32.mxu0 0.0
  %409 = vmatmul.mubr.f32.gmra.mxu0 %v279
  %v410 = vpop.f32.mrf.mxu0
  %v411 = vadd.f32 0.0, %v410
  %v412 = vpop.f32.mrf.mxu0
  %413 = vmatprep.mubr.f32.mxu0 0.0
  %414 = vmatmul.mubr.f32.gmra.mxu0 %v281
  %v415 = vpop.f32.mrf.mxu0
  %v416 = vadd.f32 0.0, %v415
  %v417 = vpop.f32.mrf.mxu0
  %418 = vmatprep.mubr.f32.mxu0 0.0
  %419 = vmatmul.mubr.f32.gmra.mxu0 %v283
  %v420 = vpop.f32.mrf.mxu0
  %v421 = vadd.f32 0.0, %v420
  %v422 = vpop.f32.mrf.mxu0
  %423 = vmatprep.mubr.f32.mxu0 0.0
  %424 = vmatmul.mubr.f32.gmra.mxu0 %v285
  %v425 = vpop.f32.mrf.mxu0
  %v426 = vadd.f32 0.0, %v425
  %v427 = vpop.f32.mrf.mxu0
  %428 = vmatprep.mubr.f32.mxu0 0.0
  %429 = vmatmul.mubr.f32.gmra.mxu0 %v287
  %v430 = vpop.f32.mrf.mxu0
  %v431 = vadd.f32 0.0, %v430
  %v432 = vpop.f32.mrf.mxu0
  %433 = vdwg.mxu0
  %v434 = vsel %vm256, %v356, -inf
  %v435 = vsel %vm256, %v361, -inf
  %v436 = vmax.f32 %v434, %v435
  %v437 = vsel %vm256, %v366, -inf
  %v438 = vmax.f32 %v436, %v437
  %v439 = vsel %vm256, %v371, -inf
  %v440 = vmax.f32 %v438, %v439
  %v441 = vsel %vm256, %v376, -inf
  %v442 = vsel %vm256, %v381, -inf
  %v443 = vmax.f32 %v441, %v442
  %v444 = vsel %vm256, %v386, -inf
  %v445 = vmax.f32 %v443, %v444
  %v446 = vsel %vm256, %v391, -inf
  %v447 = vmax.f32 %v445, %v446
  %v448 = vsel %vm256, %v396, -inf
  %v449 = vsel %vm256, %v401, -inf
  %v450 = vmax.f32 %v448, %v449
  %v451 = vsel %vm256, %v406, -inf
  %v452 = vmax.f32 %v450, %v451
  %v453 = vsel %vm256, %v411, -inf
  %v454 = vmax.f32 %v452, %v453
  %v455 = vsel %vm256, %v416, -inf
  %v456 = vsel %vm256, %v421, -inf
  %v457 = vmax.f32 %v455, %v456
  %v458 = vsel %vm256, %v426, -inf
  %v459 = vmax.f32 %v457, %v458
  %v460 = vsel %vm256, %v431, -inf
  %v461 = vmax.f32 %v459, %v460
  %v462 = vsub.f32 %v356, %v440
  %v463 = vsub.f32 %v361, %v440
  %v464 = vsub.f32 %v366, %v440
  %v465 = vsub.f32 %v371, %v440
  %v466 = vsub.f32 %v376, %v447
  %v467 = vsub.f32 %v381, %v447
  %v468 = vsub.f32 %v386, %v447
  %v469 = vsub.f32 %v391, %v447
  %v470 = vsub.f32 %v396, %v454
  %v471 = vsub.f32 %v401, %v454
  %v472 = vsub.f32 %v406, %v454
  %v473 = vsub.f32 %v411, %v454
  %v474 = vsub.f32 %v416, %v461
  %v475 = vsub.f32 %v421, %v461
  %v476 = vsub.f32 %v426, %v461
  %v477 = vsub.f32 %v431, %v461
  %v478 = vmul.f32 %v462, 1.442695
  %v479 = vpow.pop %v478
  %v480 = vmul.f32 %v463, 1.442695
  %v481 = vpow.pop %v480
  %v482 = vmul.f32 %v464, 1.442695
  %v483 = vpow.pop %v482
  %v484 = vmul.f32 %v465, 1.442695
  %v485 = vpow.pop %v484
  %v486 = vmul.f32 %v466, 1.442695
  %v487 = vpow.pop %v486
  %v488 = vmul.f32 %v467, 1.442695
  %v489 = vpow.pop %v488
  %v490 = vmul.f32 %v468, 1.442695
  %v491 = vpow.pop %v490
  %v492 = vmul.f32 %v469, 1.442695
  %v493 = vpow.pop %v492
  %v494 = vmul.f32 %v470, 1.442695
  %v495 = vpow.pop %v494
  %v496 = vmul.f32 %v471, 1.442695
  %v497 = vpow.pop %v496
  %v498 = vmul.f32 %v472, 1.442695
  %v499 = vpow.pop %v498
  %v500 = vmul.f32 %v473, 1.442695
  %v501 = vpow.pop %v500
  %v502 = vmul.f32 %v474, 1.442695
  %v503 = vpow.pop %v502
  %v504 = vmul.f32 %v475, 1.442695
  %v505 = vpow.pop %v504
  %v506 = vmul.f32 %v476, 1.442695
  %v507 = vpow.pop %v506
  %v508 = vmul.f32 %v477, 1.442695
  %v509 = vpow.pop %v508
  %v510 = vsel %vm256, %v479, 0.0
  %v511 = vsel %vm256, %v481, 0.0
  %v512 = vadd.f32 %v510, %v511
  %v513 = vsel %vm256, %v483, 0.0
  %v514 = vadd.f32 %v512, %v513
  %v515 = vsel %vm256, %v485, 0.0
  %v516 = vadd.f32 %v514, %v515
  %v517 = vsel %vm256, %v487, 0.0
  %v518 = vsel %vm256, %v489, 0.0
  %v519 = vadd.f32 %v517, %v518
  %v520 = vsel %vm256, %v491, 0.0
  %v521 = vadd.f32 %v519, %v520
  %v522 = vsel %vm256, %v493, 0.0
  %v523 = vadd.f32 %v521, %v522
  %v524 = vsel %vm256, %v495, 0.0
  %v525 = vsel %vm256, %v497, 0.0
  %v526 = vadd.f32 %v524, %v525
  %v527 = vsel %vm256, %v499, 0.0
  %v528 = vadd.f32 %v526, %v527
  %v529 = vsel %vm256, %v501, 0.0
  %v530 = vadd.f32 %v528, %v529
  %v531 = vsel %vm256, %v503, 0.0
  %v532 = vsel %vm256, %v505, 0.0
  %v533 = vadd.f32 %v531, %v532
  %v534 = vsel %vm256, %v507, 0.0
  %v535 = vadd.f32 %v533, %v534
  %v536 = vsel %vm256, %v509, 0.0
  %v537 = vadd.f32 %v535, %v536
  %v538 = vrcp.pop %v516
  %v539 = vmul.f32 %v479, %v538
  %v540 = vmul.f32 %v481, %v538
  %v541 = vmul.f32 %v483, %v538
  %v542 = vmul.f32 %v485, %v538
  %v543 = vrcp.pop %v523
  %v544 = vmul.f32 %v487, %v543
  %v545 = vmul.f32 %v489, %v543
  %v546 = vmul.f32 %v491, %v543
  %v547 = vmul.f32 %v493, %v543
  %v548 = vrcp.pop %v530
  %v549 = vmul.f32 %v495, %v548
  %v550 = vmul.f32 %v497, %v548
  %v551 = vmul.f32 %v499, %v548
  %v552 = vmul.f32 %v501, %v548
  %v553 = vrcp.pop %v537
  %v554 = vmul.f32 %v503, %v553
  %v555 = vmul.f32 %v505, %v553
  %v556 = vmul.f32 %v507, %v553
  %v557 = vmul.f32 %v509, %v553
  %558 = vrot.lane.b32.xlu0 %v158, 32
  %v559 = vpop.permute.xlu0 %558
  %560 = vrot.lane.b32.xlu0 %v161, 32
  %v561 = vpop.permute.xlu0 %560
  %562 = vrot.lane.b32.xlu0 %v166, 32
  %v563 = vpop.permute.xlu0 %562
  %564 = vrot.lane.b32.xlu0 %v169, 32
  %v565 = vpop.permute.xlu0 %564
  %v570 = vmul.f32 %v539, %v559
  %v571 = vmul.f32 %v540, %v561
  %v572 = vmul.f32 %v541, %v563
  %v573 = vmul.f32 %v542, %v565
  %v574 = vmul.f32 %v544, %v559
  %v575 = vmul.f32 %v545, %v561
  %v576 = vmul.f32 %v546, %v563
  %v577 = vmul.f32 %v547, %v565
  %v578 = vmul.f32 %v549, %v559
  %v579 = vmul.f32 %v550, %v561
  %v580 = vmul.f32 %v551, %v563
  %v581 = vmul.f32 %v552, %v565
  %v582 = vmul.f32 %v554, %v559
  %v583 = vmul.f32 %v555, %v561
  %v584 = vmul.f32 %v556, %v563
  %v585 = vmul.f32 %v557, %v565
  %v586 = vsel %vm256, %v570, 0.0
  %v587 = vsel %vm256, %v571, 0.0
  %v588 = vadd.f32 %v586, %v587
  %v589 = vsel %vm256, %v572, 0.0
  %v590 = vadd.f32 %v588, %v589
  %v591 = vsel %vm256, %v573, 0.0
  %v592 = vadd.f32 %v590, %v591
  %v593 = vsel %vm256, %v574, 0.0
  %v594 = vsel %vm256, %v575, 0.0
  %v595 = vadd.f32 %v593, %v594
  %v596 = vsel %vm256, %v576, 0.0
  %v597 = vadd.f32 %v595, %v596
  %v598 = vsel %vm256, %v577, 0.0
  %v599 = vadd.f32 %v597, %v598
  %v600 = vsel %vm256, %v578, 0.0
  %v601 = vsel %vm256, %v579, 0.0
  %v602 = vadd.f32 %v600, %v601
  %v603 = vsel %vm256, %v580, 0.0
  %v604 = vadd.f32 %v602, %v603
  %v605 = vsel %vm256, %v581, 0.0
  %v606 = vadd.f32 %v604, %v605
  %v607 = vsel %vm256, %v582, 0.0
  %v608 = vsel %vm256, %v583, 0.0
  %v609 = vadd.f32 %v607, %v608
  %v610 = vsel %vm256, %v584, 0.0
  %v611 = vadd.f32 %v609, %v610
  %v612 = vsel %vm256, %v585, 0.0
  %v613 = vadd.f32 %v611, %v612
  %v614 = vld [vmem:[%s2 + $0x20] sm:$0xff]
  %v615 = vld [vmem:[%s2 + $0x28] sm:$0xff]
  %v616 = vld [vmem:[%s2 + $0x30] sm:$0xff]
  %v617 = vld [vmem:[%s2 + $0x38] sm:$0xff]
  %v618 = vld [vmem:[%s6 + $0x20] sm:$0x1]
  %v619 = vlaneseq
  %v620 = vshrl.u32 %v619, 7
  %v621 = vsub.s32 0, %v620
  %v622 = vrot.slane %v618, %v621
  %v624 = vsel %vm256, %v592, 0
  %v627 = vsel %vm256, %v599, 0
  %v630 = vsel %vm256, %v606, 0
  %v633 = vsel %vm256, %v613, 0
  %635 = vmatprep.subr.mxu0 0.0
  %636 = vmatpush1.msra.mxu0 0.0
  %637 = vmatprep.subr.mxu0 0.0
  %638 = vmatpush1.msra.mxu0 0.0
  %639 = vmatprep.subr.mxu0 0.0
  %640 = vmatpush1.msra.mxu0 0.0
  %641 = vmatprep.subr.mxu0 0.0
  %642 = vmatpush1.msra.mxu0 0.0
  %643 = vmatprep.subr.mxu0 0.0
  %644 = vmatpush1.msra.mxu0 0.0
  %645 = vmatprep.subr.mxu0 0.0
  %646 = vmatpush1.msra.mxu0 0.0
  %647 = vmatprep.subr.mxu0 0.0
  %648 = vmatpush1.msra.mxu0 0.0
  %649 = vmatprep.subr.mxu0 0.0
  %650 = vmatpush1.msra.mxu0 0.0
  %651 = vmatprep.subr.mxu0 0.0
  %652 = vmatpush1.msra.mxu0 0.0
  %653 = vmatprep.subr.mxu0 0.0
  %654 = vmatpush1.msra.mxu0 0.0
  %655 = vmatprep.subr.mxu0 0.0
  %656 = vmatpush1.msra.mxu0 0.0
  %657 = vmatprep.subr.mxu0 0.0
  %658 = vmatpush1.msra.mxu0 0.0
  %659 = vmatprep.subr.mxu0 0.0
  %660 = vmatpush1.msra.mxu0 %v617
  %661 = vmatprep.subr.mxu0 0.0
  %662 = vmatpush1.msra.mxu0 %v616
  %663 = vmatprep.subr.mxu0 0.0
  %664 = vmatpush1.msra.mxu0 %v615
  %665 = vmatprep.subr.mxu0 0.0
  %666 = vmatpush1.msra.mxu0 %v614
  %667 = vmatprep.subr.mxu0 0.0
  %668 = vmatpush2.msra.mxu0 0.0
  %669 = vmatprep.subr.mxu0 0.0
  %670 = vmatpush2.msra.mxu0 0.0
  %671 = vmatprep.subr.mxu0 0.0
  %672 = vmatpush2.msra.mxu0 0.0
  %673 = vmatprep.subr.mxu0 0.0
  %674 = vmatpush2.msra.mxu0 0.0
  %675 = vmatprep.subr.mxu0 0.0
  %676 = vmatpush2.msra.mxu0 0.0
  %677 = vmatprep.subr.mxu0 0.0
  %678 = vmatpush2.msra.mxu0 0.0
  %679 = vmatprep.subr.mxu0 0.0
  %680 = vmatpush2.msra.mxu0 0.0
  %681 = vmatprep.subr.mxu0 0.0
  %682 = vmatpush2.msra.mxu0 0.0
  %683 = vmatprep.subr.mxu0 0.0
  %684 = vmatpush2.msra.mxu0 0.0
  %685 = vmatprep.subr.mxu0 0.0
  %686 = vmatpush2.msra.mxu0 0.0
  %687 = vmatprep.subr.mxu0 0.0
  %688 = vmatpush2.msra.mxu0 0.0
  %689 = vmatprep.subr.mxu0 0.0
  %690 = vmatpush2.msra.mxu0 0.0
  %691 = vmatprep.subr.mxu0 0.0
  %692 = vmatpush2.msra.mxu0 0.0
  %693 = vmatprep.subr.mxu0 0.0
  %694 = vmatpush2.msra.mxu0 0.0
  %695 = vmatprep.subr.mxu0 0.0
  %696 = vmatpush2.msra.mxu0 0.0
  %697 = vmatprep.subr.mxu0 0.0
  %698 = vmatpush2.msra.mxu0 0.0
  %699 = vmatprep.mubr.f32.mxu0 0.0
  %700 = vmatmul.mubr.f32.gmra.mxu0 %v624
  %v701 = vpop.f32.mrf.mxu0
  %v702 = vadd.f32 %v622, %v701
  %v703 = vpop.f32.mrf.mxu0
  %704 = vmatprep.mubr.f32.mxu0 0.0
  %705 = vmatmul.mubr.f32.gmra.mxu0 %v627
  %v706 = vpop.f32.mrf.mxu0
  %v707 = vadd.f32 %v622, %v706
  %v708 = vpop.f32.mrf.mxu0
  %709 = vmatprep.mubr.f32.mxu0 0.0
  %710 = vmatmul.mubr.f32.gmra.mxu0 %v630
  %v711 = vpop.f32.mrf.mxu0
  %v712 = vadd.f32 %v622, %v711
  %v713 = vpop.f32.mrf.mxu0
  %714 = vmatprep.mubr.f32.mxu0 0.0
  %715 = vmatmul.mubr.f32.gmra.mxu0 %v633
  %v716 = vpop.f32.mrf.mxu0
  %v717 = vadd.f32 %v622, %v716
  %v718 = vpop.f32.mrf.mxu0
  %719 = vdwg.mxu0
  %v720 = vadd.f32 %v158, %v702
  %v721 = vadd.f32 %v161, %v707
  %v722 = vadd.f32 %v166, %v712
  %v723 = vadd.f32 %v169, %v717
  %v724 = vld [vmem:[%s6 + $0x21] sm:$0x1]
  %v725 = vld [vmem:[%s6 + $0x22] sm:$0x1]
  %v726 = vsel %vm256, %v720, 0.0
  %727 = vadd.xlane.f32.xlu0 %v726
  %v728 = vpop.xlane.xlu0 %727
  %v729 = vsel %vm256, %v721, 0.0
  %730 = vadd.xlane.f32.xlu0 %v729
  %v731 = vpop.xlane.xlu0 %730
  %v732 = vsel %vm256, %v722, 0.0
  %733 = vadd.xlane.f32.xlu0 %v732
  %v734 = vpop.xlane.xlu0 %733
  %v735 = vsel %vm256, %v723, 0.0
  %736 = vadd.xlane.f32.xlu0 %v735
  %v737 = vpop.xlane.xlu0 %736
  %v738 = vrcp.pop 32.0
  %v739 = vmul.f32 %v728, %v738
  %v740 = vmul.f32 %v731, %v738
  %v741 = vmul.f32 %v734, %v738
  %v742 = vmul.f32 %v737, %v738
  %v743 = vsub.f32 %v720, %v739
  %v744 = vsub.f32 %v721, %v740
  %v745 = vsub.f32 %v722, %v741
  %v746 = vsub.f32 %v723, %v742
  %v747 = vmul.f32 %v743, %v743
  %v748 = vmul.f32 %v744, %v744
  %v749 = vmul.f32 %v745, %v745
  %v750 = vmul.f32 %v746, %v746
  %v751 = vsel %vm256, %v747, 0.0
  %752 = vadd.xlane.f32.xlu0 %v751
  %v753 = vpop.xlane.xlu0 %752
  %v754 = vsel %vm256, %v748, 0.0
  %755 = vadd.xlane.f32.xlu0 %v754
  %v756 = vpop.xlane.xlu0 %755
  %v757 = vsel %vm256, %v749, 0.0
  %758 = vadd.xlane.f32.xlu0 %v757
  %v759 = vpop.xlane.xlu0 %758
  %v760 = vsel %vm256, %v750, 0.0
  %761 = vadd.xlane.f32.xlu0 %v760
  %v762 = vpop.xlane.xlu0 %761
  %v763 = vmul.f32 %v753, %v738
  %v764 = vmul.f32 %v756, %v738
  %v765 = vmul.f32 %v759, %v738
  %v766 = vmul.f32 %v762, %v738
  %v767 = vadd.f32 %v763, 1e-05
  %v768 = vadd.f32 %v764, 1e-05
  %v769 = vadd.f32 %v765, 1e-05
  %v770 = vadd.f32 %v766, 1e-05
  %v771 = vrsqrt.pop %v767
  %v772 = vrsqrt.pop %v768
  %v773 = vrsqrt.pop %v769
  %v774 = vrsqrt.pop %v770
  %v775 = vmul.f32 %v743, %v771
  %v776 = vmul.f32 %v744, %v772
  %v777 = vmul.f32 %v745, %v773
  %v778 = vmul.f32 %v746, %v774
  %v779 = vlaneseq
  %v780 = vshrl.u32 %v779, 7
  %v781 = vsub.s32 0, %v780
  %v782 = vrot.slane %v724, %v781
  %v783 = vmul.f32 %v775, %v782
  %v784 = vmul.f32 %v776, %v782
  %v785 = vmul.f32 %v777, %v782
  %v786 = vmul.f32 %v778, %v782
  %v787 = vlaneseq
  %v788 = vshrl.u32 %v787, 7
  %v789 = vsub.s32 0, %v788
  %v790 = vrot.slane %v725, %v789
  %v791 = vadd.f32 %v783, %v790
  %v792 = vadd.f32 %v784, %v790
  %v793 = vadd.f32 %v785, %v790
  %v794 = vadd.f32 %v786, %v790
  %v795 = vpack.c.bf16 %v792, %v791
  %v796 = vpack.c.bf16 %v794, %v793
  %v797 = vld [vmem:[%s3] sm:$0xff]
  %v798 = vld [vmem:[%s3 + $0x8] sm:$0xff]
  %v799 = vld [vmem:[%s3 + $0x10] sm:$0xff]
  %v800 = vld [vmem:[%s3 + $0x18] sm:$0xff]
  %v801 = vld [vmem:[%s3 + $0x20] sm:$0xff]
  %v802 = vld [vmem:[%s3 + $0x28] sm:$0xff]
  %v803 = vld [vmem:[%s3 + $0x30] sm:$0xff]
  %v804 = vld [vmem:[%s3 + $0x38] sm:$0xff]
  %v805 = vld [vmem:[%s4] sm:$0xf]
  %v807 = vlaneseq
  %v808 = vshrl.u32 %v807, 7
  %v809 = vsub.s32 0, %v808
  %v810 = vrot.slane %v805, %v809
  %v811 = vlaneseq
  %v812 = vshrl.u32 %v811, 7
  %v813 = vsub.s32 1, %v812
  %v814 = vrot.slane %v805, %v813
  %v815 = vlaneseq
  %v816 = vshrl.u32 %v815, 7
  %v817 = vsub.s32 2, %v816
  %v818 = vrot.slane %v805, %v817
  %v819 = vlaneseq
  %v820 = vshrl.u32 %v819, 7
  %v821 = vsub.s32 3, %v820
  %v822 = vrot.slane %v805, %v821
  %v835 = vunpack.c.l.b16 %v797
  %v836 = vunpack.c.h.b16 %v797
  %v837 = vunpack.c.l.b16 %v798
  %v838 = vunpack.c.h.b16 %v798
  %v839 = vunpack.c.l.b16 %v799
  %v840 = vunpack.c.h.b16 %v799
  %v841 = vunpack.c.l.b16 %v800
  %v842 = vunpack.c.h.b16 %v800
  %v843 = vunpack.c.l.b16 %v801
  %v844 = vunpack.c.h.b16 %v801
  %v845 = vunpack.c.l.b16 %v802
  %v846 = vunpack.c.h.b16 %v802
  %v847 = vunpack.c.l.b16 %v803
  %v848 = vunpack.c.h.b16 %v803
  %v849 = vunpack.c.l.b16 %v804
  %v850 = vunpack.c.h.b16 %v804
  %v851 = vpack.c.b16 %v839, %v835
  %v852 = vpack.c.b16 %v840, %v836
  %v853 = vpack.c.b16 %v841, %v837
  %v854 = vpack.c.b16 %v842, %v838
  %v855 = vpack.c.b16 %v847, %v843
  %v856 = vpack.c.b16 %v848, %v844
  %v857 = vpack.c.b16 %v849, %v845
  %v858 = vpack.c.b16 %v850, %v846
  %v868 = vsel %vm256, %v795, 0
  %v871 = vsel %vm256, %v796, 0
  %873 = vmatprep.subr.bf16.mxu0 0
  %874 = vmatpush1.bf16.msra.mxu0 0
  %875 = vmatprep.subr.bf16.mxu0 0
  %876 = vmatpush1.bf16.msra.mxu0 0
  %877 = vmatprep.subr.bf16.mxu0 0
  %878 = vmatpush1.bf16.msra.mxu0 0
  %879 = vmatprep.subr.bf16.mxu0 0
  %880 = vmatpush1.bf16.msra.mxu0 0
  %881 = vmatprep.subr.bf16.mxu0 0
  %882 = vmatpush1.bf16.msra.mxu0 0
  %883 = vmatprep.subr.bf16.mxu0 0
  %884 = vmatpush1.bf16.msra.mxu0 0
  %885 = vmatprep.subr.bf16.mxu0 %v856
  %886 = vmatpush1.bf16.msra.mxu0 %v855
  %887 = vmatprep.subr.bf16.mxu0 %v852
  %888 = vmatpush1.bf16.msra.mxu0 %v851
  %889 = vmatprep.subr.bf16.mxu0 0
  %890 = vmatpush2.bf16.msra.mxu0 0
  %891 = vmatprep.subr.bf16.mxu0 0
  %892 = vmatpush2.bf16.msra.mxu0 0
  %893 = vmatprep.subr.bf16.mxu0 0
  %894 = vmatpush2.bf16.msra.mxu0 0
  %895 = vmatprep.subr.bf16.mxu0 0
  %896 = vmatpush2.bf16.msra.mxu0 0
  %897 = vmatprep.subr.bf16.mxu0 0
  %898 = vmatpush2.bf16.msra.mxu0 0
  %899 = vmatprep.subr.bf16.mxu0 0
  %900 = vmatpush2.bf16.msra.mxu0 0
  %901 = vmatprep.subr.bf16.mxu0 0
  %902 = vmatpush2.bf16.msra.mxu0 0
  %903 = vmatprep.subr.bf16.mxu0 0
  %904 = vmatpush2.bf16.msra.mxu0 0
  %905 = vmatprep.mubr.bf16.mxu0 0
  %906 = vmatmul.mubr.bf16.gmra.mxu0 %v868
  %v907 = vpop.f32.mrf.mxu0
  %v908 = vadd.f32 %v810, %v907
  %v909 = vpop.f32.mrf.mxu0
  %v910 = vadd.f32 %v814, %v909
  %v911 = vpop.f32.mrf.mxu0
  %v912 = vadd.f32 %v810, %v911
  %v913 = vpop.f32.mrf.mxu0
  %v914 = vadd.f32 %v814, %v913
  %915 = vmatprep.mubr.bf16.mxu0 0
  %916 = vmatmul.mubr.bf16.gmra.mxu0 %v871
  %v917 = vpop.f32.mrf.mxu0
  %v918 = vadd.f32 %v810, %v917
  %v919 = vpop.f32.mrf.mxu0
  %v920 = vadd.f32 %v814, %v919
  %v921 = vpop.f32.mrf.mxu0
  %v922 = vadd.f32 %v810, %v921
  %v923 = vpop.f32.mrf.mxu0
  %v924 = vadd.f32 %v814, %v923
  %925 = vdwg.mxu0
  %926 = vmatprep.subr.bf16.mxu0 0
  %927 = vmatpush1.bf16.msra.mxu0 0
  %928 = vmatprep.subr.bf16.mxu0 0
  %929 = vmatpush1.bf16.msra.mxu0 0
  %930 = vmatprep.subr.bf16.mxu0 0
  %931 = vmatpush1.bf16.msra.mxu0 0
  %932 = vmatprep.subr.bf16.mxu0 0
  %933 = vmatpush1.bf16.msra.mxu0 0
  %934 = vmatprep.subr.bf16.mxu0 0
  %935 = vmatpush1.bf16.msra.mxu0 0
  %936 = vmatprep.subr.bf16.mxu0 0
  %937 = vmatpush1.bf16.msra.mxu0 0
  %938 = vmatprep.subr.bf16.mxu0 %v858
  %939 = vmatpush1.bf16.msra.mxu0 %v857
  %940 = vmatprep.subr.bf16.mxu0 %v854
  %941 = vmatpush1.bf16.msra.mxu0 %v853
  %942 = vmatprep.subr.bf16.mxu0 0
  %943 = vmatpush2.bf16.msra.mxu0 0
  %944 = vmatprep.subr.bf16.mxu0 0
  %945 = vmatpush2.bf16.msra.mxu0 0
  %946 = vmatprep.subr.bf16.mxu0 0
  %947 = vmatpush2.bf16.msra.mxu0 0
  %948 = vmatprep.subr.bf16.mxu0 0
  %949 = vmatpush2.bf16.msra.mxu0 0
  %950 = vmatprep.subr.bf16.mxu0 0
  %951 = vmatpush2.bf16.msra.mxu0 0
  %952 = vmatprep.subr.bf16.mxu0 0
  %953 = vmatpush2.bf16.msra.mxu0 0
  %954 = vmatprep.subr.bf16.mxu0 0
  %955 = vmatpush2.bf16.msra.mxu0 0
  %956 = vmatprep.subr.bf16.mxu0 0
  %957 = vmatpush2.bf16.msra.mxu0 0
  %958 = vmatprep.mubr.bf16.mxu0 0
  %959 = vmatmul.mubr.bf16.gmra.mxu0 %v868
  %v960 = vpop.f32.mrf.mxu0
  %v961 = vadd.f32 %v818, %v960
  %v962 = vpop.f32.mrf.mxu0
  %v963 = vadd.f32 %v822, %v962
  %v964 = vpop.f32.mrf.mxu0
  %v965 = vadd.f32 %v818, %v964
  %v966 = vpop.f32.mrf.mxu0
  %v967 = vadd.f32 %v822, %v966
  %968 = vmatprep.mubr.bf16.mxu0 0
  %969 = vmatmul.mubr.bf16.gmra.mxu0 %v871
  %v970 = vpop.f32.mrf.mxu0
  %v971 = vadd.f32 %v818, %v970
  %v972 = vpop.f32.mrf.mxu0
  %v973 = vadd.f32 %v822, %v972
  %v974 = vpop.f32.mrf.mxu0
  %v975 = vadd.f32 %v818, %v974
  %v976 = vpop.f32.mrf.mxu0
  %v977 = vadd.f32 %v822, %v976
  %978 = vdwg.mxu0
  %v979 = vmax.f32 %v908, 0.0
  %v980 = vmax.f32 %v910, 0.0
  %v981 = vmax.f32 %v961, 0.0
  %v982 = vmax.f32 %v963, 0.0
  %v983 = vmax.f32 %v912, 0.0
  %v984 = vmax.f32 %v914, 0.0
  %v985 = vmax.f32 %v965, 0.0
  %v986 = vmax.f32 %v967, 0.0
  %v987 = vmax.f32 %v918, 0.0
  %v988 = vmax.f32 %v920, 0.0
  %v989 = vmax.f32 %v971, 0.0
  %v990 = vmax.f32 %v973, 0.0
  %v991 = vmax.f32 %v922, 0.0
  %v992 = vmax.f32 %v924, 0.0
  %v993 = vmax.f32 %v975, 0.0
  %v994 = vmax.f32 %v977, 0.0
  %v995 = vpack.c.bf16 %v983, %v979
  %v996 = vpack.c.bf16 %v984, %v980
  %v997 = vpack.c.bf16 %v985, %v981
  %v998 = vpack.c.bf16 %v986, %v982
  %v999 = vpack.c.bf16 %v991, %v987
  %v1000 = vpack.c.bf16 %v992, %v988
  %v1001 = vpack.c.bf16 %v993, %v989
  %v1002 = vpack.c.bf16 %v994, %v990
  %v1003 = vld [vmem:[%s5] sm:$0xf]
  %v1004 = vld [vmem:[%s5 + $0x4] sm:$0xf]
  %v1005 = vld [vmem:[%s5 + $0x8] sm:$0xf]
  %v1006 = vld [vmem:[%s5 + $0xc] sm:$0xf]
  %v1007 = vld [vmem:[%s5 + $0x10] sm:$0xf]
  %v1008 = vld [vmem:[%s5 + $0x14] sm:$0xf]
  %v1009 = vld [vmem:[%s5 + $0x18] sm:$0xf]
  %v1010 = vld [vmem:[%s5 + $0x1c] sm:$0xf]
  %v1011 = vld [vmem:[%s5 + $0x20] sm:$0xf]
  %v1012 = vld [vmem:[%s5 + $0x24] sm:$0xf]
  %v1013 = vld [vmem:[%s5 + $0x28] sm:$0xf]
  %v1014 = vld [vmem:[%s5 + $0x2c] sm:$0xf]
  %v1015 = vld [vmem:[%s5 + $0x30] sm:$0xf]
  %v1016 = vld [vmem:[%s5 + $0x34] sm:$0xf]
  %v1017 = vld [vmem:[%s5 + $0x38] sm:$0xf]
  %v1018 = vld [vmem:[%s5 + $0x3c] sm:$0xf]
  %v1019 = vld [vmem:[%s5 + $0x40] sm:$0xf]
  %v1020 = vld [vmem:[%s5 + $0x44] sm:$0xf]
  %v1021 = vld [vmem:[%s5 + $0x48] sm:$0xf]
  %v1022 = vld [vmem:[%s5 + $0x4c] sm:$0xf]
  %v1023 = vld [vmem:[%s5 + $0x50] sm:$0xf]
  %v1024 = vld [vmem:[%s5 + $0x54] sm:$0xf]
  %v1025 = vld [vmem:[%s5 + $0x58] sm:$0xf]
  %v1026 = vld [vmem:[%s5 + $0x5c] sm:$0xf]
  %v1027 = vld [vmem:[%s5 + $0x60] sm:$0xf]
  %v1028 = vld [vmem:[%s5 + $0x64] sm:$0xf]
  %v1029 = vld [vmem:[%s5 + $0x68] sm:$0xf]
  %v1030 = vld [vmem:[%s5 + $0x6c] sm:$0xf]
  %v1031 = vld [vmem:[%s5 + $0x70] sm:$0xf]
  %v1032 = vld [vmem:[%s5 + $0x74] sm:$0xf]
  %v1033 = vld [vmem:[%s5 + $0x78] sm:$0xf]
  %v1034 = vld [vmem:[%s5 + $0x7c] sm:$0xf]
  %v1035 = vld [vmem:[%s5 + $0x80] sm:$0xf]
  %v1036 = vld [vmem:[%s5 + $0x84] sm:$0xf]
  %v1037 = vld [vmem:[%s5 + $0x88] sm:$0xf]
  %v1038 = vld [vmem:[%s5 + $0x8c] sm:$0xf]
  %v1039 = vld [vmem:[%s5 + $0x90] sm:$0xf]
  %v1040 = vld [vmem:[%s5 + $0x94] sm:$0xf]
  %v1041 = vld [vmem:[%s5 + $0x98] sm:$0xf]
  %v1042 = vld [vmem:[%s5 + $0x9c] sm:$0xf]
  %v1043 = vld [vmem:[%s5 + $0xa0] sm:$0xf]
  %v1044 = vld [vmem:[%s5 + $0xa4] sm:$0xf]
  %v1045 = vld [vmem:[%s5 + $0xa8] sm:$0xf]
  %v1046 = vld [vmem:[%s5 + $0xac] sm:$0xf]
  %v1047 = vld [vmem:[%s5 + $0xb0] sm:$0xf]
  %v1048 = vld [vmem:[%s5 + $0xb4] sm:$0xf]
  %v1049 = vld [vmem:[%s5 + $0xb8] sm:$0xf]
  %v1050 = vld [vmem:[%s5 + $0xbc] sm:$0xf]
  %v1051 = vld [vmem:[%s5 + $0xc0] sm:$0xf]
  %v1052 = vld [vmem:[%s5 + $0xc4] sm:$0xf]
  %v1053 = vld [vmem:[%s5 + $0xc8] sm:$0xf]
  %v1054 = vld [vmem:[%s5 + $0xcc] sm:$0xf]
  %v1055 = vld [vmem:[%s5 + $0xd0] sm:$0xf]
  %v1056 = vld [vmem:[%s5 + $0xd4] sm:$0xf]
  %v1057 = vld [vmem:[%s5 + $0xd8] sm:$0xf]
  %v1058 = vld [vmem:[%s5 + $0xdc] sm:$0xf]
  %v1059 = vld [vmem:[%s5 + $0xe0] sm:$0xf]
  %v1060 = vld [vmem:[%s5 + $0xe4] sm:$0xf]
  %v1061 = vld [vmem:[%s5 + $0xe8] sm:$0xf]
  %v1062 = vld [vmem:[%s5 + $0xec] sm:$0xf]
  %v1063 = vld [vmem:[%s5 + $0xf0] sm:$0xf]
  %v1064 = vld [vmem:[%s5 + $0xf4] sm:$0xf]
  %v1065 = vld [vmem:[%s5 + $0xf8] sm:$0xf]
  %v1066 = vld [vmem:[%s5 + $0xfc] sm:$0xf]
  %s1067 = scalar_lea.vmem %s3, 64
  %v1068 = vld [vmem:[%s1067] sm:$0xff]
  %v1069 = vld [vmem:[%s1067 + $0x8] sm:$0xff]
  %v1070 = vld [vmem:[%s1067 + $0x10] sm:$0xff]
  %v1071 = vld [vmem:[%s1067 + $0x18] sm:$0xff]
  %v1072 = vld [vmem:[%s1067 + $0x20] sm:$0xff]
  %v1073 = vld [vmem:[%s1067 + $0x28] sm:$0xff]
  %v1074 = vld [vmem:[%s1067 + $0x30] sm:$0xff]
  %v1075 = vld [vmem:[%s1067 + $0x38] sm:$0xff]
  %s1076 = scalar_lea.vmem %s4, 4
  %v1077 = vld [vmem:[%s1076] sm:$0xf]
  %v1079 = vlaneseq
  %v1080 = vshrl.u32 %v1079, 7
  %v1081 = vsub.s32 0, %v1080
  %v1082 = vrot.slane %v1077, %v1081
  %v1083 = vlaneseq
  %v1084 = vshrl.u32 %v1083, 7
  %v1085 = vsub.s32 1, %v1084
  %v1086 = vrot.slane %v1077, %v1085
  %v1087 = vlaneseq
  %v1088 = vshrl.u32 %v1087, 7
  %v1089 = vsub.s32 2, %v1088
  %v1090 = vrot.slane %v1077, %v1089
  %v1091 = vlaneseq
  %v1092 = vshrl.u32 %v1091, 7
  %v1093 = vsub.s32 3, %v1092
  %v1094 = vrot.slane %v1077, %v1093
  %v1107 = vunpack.c.l.b16 %v1068
  %v1108 = vunpack.c.h.b16 %v1068
  %v1109 = vunpack.c.l.b16 %v1069
  %v1110 = vunpack.c.h.b16 %v1069
  %v1111 = vunpack.c.l.b16 %v1070
  %v1112 = vunpack.c.h.b16 %v1070
  %v1113 = vunpack.c.l.b16 %v1071
  %v1114 = vunpack.c.h.b16 %v1071
  %v1115 = vunpack.c.l.b16 %v1072
  %v1116 = vunpack.c.h.b16 %v1072
  %v1117 = vunpack.c.l.b16 %v1073
  %v1118 = vunpack.c.h.b16 %v1073
  %v1119 = vunpack.c.l.b16 %v1074
  %v1120 = vunpack.c.h.b16 %v1074
  %v1121 = vunpack.c.l.b16 %v1075
  %v1122 = vunpack.c.h.b16 %v1075
  %v1123 = vpack.c.b16 %v1111, %v1107
  %v1124 = vpack.c.b16 %v1112, %v1108
  %v1125 = vpack.c.b16 %v1113, %v1109
  %v1126 = vpack.c.b16 %v1114, %v1110
  %v1127 = vpack.c.b16 %v1119, %v1115
  %v1128 = vpack.c.b16 %v1120, %v1116
  %v1129 = vpack.c.b16 %v1121, %v1117
  %v1130 = vpack.c.b16 %v1122, %v1118
  %1139 = vmatprep.subr.bf16.mxu0 0
  %1140 = vmatpush1.bf16.msra.mxu0 0
  %1141 = vmatprep.subr.bf16.mxu0 0
  %1142 = vmatpush1.bf16.msra.mxu0 0
  %1143 = vmatprep.subr.bf16.mxu0 0
  %1144 = vmatpush1.bf16.msra.mxu0 0
  %1145 = vmatprep.subr.bf16.mxu0 0
  %1146 = vmatpush1.bf16.msra.mxu0 0
  %1147 = vmatprep.subr.bf16.mxu0 0
  %1148 = vmatpush1.bf16.msra.mxu0 0
  %1149 = vmatprep.subr.bf16.mxu0 0
  %1150 = vmatpush1.bf16.msra.mxu0 0
  %1151 = vmatprep.subr.bf16.mxu0 %v1128
  %1152 = vmatpush1.bf16.msra.mxu0 %v1127
  %1153 = vmatprep.subr.bf16.mxu0 %v1124
  %1154 = vmatpush1.bf16.msra.mxu0 %v1123
  %1155 = vmatprep.subr.bf16.mxu0 0
  %1156 = vmatpush2.bf16.msra.mxu0 0
  %1157 = vmatprep.subr.bf16.mxu0 0
  %1158 = vmatpush2.bf16.msra.mxu0 0
  %1159 = vmatprep.subr.bf16.mxu0 0
  %1160 = vmatpush2.bf16.msra.mxu0 0
  %1161 = vmatprep.subr.bf16.mxu0 0
  %1162 = vmatpush2.bf16.msra.mxu0 0
  %1163 = vmatprep.subr.bf16.mxu0 0
  %1164 = vmatpush2.bf16.msra.mxu0 0
  %1165 = vmatprep.subr.bf16.mxu0 0
  %1166 = vmatpush2.bf16.msra.mxu0 0
  %1167 = vmatprep.subr.bf16.mxu0 0
  %1168 = vmatpush2.bf16.msra.mxu0 0
  %1169 = vmatprep.subr.bf16.mxu0 0
  %1170 = vmatpush2.bf16.msra.mxu0 0
  %1171 = vmatprep.mubr.bf16.mxu0 0
  %1172 = vmatmul.mubr.bf16.gmra.mxu0 %v868
  %v1173 = vpop.f32.mrf.mxu0
  %v1174 = vadd.f32 %v1082, %v1173
  %v1175 = vpop.f32.mrf.mxu0
  %v1176 = vadd.f32 %v1086, %v1175
  %v1177 = vpop.f32.mrf.mxu0
  %v1178 = vadd.f32 %v1082, %v1177
  %v1179 = vpop.f32.mrf.mxu0
  %v1180 = vadd.f32 %v1086, %v1179
  %1181 = vmatprep.mubr.bf16.mxu0 0
  %1182 = vmatmul.mubr.bf16.gmra.mxu0 %v871
  %v1183 = vpop.f32.mrf.mxu0
  %v1184 = vadd.f32 %v1082, %v1183
  %v1185 = vpop.f32.mrf.mxu0
  %v1186 = vadd.f32 %v1086, %v1185
  %v1187 = vpop.f32.mrf.mxu0
  %v1188 = vadd.f32 %v1082, %v1187
  %v1189 = vpop.f32.mrf.mxu0
  %v1190 = vadd.f32 %v1086, %v1189
  %1191 = vdwg.mxu0
  %1192 = vmatprep.subr.bf16.mxu0 0
  %1193 = vmatpush1.bf16.msra.mxu0 0
  %1194 = vmatprep.subr.bf16.mxu0 0
  %1195 = vmatpush1.bf16.msra.mxu0 0
  %1196 = vmatprep.subr.bf16.mxu0 0
  %1197 = vmatpush1.bf16.msra.mxu0 0
  %1198 = vmatprep.subr.bf16.mxu0 0
  %1199 = vmatpush1.bf16.msra.mxu0 0
  %1200 = vmatprep.subr.bf16.mxu0 0
  %1201 = vmatpush1.bf16.msra.mxu0 0
  %1202 = vmatprep.subr.bf16.mxu0 0
  %1203 = vmatpush1.bf16.msra.mxu0 0
  %1204 = vmatprep.subr.bf16.mxu0 %v1130
  %1205 = vmatpush1.bf16.msra.mxu0 %v1129
  %1206 = vmatprep.subr.bf16.mxu0 %v1126
  %1207 = vmatpush1.bf16.msra.mxu0 %v1125
  %1208 = vmatprep.subr.bf16.mxu0 0
  %1209 = vmatpush2.bf16.msra.mxu0 0
  %1210 = vmatprep.subr.bf16.mxu0 0
  %1211 = vmatpush2.bf16.msra.mxu0 0
  %1212 = vmatprep.subr.bf16.mxu0 0
  %1213 = vmatpush2.bf16.msra.mxu0 0
  %1214 = vmatprep.subr.bf16.mxu0 0
  %1215 = vmatpush2.bf16.msra.mxu0 0
  %1216 = vmatprep.subr.bf16.mxu0 0
  %1217 = vmatpush2.bf16.msra.mxu0 0
  %1218 = vmatprep.subr.bf16.mxu0 0
  %1219 = vmatpush2.bf16.msra.mxu0 0
  %1220 = vmatprep.subr.bf16.mxu0 0
  %1221 = vmatpush2.bf16.msra.mxu0 0
  %1222 = vmatprep.subr.bf16.mxu0 0
  %1223 = vmatpush2.bf16.msra.mxu0 0
  %1224 = vmatprep.mubr.bf16.mxu0 0
  %1225 = vmatmul.mubr.bf16.gmra.mxu0 %v868
  %v1226 = vpop.f32.mrf.mxu0
  %v1227 = vadd.f32 %v1090, %v1226
  %v1228 = vpop.f32.mrf.mxu0
  %v1229 = vadd.f32 %v1094, %v1228
  %v1230 = vpop.f32.mrf.mxu0
  %v1231 = vadd.f32 %v1090, %v1230
  %v1232 = vpop.f32.mrf.mxu0
  %v1233 = vadd.f32 %v1094, %v1232
  %1234 = vmatprep.mubr.bf16.mxu0 0
  %1235 = vmatmul.mubr.bf16.gmra.mxu0 %v871
  %v1236 = vpop.f32.mrf.mxu0
  %v1237 = vadd.f32 %v1090, %v1236
  %v1238 = vpop.f32.mrf.mxu0
  %v1239 = vadd.f32 %v1094, %v1238
  %v1240 = vpop.f32.mrf.mxu0
  %v1241 = vadd.f32 %v1090, %v1240
  %v1242 = vpop.f32.mrf.mxu0
  %v1243 = vadd.f32 %v1094, %v1242
  %1244 = vdwg.mxu0
  %v1245 = vmax.f32 %v1174, 0.0
  %v1246 = vmax.f32 %v1176, 0.0
  %v1247 = vmax.f32 %v1227, 0.0
  %v1248 = vmax.f32 %v1229, 0.0
  %v1249 = vmax.f32 %v1178, 0.0
  %v1250 = vmax.f32 %v1180, 0.0
  %v1251 = vmax.f32 %v1231, 0.0
  %v1252 = vmax.f32 %v1233, 0.0
  %v1253 = vmax.f32 %v1184, 0.0
  %v1254 = vmax.f32 %v1186, 0.0
  %v1255 = vmax.f32 %v1237, 0.0
  %v1256 = vmax.f32 %v1239, 0.0
  %v1257 = vmax.f32 %v1188, 0.0
  %v1258 = vmax.f32 %v1190, 0.0
  %v1259 = vmax.f32 %v1241, 0.0
  %v1260 = vmax.f32 %v1243, 0.0
  %v1261 = vpack.c.bf16 %v1249, %v1245
  %v1262 = vpack.c.bf16 %v1250, %v1246
  %v1263 = vpack.c.bf16 %v1251, %v1247
  %v1264 = vpack.c.bf16 %v1252, %v1248
  %v1265 = vpack.c.bf16 %v1257, %v1253
  %v1266 = vpack.c.bf16 %v1258, %v1254
  %v1267 = vpack.c.bf16 %v1259, %v1255
  %v1268 = vpack.c.bf16 %v1260, %v1256
  %s1269 = scalar_lea.vmem %s5, 256
  %v1270 = vld [vmem:[%s1269] sm:$0xf]
  %v1271 = vld [vmem:[%s1269 + $0x4] sm:$0xf]
  %v1272 = vld [vmem:[%s1269 + $0x8] sm:$0xf]
  %v1273 = vld [vmem:[%s1269 + $0xc] sm:$0xf]
  %v1274 = vld [vmem:[%s1269 + $0x10] sm:$0xf]
  %v1275 = vld [vmem:[%s1269 + $0x14] sm:$0xf]
  %v1276 = vld [vmem:[%s1269 + $0x18] sm:$0xf]
  %v1277 = vld [vmem:[%s1269 + $0x1c] sm:$0xf]
  %v1278 = vld [vmem:[%s1269 + $0x20] sm:$0xf]
  %v1279 = vld [vmem:[%s1269 + $0x24] sm:$0xf]
  %v1280 = vld [vmem:[%s1269 + $0x28] sm:$0xf]
  %v1281 = vld [vmem:[%s1269 + $0x2c] sm:$0xf]
  %v1282 = vld [vmem:[%s1269 + $0x30] sm:$0xf]
  %v1283 = vld [vmem:[%s1269 + $0x34] sm:$0xf]
  %v1284 = vld [vmem:[%s1269 + $0x38] sm:$0xf]
  %v1285 = vld [vmem:[%s1269 + $0x3c] sm:$0xf]
  %v1286 = vld [vmem:[%s1269 + $0x40] sm:$0xf]
  %v1287 = vld [vmem:[%s1269 + $0x44] sm:$0xf]
  %v1288 = vld [vmem:[%s1269 + $0x48] sm:$0xf]
  %v1289 = vld [vmem:[%s1269 + $0x4c] sm:$0xf]
  %v1290 = vld [vmem:[%s1269 + $0x50] sm:$0xf]
  %v1291 = vld [vmem:[%s1269 + $0x54] sm:$0xf]
  %v1292 = vld [vmem:[%s1269 + $0x58] sm:$0xf]
  %v1293 = vld [vmem:[%s1269 + $0x5c] sm:$0xf]
  %v1294 = vld [vmem:[%s1269 + $0x60] sm:$0xf]
  %v1295 = vld [vmem:[%s1269 + $0x64] sm:$0xf]
  %v1296 = vld [vmem:[%s1269 + $0x68] sm:$0xf]
  %v1297 = vld [vmem:[%s1269 + $0x6c] sm:$0xf]
  %v1298 = vld [vmem:[%s1269 + $0x70] sm:$0xf]
  %v1299 = vld [vmem:[%s1269 + $0x74] sm:$0xf]
  %v1300 = vld [vmem:[%s1269 + $0x78] sm:$0xf]
  %v1301 = vld [vmem:[%s1269 + $0x7c] sm:$0xf]
  %v1302 = vld [vmem:[%s1269 + $0x80] sm:$0xf]
  %v1303 = vld [vmem:[%s1269 + $0x84] sm:$0xf]
  %v1304 = vld [vmem:[%s1269 + $0x88] sm:$0xf]
  %v1305 = vld [vmem:[%s1269 + $0x8c] sm:$0xf]
  %v1306 = vld [vmem:[%s1269 + $0x90] sm:$0xf]
  %v1307 = vld [vmem:[%s1269 + $0x94] sm:$0xf]
  %v1308 = vld [vmem:[%s1269 + $0x98] sm:$0xf]
  %v1309 = vld [vmem:[%s1269 + $0x9c] sm:$0xf]
  %v1310 = vld [vmem:[%s1269 + $0xa0] sm:$0xf]
  %v1311 = vld [vmem:[%s1269 + $0xa4] sm:$0xf]
  %v1312 = vld [vmem:[%s1269 + $0xa8] sm:$0xf]
  %v1313 = vld [vmem:[%s1269 + $0xac] sm:$0xf]
  %v1314 = vld [vmem:[%s1269 + $0xb0] sm:$0xf]
  %v1315 = vld [vmem:[%s1269 + $0xb4] sm:$0xf]
  %v1316 = vld [vmem:[%s1269 + $0xb8] sm:$0xf]
  %v1317 = vld [vmem:[%s1269 + $0xbc] sm:$0xf]
  %v1318 = vld [vmem:[%s1269 + $0xc0] sm:$0xf]
  %v1319 = vld [vmem:[%s1269 + $0xc4] sm:$0xf]
  %v1320 = vld [vmem:[%s1269 + $0xc8] sm:$0xf]
  %v1321 = vld [vmem:[%s1269 + $0xcc] sm:$0xf]
  %v1322 = vld [vmem:[%s1269 + $0xd0] sm:$0xf]
  %v1323 = vld [vmem:[%s1269 + $0xd4] sm:$0xf]
  %v1324 = vld [vmem:[%s1269 + $0xd8] sm:$0xf]
  %v1325 = vld [vmem:[%s1269 + $0xdc] sm:$0xf]
  %v1326 = vld [vmem:[%s1269 + $0xe0] sm:$0xf]
  %v1327 = vld [vmem:[%s1269 + $0xe4] sm:$0xf]
  %v1328 = vld [vmem:[%s1269 + $0xe8] sm:$0xf]
  %v1329 = vld [vmem:[%s1269 + $0xec] sm:$0xf]
  %v1330 = vld [vmem:[%s1269 + $0xf0] sm:$0xf]
  %v1331 = vld [vmem:[%s1269 + $0xf4] sm:$0xf]
  %v1332 = vld [vmem:[%s1269 + $0xf8] sm:$0xf]
  %v1333 = vld [vmem:[%s1269 + $0xfc] sm:$0xf]
  %v1398 = vunpack.c.l.b16 %v1270
  %v1399 = vunpack.c.l.b16 %v1271
  %v1400 = vunpack.c.l.b16 %v1272
  %v1401 = vunpack.c.l.b16 %v1273
  %v1402 = vunpack.c.l.b16 %v1274
  %v1403 = vunpack.c.l.b16 %v1275
  %v1404 = vunpack.c.l.b16 %v1276
  %v1405 = vunpack.c.l.b16 %v1277
  %v1406 = vunpack.c.l.b16 %v1278
  %v1407 = vunpack.c.l.b16 %v1279
  %v1408 = vunpack.c.l.b16 %v1280
  %v1409 = vunpack.c.l.b16 %v1281
  %v1410 = vunpack.c.l.b16 %v1282
  %v1411 = vunpack.c.l.b16 %v1283
  %v1412 = vunpack.c.l.b16 %v1284
  %v1413 = vunpack.c.l.b16 %v1285
  %v1414 = vunpack.c.l.b16 %v1286
  %v1415 = vunpack.c.l.b16 %v1287
  %v1416 = vunpack.c.l.b16 %v1288
  %v1417 = vunpack.c.l.b16 %v1289
  %v1418 = vunpack.c.l.b16 %v1290
  %v1419 = vunpack.c.l.b16 %v1291
  %v1420 = vunpack.c.l.b16 %v1292
  %v1421 = vunpack.c.l.b16 %v1293
  %v1422 = vunpack.c.l.b16 %v1294
  %v1423 = vunpack.c.l.b16 %v1295
  %v1424 = vunpack.c.l.b16 %v1296
  %v1425 = vunpack.c.l.b16 %v1297
  %v1426 = vunpack.c.l.b16 %v1298
  %v1427 = vunpack.c.l.b16 %v1299
  %v1428 = vunpack.c.l.b16 %v1300
  %v1429 = vunpack.c.l.b16 %v1301
  %v1430 = vunpack.c.l.b16 %v1302
  %v1431 = vunpack.c.l.b16 %v1303
  %v1432 = vunpack.c.l.b16 %v1304
  %v1433 = vunpack.c.l.b16 %v1305
  %v1434 = vunpack.c.l.b16 %v1306
  %v1435 = vunpack.c.l.b16 %v1307
  %v1436 = vunpack.c.l.b16 %v1308
  %v1437 = vunpack.c.l.b16 %v1309
  %v1438 = vunpack.c.l.b16 %v1310
  %v1439 = vunpack.c.l.b16 %v1311
  %v1440 = vunpack.c.l.b16 %v1312
  %v1441 = vunpack.c.l.b16 %v1313
  %v1442 = vunpack.c.l.b16 %v1314
  %v1443 = vunpack.c.l.b16 %v1315
  %v1444 = vunpack.c.l.b16 %v1316
  %v1445 = vunpack.c.l.b16 %v1317
  %v1446 = vunpack.c.l.b16 %v1318
  %v1447 = vunpack.c.l.b16 %v1319
  %v1448 = vunpack.c.l.b16 %v1320
  %v1449 = vunpack.c.l.b16 %v1321
  %v1450 = vunpack.c.l.b16 %v1322
  %v1451 = vunpack.c.l.b16 %v1323
  %v1452 = vunpack.c.l.b16 %v1324
  %v1453 = vunpack.c.l.b16 %v1325
  %v1454 = vunpack.c.l.b16 %v1326
  %v1455 = vunpack.c.l.b16 %v1327
  %v1456 = vunpack.c.l.b16 %v1328
  %v1457 = vunpack.c.l.b16 %v1329
  %v1458 = vunpack.c.l.b16 %v1330
  %v1459 = vunpack.c.l.b16 %v1331
  %v1460 = vunpack.c.l.b16 %v1332
  %v1461 = vunpack.c.l.b16 %v1333
  %v1462 = vpack.c.b16 %v1399, %v1398
  %v1463 = vpack.c.b16 %v1401, %v1400
  %v1464 = vpack.c.b16 %v1403, %v1402
  %v1465 = vpack.c.b16 %v1405, %v1404
  %v1466 = vpack.c.b16 %v1407, %v1406
  %v1467 = vpack.c.b16 %v1409, %v1408
  %v1468 = vpack.c.b16 %v1411, %v1410
  %v1469 = vpack.c.b16 %v1413, %v1412
  %v1470 = vpack.c.b16 %v1415, %v1414
  %v1471 = vpack.c.b16 %v1417, %v1416
  %v1472 = vpack.c.b16 %v1419, %v1418
  %v1473 = vpack.c.b16 %v1421, %v1420
  %v1474 = vpack.c.b16 %v1423, %v1422
  %v1475 = vpack.c.b16 %v1425, %v1424
  %v1476 = vpack.c.b16 %v1427, %v1426
  %v1477 = vpack.c.b16 %v1429, %v1428
  %v1478 = vpack.c.b16 %v1431, %v1430
  %v1479 = vpack.c.b16 %v1433, %v1432
  %v1480 = vpack.c.b16 %v1435, %v1434
  %v1481 = vpack.c.b16 %v1437, %v1436
  %v1482 = vpack.c.b16 %v1439, %v1438
  %v1483 = vpack.c.b16 %v1441, %v1440
  %v1484 = vpack.c.b16 %v1443, %v1442
  %v1485 = vpack.c.b16 %v1445, %v1444
  %v1486 = vpack.c.b16 %v1447, %v1446
  %v1487 = vpack.c.b16 %v1449, %v1448
  %v1488 = vpack.c.b16 %v1451, %v1450
  %v1489 = vpack.c.b16 %v1453, %v1452
  %v1490 = vpack.c.b16 %v1455, %v1454
  %v1491 = vpack.c.b16 %v1457, %v1456
  %v1492 = vpack.c.b16 %v1459, %v1458
  %v1493 = vpack.c.b16 %v1461, %v1460
  %1526 = vmatprep.subr.bf16.mxu0 0
  %1527 = vmatpush1.bf16.msra.mxu0 %v1469
  %1528 = vmatprep.subr.bf16.mxu0 0
  %1529 = vmatpush1.bf16.msra.mxu0 %v1468
  %1530 = vmatprep.subr.bf16.mxu0 0
  %1531 = vmatpush1.bf16.msra.mxu0 %v1467
  %1532 = vmatprep.subr.bf16.mxu0 0
  %1533 = vmatpush1.bf16.msra.mxu0 %v1466
  %1534 = vmatprep.subr.bf16.mxu0 0
  %1535 = vmatpush1.bf16.msra.mxu0 %v1465
  %1536 = vmatprep.subr.bf16.mxu0 0
  %1537 = vmatpush1.bf16.msra.mxu0 %v1464
  %1538 = vmatprep.subr.bf16.mxu0 0
  %1539 = vmatpush1.bf16.msra.mxu0 %v1463
  %1540 = vmatprep.subr.bf16.mxu0 0
  %1541 = vmatpush1.bf16.msra.mxu0 %v1462
  %1542 = vmatprep.subr.bf16.mxu0 0
  %1543 = vmatpush2.bf16.msra.mxu0 %v1477
  %1544 = vmatprep.subr.bf16.mxu0 0
  %1545 = vmatpush2.bf16.msra.mxu0 %v1476
  %1546 = vmatprep.subr.bf16.mxu0 0
  %1547 = vmatpush2.bf16.msra.mxu0 %v1475
  %1548 = vmatprep.subr.bf16.mxu0 0
  %1549 = vmatpush2.bf16.msra.mxu0 %v1474
  %1550 = vmatprep.subr.bf16.mxu0 0
  %1551 = vmatpush2.bf16.msra.mxu0 %v1473
  %1552 = vmatprep.subr.bf16.mxu0 0
  %1553 = vmatpush2.bf16.msra.mxu0 %v1472
  %1554 = vmatprep.subr.bf16.mxu0 0
  %1555 = vmatpush2.bf16.msra.mxu0 %v1471
  %1556 = vmatprep.subr.bf16.mxu0 0
  %1557 = vmatpush2.bf16.msra.mxu0 %v1470
  %1558 = vmatprep.mubr.bf16.mxu0 %v1262
  %1559 = vmatmul.mubr.bf16.gmra.mxu0 %v1261
  %v1560 = vpop.f32.mrf.mxu0
  %v1561 = vadd.f32 0.0, %v1560
  %v1562 = vpop.f32.mrf.mxu0
  %v1563 = vpop.f32.mrf.mxu0
  %v1564 = vadd.f32 0.0, %v1563
  %v1565 = vpop.f32.mrf.mxu0
  %1566 = vmatprep.mubr.bf16.mxu0 %v1266
  %1567 = vmatmul.mubr.bf16.gmra.mxu0 %v1265
  %v1568 = vpop.f32.mrf.mxu0
  %v1569 = vadd.f32 0.0, %v1568
  %v1570 = vpop.f32.mrf.mxu0
  %v1571 = vpop.f32.mrf.mxu0
  %v1572 = vadd.f32 0.0, %v1571
  %v1573 = vpop.f32.mrf.mxu0
  %1574 = vdwg.mxu0
  %1575 = vmatprep.subr.bf16.mxu0 0
  %1576 = vmatpush1.bf16.msra.mxu0 %v1485
  %1577 = vmatprep.subr.bf16.mxu0 0
  %1578 = vmatpush1.bf16.msra.mxu0 %v1484
  %1579 = vmatprep.subr.bf16.mxu0 0
  %1580 = vmatpush1.bf16.msra.mxu0 %v1483
  %1581 = vmatprep.subr.bf16.mxu0 0
  %1582 = vmatpush1.bf16.msra.mxu0 %v1482
  %1583 = vmatprep.subr.bf16.mxu0 0
  %1584 = vmatpush1.bf16.msra.mxu0 %v1481
  %1585 = vmatprep.subr.bf16.mxu0 0
  %1586 = vmatpush1.bf16.msra.mxu0 %v1480
  %1587 = vmatprep.subr.bf16.mxu0 0
  %1588 = vmatpush1.bf16.msra.mxu0 %v1479
  %1589 = vmatprep.subr.bf16.mxu0 0
  %1590 = vmatpush1.bf16.msra.mxu0 %v1478
  %1591 = vmatprep.subr.bf16.mxu0 0
  %1592 = vmatpush2.bf16.msra.mxu0 %v1493
  %1593 = vmatprep.subr.bf16.mxu0 0
  %1594 = vmatpush2.bf16.msra.mxu0 %v1492
  %1595 = vmatprep.subr.bf16.mxu0 0
  %1596 = vmatpush2.bf16.msra.mxu0 %v1491
  %1597 = vmatprep.subr.bf16.mxu0 0
  %1598 = vmatpush2.bf16.msra.mxu0 %v1490
  %1599 = vmatprep.subr.bf16.mxu0 0
  %1600 = vmatpush2.bf16.msra.mxu0 %v1489
  %1601 = vmatprep.subr.bf16.mxu0 0
  %1602 = vmatpush2.bf16.msra.mxu0 %v1488
  %1603 = vmatprep.subr.bf16.mxu0 0
  %1604 = vmatpush2.bf16.msra.mxu0 %v1487
  %1605 = vmatprep.subr.bf16.mxu0 0
  %1606 = vmatpush2.bf16.msra.mxu0 %v1486
  %1607 = vmatprep.mubr.bf16.mxu0 %v1264
  %1608 = vmatmul.mubr.bf16.gmra.mxu0 %v1263
  %v1609 = vpop.f32.mrf.mxu0
  %v1610 = vadd.f32 %v1561, %v1609
  %v1611 = vpop.f32.mrf.mxu0
  %v1612 = vpop.f32.mrf.mxu0
  %v1613 = vadd.f32 %v1564, %v1612
  %v1614 = vpop.f32.mrf.mxu0
  %1615 = vmatprep.mubr.bf16.mxu0 %v1268
  %1616 = vmatmul.mubr.bf16.gmra.mxu0 %v1267
  %v1617 = vpop.f32.mrf.mxu0
  %v1618 = vadd.f32 %v1569, %v1617
  %v1619 = vpop.f32.mrf.mxu0
  %v1620 = vpop.f32.mrf.mxu0
  %v1621 = vadd.f32 %v1572, %v1620
  %v1622 = vpop.f32.mrf.mxu0
  %1623 = vdwg.mxu0
  %v1688 = vunpack.c.l.b16 %v1003
  %v1689 = vunpack.c.l.b16 %v1004
  %v1690 = vunpack.c.l.b16 %v1005
  %v1691 = vunpack.c.l.b16 %v1006
  %v1692 = vunpack.c.l.b16 %v1007
  %v1693 = vunpack.c.l.b16 %v1008
  %v1694 = vunpack.c.l.b16 %v1009
  %v1695 = vunpack.c.l.b16 %v1010
  %v1696 = vunpack.c.l.b16 %v1011
  %v1697 = vunpack.c.l.b16 %v1012
  %v1698 = vunpack.c.l.b16 %v1013
  %v1699 = vunpack.c.l.b16 %v1014
  %v1700 = vunpack.c.l.b16 %v1015
  %v1701 = vunpack.c.l.b16 %v1016
  %v1702 = vunpack.c.l.b16 %v1017
  %v1703 = vunpack.c.l.b16 %v1018
  %v1704 = vunpack.c.l.b16 %v1019
  %v1705 = vunpack.c.l.b16 %v1020
  %v1706 = vunpack.c.l.b16 %v1021
  %v1707 = vunpack.c.l.b16 %v1022
  %v1708 = vunpack.c.l.b16 %v1023
  %v1709 = vunpack.c.l.b16 %v1024
  %v1710 = vunpack.c.l.b16 %v1025
  %v1711 = vunpack.c.l.b16 %v1026
  %v1712 = vunpack.c.l.b16 %v1027
  %v1713 = vunpack.c.l.b16 %v1028
  %v1714 = vunpack.c.l.b16 %v1029
  %v1715 = vunpack.c.l.b16 %v1030
  %v1716 = vunpack.c.l.b16 %v1031
  %v1717 = vunpack.c.l.b16 %v1032
  %v1718 = vunpack.c.l.b16 %v1033
  %v1719 = vunpack.c.l.b16 %v1034
  %v1720 = vunpack.c.l.b16 %v1035
  %v1721 = vunpack.c.l.b16 %v1036
  %v1722 = vunpack.c.l.b16 %v1037
  %v1723 = vunpack.c.l.b16 %v1038
  %v1724 = vunpack.c.l.b16 %v1039
  %v1725 = vunpack.c.l.b16 %v1040
  %v1726 = vunpack.c.l.b16 %v1041
  %v1727 = vunpack.c.l.b16 %v1042
  %v1728 = vunpack.c.l.b16 %v1043
  %v1729 = vunpack.c.l.b16 %v1044
  %v1730 = vunpack.c.l.b16 %v1045
  %v1731 = vunpack.c.l.b16 %v1046
  %v1732 = vunpack.c.l.b16 %v1047
  %v1733 = vunpack.c.l.b16 %v1048
  %v1734 = vunpack.c.l.b16 %v1049
  %v1735 = vunpack.c.l.b16 %v1050
  %v1736 = vunpack.c.l.b16 %v1051
  %v1737 = vunpack.c.l.b16 %v1052
  %v1738 = vunpack.c.l.b16 %v1053
  %v1739 = vunpack.c.l.b16 %v1054
  %v1740 = vunpack.c.l.b16 %v1055
  %v1741 = vunpack.c.l.b16 %v1056
  %v1742 = vunpack.c.l.b16 %v1057
  %v1743 = vunpack.c.l.b16 %v1058
  %v1744 = vunpack.c.l.b16 %v1059
  %v1745 = vunpack.c.l.b16 %v1060
  %v1746 = vunpack.c.l.b16 %v1061
  %v1747 = vunpack.c.l.b16 %v1062
  %v1748 = vunpack.c.l.b16 %v1063
  %v1749 = vunpack.c.l.b16 %v1064
  %v1750 = vunpack.c.l.b16 %v1065
  %v1751 = vunpack.c.l.b16 %v1066
  %v1752 = vpack.c.b16 %v1689, %v1688
  %v1753 = vpack.c.b16 %v1691, %v1690
  %v1754 = vpack.c.b16 %v1693, %v1692
  %v1755 = vpack.c.b16 %v1695, %v1694
  %v1756 = vpack.c.b16 %v1697, %v1696
  %v1757 = vpack.c.b16 %v1699, %v1698
  %v1758 = vpack.c.b16 %v1701, %v1700
  %v1759 = vpack.c.b16 %v1703, %v1702
  %v1760 = vpack.c.b16 %v1705, %v1704
  %v1761 = vpack.c.b16 %v1707, %v1706
  %v1762 = vpack.c.b16 %v1709, %v1708
  %v1763 = vpack.c.b16 %v1711, %v1710
  %v1764 = vpack.c.b16 %v1713, %v1712
  %v1765 = vpack.c.b16 %v1715, %v1714
  %v1766 = vpack.c.b16 %v1717, %v1716
  %v1767 = vpack.c.b16 %v1719, %v1718
  %v1768 = vpack.c.b16 %v1721, %v1720
  %v1769 = vpack.c.b16 %v1723, %v1722
  %v1770 = vpack.c.b16 %v1725, %v1724
  %v1771 = vpack.c.b16 %v1727, %v1726
  %v1772 = vpack.c.b16 %v1729, %v1728
  %v1773 = vpack.c.b16 %v1731, %v1730
  %v1774 = vpack.c.b16 %v1733, %v1732
  %v1775 = vpack.c.b16 %v1735, %v1734
  %v1776 = vpack.c.b16 %v1737, %v1736
  %v1777 = vpack.c.b16 %v1739, %v1738
  %v1778 = vpack.c.b16 %v1741, %v1740
  %v1779 = vpack.c.b16 %v1743, %v1742
  %v1780 = vpack.c.b16 %v1745, %v1744
  %v1781 = vpack.c.b16 %v1747, %v1746
  %v1782 = vpack.c.b16 %v1749, %v1748
  %v1783 = vpack.c.b16 %v1751, %v1750
  %1816 = vmatprep.subr.bf16.mxu0 0
  %1817 = vmatpush1.bf16.msra.mxu0 %v1759
  %1818 = vmatprep.subr.bf16.mxu0 0
  %1819 = vmatpush1.bf16.msra.mxu0 %v1758
  %1820 = vmatprep.subr.bf16.mxu0 0
  %1821 = vmatpush1.bf16.msra.mxu0 %v1757
  %1822 = vmatprep.subr.bf16.mxu0 0
  %1823 = vmatpush1.bf16.msra.mxu0 %v1756
  %1824 = vmatprep.subr.bf16.mxu0 0
  %1825 = vmatpush1.bf16.msra.mxu0 %v1755
  %1826 = vmatprep.subr.bf16.mxu0 0
  %1827 = vmatpush1.bf16.msra.mxu0 %v1754
  %1828 = vmatprep.subr.bf16.mxu0 0
  %1829 = vmatpush1.bf16.msra.mxu0 %v1753
  %1830 = vmatprep.subr.bf16.mxu0 0
  %1831 = vmatpush1.bf16.msra.mxu0 %v1752
  %1832 = vmatprep.subr.bf16.mxu0 0
  %1833 = vmatpush2.bf16.msra.mxu0 %v1767
  %1834 = vmatprep.subr.bf16.mxu0 0
  %1835 = vmatpush2.bf16.msra.mxu0 %v1766
  %1836 = vmatprep.subr.bf16.mxu0 0
  %1837 = vmatpush2.bf16.msra.mxu0 %v1765
  %1838 = vmatprep.subr.bf16.mxu0 0
  %1839 = vmatpush2.bf16.msra.mxu0 %v1764
  %1840 = vmatprep.subr.bf16.mxu0 0
  %1841 = vmatpush2.bf16.msra.mxu0 %v1763
  %1842 = vmatprep.subr.bf16.mxu0 0
  %1843 = vmatpush2.bf16.msra.mxu0 %v1762
  %1844 = vmatprep.subr.bf16.mxu0 0
  %1845 = vmatpush2.bf16.msra.mxu0 %v1761
  %1846 = vmatprep.subr.bf16.mxu0 0
  %1847 = vmatpush2.bf16.msra.mxu0 %v1760
  %1848 = vmatprep.mubr.bf16.mxu0 %v996
  %1849 = vmatmul.mubr.bf16.gmra.mxu0 %v995
  %v1850 = vpop.f32.mrf.mxu0
  %v1851 = vadd.f32 %v1610, %v1850
  %v1852 = vpop.f32.mrf.mxu0
  %v1853 = vpop.f32.mrf.mxu0
  %v1854 = vadd.f32 %v1613, %v1853
  %v1855 = vpop.f32.mrf.mxu0
  %1856 = vmatprep.mubr.bf16.mxu0 %v1000
  %1857 = vmatmul.mubr.bf16.gmra.mxu0 %v999
  %v1858 = vpop.f32.mrf.mxu0
  %v1859 = vadd.f32 %v1618, %v1858
  %v1860 = vpop.f32.mrf.mxu0
  %v1861 = vpop.f32.mrf.mxu0
  %v1862 = vadd.f32 %v1621, %v1861
  %v1863 = vpop.f32.mrf.mxu0
  %1864 = vdwg.mxu0
  %1865 = vmatprep.subr.bf16.mxu0 0
  %1866 = vmatpush1.bf16.msra.mxu0 %v1775
  %1867 = vmatprep.subr.bf16.mxu0 0
  %1868 = vmatpush1.bf16.msra.mxu0 %v1774
  %1869 = vmatprep.subr.bf16.mxu0 0
  %1870 = vmatpush1.bf16.msra.mxu0 %v1773
  %1871 = vmatprep.subr.bf16.mxu0 0
  %1872 = vmatpush1.bf16.msra.mxu0 %v1772
  %1873 = vmatprep.subr.bf16.mxu0 0
  %1874 = vmatpush1.bf16.msra.mxu0 %v1771
  %1875 = vmatprep.subr.bf16.mxu0 0
  %1876 = vmatpush1.bf16.msra.mxu0 %v1770
  %1877 = vmatprep.subr.bf16.mxu0 0
  %1878 = vmatpush1.bf16.msra.mxu0 %v1769
  %1879 = vmatprep.subr.bf16.mxu0 0
  %1880 = vmatpush1.bf16.msra.mxu0 %v1768
  %1881 = vmatprep.subr.bf16.mxu0 0
  %1882 = vmatpush2.bf16.msra.mxu0 %v1783
  %1883 = vmatprep.subr.bf16.mxu0 0
  %1884 = vmatpush2.bf16.msra.mxu0 %v1782
  %1885 = vmatprep.subr.bf16.mxu0 0
  %1886 = vmatpush2.bf16.msra.mxu0 %v1781
  %1887 = vmatprep.subr.bf16.mxu0 0
  %1888 = vmatpush2.bf16.msra.mxu0 %v1780
  %1889 = vmatprep.subr.bf16.mxu0 0
  %1890 = vmatpush2.bf16.msra.mxu0 %v1779
  %1891 = vmatprep.subr.bf16.mxu0 0
  %1892 = vmatpush2.bf16.msra.mxu0 %v1778
  %1893 = vmatprep.subr.bf16.mxu0 0
  %1894 = vmatpush2.bf16.msra.mxu0 %v1777
  %1895 = vmatprep.subr.bf16.mxu0 0
  %1896 = vmatpush2.bf16.msra.mxu0 %v1776
  %1897 = vmatprep.mubr.bf16.mxu0 %v998
  %1898 = vmatmul.mubr.bf16.gmra.mxu0 %v997
  %v1899 = vpop.f32.mrf.mxu0
  %v1900 = vadd.f32 %v1851, %v1899
  %v1901 = vpop.f32.mrf.mxu0
  %v1902 = vpop.f32.mrf.mxu0
  %v1903 = vadd.f32 %v1854, %v1902
  %v1904 = vpop.f32.mrf.mxu0
  %1905 = vmatprep.mubr.bf16.mxu0 %v1002
  %1906 = vmatmul.mubr.bf16.gmra.mxu0 %v1001
  %v1907 = vpop.f32.mrf.mxu0
  %v1908 = vadd.f32 %v1859, %v1907
  %v1909 = vpop.f32.mrf.mxu0
  %v1910 = vpop.f32.mrf.mxu0
  %v1911 = vadd.f32 %v1862, %v1910
  %v1912 = vpop.f32.mrf.mxu0
  %1913 = vdwg.mxu0
  %s1914 = scalar_lea.vmem %s3, 128
  %v1915 = vld [vmem:[%s1914] sm:$0xff]
  %v1916 = vld [vmem:[%s1914 + $0x8] sm:$0xff]
  %v1917 = vld [vmem:[%s1914 + $0x10] sm:$0xff]
  %v1918 = vld [vmem:[%s1914 + $0x18] sm:$0xff]
  %v1919 = vld [vmem:[%s1914 + $0x20] sm:$0xff]
  %v1920 = vld [vmem:[%s1914 + $0x28] sm:$0xff]
  %v1921 = vld [vmem:[%s1914 + $0x30] sm:$0xff]
  %v1922 = vld [vmem:[%s1914 + $0x38] sm:$0xff]
  %s1923 = scalar_lea.vmem %s4, 8
  %v1924 = vld [vmem:[%s1923] sm:$0xf]
  %v1926 = vlaneseq
  %v1927 = vshrl.u32 %v1926, 7
  %v1928 = vsub.s32 0, %v1927
  %v1929 = vrot.slane %v1924, %v1928
  %v1930 = vlaneseq
  %v1931 = vshrl.u32 %v1930, 7
  %v1932 = vsub.s32 1, %v1931
  %v1933 = vrot.slane %v1924, %v1932
  %v1934 = vlaneseq
  %v1935 = vshrl.u32 %v1934, 7
  %v1936 = vsub.s32 2, %v1935
  %v1937 = vrot.slane %v1924, %v1936
  %v1938 = vlaneseq
  %v1939 = vshrl.u32 %v1938, 7
  %v1940 = vsub.s32 3, %v1939
  %v1941 = vrot.slane %v1924, %v1940
  %v1954 = vunpack.c.l.b16 %v1915
  %v1955 = vunpack.c.h.b16 %v1915
  %v1956 = vunpack.c.l.b16 %v1916
  %v1957 = vunpack.c.h.b16 %v1916
  %v1958 = vunpack.c.l.b16 %v1917
  %v1959 = vunpack.c.h.b16 %v1917
  %v1960 = vunpack.c.l.b16 %v1918
  %v1961 = vunpack.c.h.b16 %v1918
  %v1962 = vunpack.c.l.b16 %v1919
  %v1963 = vunpack.c.h.b16 %v1919
  %v1964 = vunpack.c.l.b16 %v1920
  %v1965 = vunpack.c.h.b16 %v1920
  %v1966 = vunpack.c.l.b16 %v1921
  %v1967 = vunpack.c.h.b16 %v1921
  %v1968 = vunpack.c.l.b16 %v1922
  %v1969 = vunpack.c.h.b16 %v1922
  %v1970 = vpack.c.b16 %v1958, %v1954
  %v1971 = vpack.c.b16 %v1959, %v1955
  %v1972 = vpack.c.b16 %v1960, %v1956
  %v1973 = vpack.c.b16 %v1961, %v1957
  %v1974 = vpack.c.b16 %v1966, %v1962
  %v1975 = vpack.c.b16 %v1967, %v1963
  %v1976 = vpack.c.b16 %v1968, %v1964
  %v1977 = vpack.c.b16 %v1969, %v1965
  %1986 = vmatprep.subr.bf16.mxu0 0
  %1987 = vmatpush1.bf16.msra.mxu0 0
  %1988 = vmatprep.subr.bf16.mxu0 0
  %1989 = vmatpush1.bf16.msra.mxu0 0
  %1990 = vmatprep.subr.bf16.mxu0 0
  %1991 = vmatpush1.bf16.msra.mxu0 0
  %1992 = vmatprep.subr.bf16.mxu0 0
  %1993 = vmatpush1.bf16.msra.mxu0 0
  %1994 = vmatprep.subr.bf16.mxu0 0
  %1995 = vmatpush1.bf16.msra.mxu0 0
  %1996 = vmatprep.subr.bf16.mxu0 0
  %1997 = vmatpush1.bf16.msra.mxu0 0
  %1998 = vmatprep.subr.bf16.mxu0 %v1975
  %1999 = vmatpush1.bf16.msra.mxu0 %v1974
  %2000 = vmatprep.subr.bf16.mxu0 %v1971
  %2001 = vmatpush1.bf16.msra.mxu0 %v1970
  %2002 = vmatprep.subr.bf16.mxu0 0
  %2003 = vmatpush2.bf16.msra.mxu0 0
  %2004 = vmatprep.subr.bf16.mxu0 0
  %2005 = vmatpush2.bf16.msra.mxu0 0
  %2006 = vmatprep.subr.bf16.mxu0 0
  %2007 = vmatpush2.bf16.msra.mxu0 0
  %2008 = vmatprep.subr.bf16.mxu0 0
  %2009 = vmatpush2.bf16.msra.mxu0 0
  %2010 = vmatprep.subr.bf16.mxu0 0
  %2011 = vmatpush2.bf16.msra.mxu0 0
  %2012 = vmatprep.subr.bf16.mxu0 0
  %2013 = vmatpush2.bf16.msra.mxu0 0
  %2014 = vmatprep.subr.bf16.mxu0 0
  %2015 = vmatpush2.bf16.msra.mxu0 0
  %2016 = vmatprep.subr.bf16.mxu0 0
  %2017 = vmatpush2.bf16.msra.mxu0 0
  %2018 = vmatprep.mubr.bf16.mxu0 0
  %2019 = vmatmul.mubr.bf16.gmra.mxu0 %v868
  %v2020 = vpop.f32.mrf.mxu0
  %v2021 = vadd.f32 %v1929, %v2020
  %v2022 = vpop.f32.mrf.mxu0
  %v2023 = vadd.f32 %v1933, %v2022
  %v2024 = vpop.f32.mrf.mxu0
  %v2025 = vadd.f32 %v1929, %v2024
  %v2026 = vpop.f32.mrf.mxu0
  %v2027 = vadd.f32 %v1933, %v2026
  %2028 = vmatprep.mubr.bf16.mxu0 0
  %2029 = vmatmul.mubr.bf16.gmra.mxu0 %v871
  %v2030 = vpop.f32.mrf.mxu0
  %v2031 = vadd.f32 %v1929, %v2030
  %v2032 = vpop.f32.mrf.mxu0
  %v2033 = vadd.f32 %v1933, %v2032
  %v2034 = vpop.f32.mrf.mxu0
  %v2035 = vadd.f32 %v1929, %v2034
  %v2036 = vpop.f32.mrf.mxu0
  %v2037 = vadd.f32 %v1933, %v2036
  %2038 = vdwg.mxu0
  %2039 = vmatprep.subr.bf16.mxu0 0
  %2040 = vmatpush1.bf16.msra.mxu0 0
  %2041 = vmatprep.subr.bf16.mxu0 0
  %2042 = vmatpush1.bf16.msra.mxu0 0
  %2043 = vmatprep.subr.bf16.mxu0 0
  %2044 = vmatpush1.bf16.msra.mxu0 0
  %2045 = vmatprep.subr.bf16.mxu0 0
  %2046 = vmatpush1.bf16.msra.mxu0 0
  %2047 = vmatprep.subr.bf16.mxu0 0
  %2048 = vmatpush1.bf16.msra.mxu0 0
  %2049 = vmatprep.subr.bf16.mxu0 0
  %2050 = vmatpush1.bf16.msra.mxu0 0
  %2051 = vmatprep.subr.bf16.mxu0 %v1977
  %2052 = vmatpush1.bf16.msra.mxu0 %v1976
  %2053 = vmatprep.subr.bf16.mxu0 %v1973
  %2054 = vmatpush1.bf16.msra.mxu0 %v1972
  %2055 = vmatprep.subr.bf16.mxu0 0
  %2056 = vmatpush2.bf16.msra.mxu0 0
  %2057 = vmatprep.subr.bf16.mxu0 0
  %2058 = vmatpush2.bf16.msra.mxu0 0
  %2059 = vmatprep.subr.bf16.mxu0 0
  %2060 = vmatpush2.bf16.msra.mxu0 0
  %2061 = vmatprep.subr.bf16.mxu0 0
  %2062 = vmatpush2.bf16.msra.mxu0 0
  %2063 = vmatprep.subr.bf16.mxu0 0
  %2064 = vmatpush2.bf16.msra.mxu0 0
  %2065 = vmatprep.subr.bf16.mxu0 0
  %2066 = vmatpush2.bf16.msra.mxu0 0
  %2067 = vmatprep.subr.bf16.mxu0 0
  %2068 = vmatpush2.bf16.msra.mxu0 0
  %2069 = vmatprep.subr.bf16.mxu0 0
  %2070 = vmatpush2.bf16.msra.mxu0 0
  %2071 = vmatprep.mubr.bf16.mxu0 0
  %2072 = vmatmul.mubr.bf16.gmra.mxu0 %v868
  %v2073 = vpop.f32.mrf.mxu0
  %v2074 = vadd.f32 %v1937, %v2073
  %v2075 = vpop.f32.mrf.mxu0
  %v2076 = vadd.f32 %v1941, %v2075
  %v2077 = vpop.f32.mrf.mxu0
  %v2078 = vadd.f32 %v1937, %v2077
  %v2079 = vpop.f32.mrf.mxu0
  %v2080 = vadd.f32 %v1941, %v2079
  %2081 = vmatprep.mubr.bf16.mxu0 0
  %2082 = vmatmul.mubr.bf16.gmra.mxu0 %v871
  %v2083 = vpop.f32.mrf.mxu0
  %v2084 = vadd.f32 %v1937, %v2083
  %v2085 = vpop.f32.mrf.mxu0
  %v2086 = vadd.f32 %v1941, %v2085
  %v2087 = vpop.f32.mrf.mxu0
  %v2088 = vadd.f32 %v1937, %v2087
  %v2089 = vpop.f32.mrf.mxu0
  %v2090 = vadd.f32 %v1941, %v2089
  %2091 = vdwg.mxu0
  %v2092 = vmax.f32 %v2021, 0.0
  %v2093 = vmax.f32 %v2023, 0.0
  %v2094 = vmax.f32 %v2074, 0.0
  %v2095 = vmax.f32 %v2076, 0.0
  %v2096 = vmax.f32 %v2025, 0.0
  %v2097 = vmax.f32 %v2027, 0.0
  %v2098 = vmax.f32 %v2078, 0.0
  %v2099 = vmax.f32 %v2080, 0.0
  %v2100 = vmax.f32 %v2031, 0.0
  %v2101 = vmax.f32 %v2033, 0.0
  %v2102 = vmax.f32 %v2084, 0.0
  %v2103 = vmax.f32 %v2086, 0.0
  %v2104 = vmax.f32 %v2035, 0.0
  %v2105 = vmax.f32 %v2037, 0.0
  %v2106 = vmax.f32 %v2088, 0.0
  %v2107 = vmax.f32 %v2090, 0.0
  %v2108 = vpack.c.bf16 %v2096, %v2092
  %v2109 = vpack.c.bf16 %v2097, %v2093
  %v2110 = vpack.c.bf16 %v2098, %v2094
  %v2111 = vpack.c.bf16 %v2099, %v2095
  %v2112 = vpack.c.bf16 %v2104, %v2100
  %v2113 = vpack.c.bf16 %v2105, %v2101
  %v2114 = vpack.c.bf16 %v2106, %v2102
  %v2115 = vpack.c.bf16 %v2107, %v2103
  %s2116 = scalar_lea.vmem %s5, 512
  %v2117 = vld [vmem:[%s2116] sm:$0xf]
  %v2118 = vld [vmem:[%s2116 + $0x4] sm:$0xf]
  %v2119 = vld [vmem:[%s2116 + $0x8] sm:$0xf]
  %v2120 = vld [vmem:[%s2116 + $0xc] sm:$0xf]
  %v2121 = vld [vmem:[%s2116 + $0x10] sm:$0xf]
  %v2122 = vld [vmem:[%s2116 + $0x14] sm:$0xf]
  %v2123 = vld [vmem:[%s2116 + $0x18] sm:$0xf]
  %v2124 = vld [vmem:[%s2116 + $0x1c] sm:$0xf]
  %v2125 = vld [vmem:[%s2116 + $0x20] sm:$0xf]
  %v2126 = vld [vmem:[%s2116 + $0x24] sm:$0xf]
  %v2127 = vld [vmem:[%s2116 + $0x28] sm:$0xf]
  %v2128 = vld [vmem:[%s2116 + $0x2c] sm:$0xf]
  %v2129 = vld [vmem:[%s2116 + $0x30] sm:$0xf]
  %v2130 = vld [vmem:[%s2116 + $0x34] sm:$0xf]
  %v2131 = vld [vmem:[%s2116 + $0x38] sm:$0xf]
  %v2132 = vld [vmem:[%s2116 + $0x3c] sm:$0xf]
  %v2133 = vld [vmem:[%s2116 + $0x40] sm:$0xf]
  %v2134 = vld [vmem:[%s2116 + $0x44] sm:$0xf]
  %v2135 = vld [vmem:[%s2116 + $0x48] sm:$0xf]
  %v2136 = vld [vmem:[%s2116 + $0x4c] sm:$0xf]
  %v2137 = vld [vmem:[%s2116 + $0x50] sm:$0xf]
  %v2138 = vld [vmem:[%s2116 + $0x54] sm:$0xf]
  %v2139 = vld [vmem:[%s2116 + $0x58] sm:$0xf]
  %v2140 = vld [vmem:[%s2116 + $0x5c] sm:$0xf]
  %v2141 = vld [vmem:[%s2116 + $0x60] sm:$0xf]
  %v2142 = vld [vmem:[%s2116 + $0x64] sm:$0xf]
  %v2143 = vld [vmem:[%s2116 + $0x68] sm:$0xf]
  %v2144 = vld [vmem:[%s2116 + $0x6c] sm:$0xf]
  %v2145 = vld [vmem:[%s2116 + $0x70] sm:$0xf]
  %v2146 = vld [vmem:[%s2116 + $0x74] sm:$0xf]
  %v2147 = vld [vmem:[%s2116 + $0x78] sm:$0xf]
  %v2148 = vld [vmem:[%s2116 + $0x7c] sm:$0xf]
  %v2149 = vld [vmem:[%s2116 + $0x80] sm:$0xf]
  %v2150 = vld [vmem:[%s2116 + $0x84] sm:$0xf]
  %v2151 = vld [vmem:[%s2116 + $0x88] sm:$0xf]
  %v2152 = vld [vmem:[%s2116 + $0x8c] sm:$0xf]
  %v2153 = vld [vmem:[%s2116 + $0x90] sm:$0xf]
  %v2154 = vld [vmem:[%s2116 + $0x94] sm:$0xf]
  %v2155 = vld [vmem:[%s2116 + $0x98] sm:$0xf]
  %v2156 = vld [vmem:[%s2116 + $0x9c] sm:$0xf]
  %v2157 = vld [vmem:[%s2116 + $0xa0] sm:$0xf]
  %v2158 = vld [vmem:[%s2116 + $0xa4] sm:$0xf]
  %v2159 = vld [vmem:[%s2116 + $0xa8] sm:$0xf]
  %v2160 = vld [vmem:[%s2116 + $0xac] sm:$0xf]
  %v2161 = vld [vmem:[%s2116 + $0xb0] sm:$0xf]
  %v2162 = vld [vmem:[%s2116 + $0xb4] sm:$0xf]
  %v2163 = vld [vmem:[%s2116 + $0xb8] sm:$0xf]
  %v2164 = vld [vmem:[%s2116 + $0xbc] sm:$0xf]
  %v2165 = vld [vmem:[%s2116 + $0xc0] sm:$0xf]
  %v2166 = vld [vmem:[%s2116 + $0xc4] sm:$0xf]
  %v2167 = vld [vmem:[%s2116 + $0xc8] sm:$0xf]
  %v2168 = vld [vmem:[%s2116 + $0xcc] sm:$0xf]
  %v2169 = vld [vmem:[%s2116 + $0xd0] sm:$0xf]
  %v2170 = vld [vmem:[%s2116 + $0xd4] sm:$0xf]
  %v2171 = vld [vmem:[%s2116 + $0xd8] sm:$0xf]
  %v2172 = vld [vmem:[%s2116 + $0xdc] sm:$0xf]
  %v2173 = vld [vmem:[%s2116 + $0xe0] sm:$0xf]
  %v2174 = vld [vmem:[%s2116 + $0xe4] sm:$0xf]
  %v2175 = vld [vmem:[%s2116 + $0xe8] sm:$0xf]
  %v2176 = vld [vmem:[%s2116 + $0xec] sm:$0xf]
  %v2177 = vld [vmem:[%s2116 + $0xf0] sm:$0xf]
  %v2178 = vld [vmem:[%s2116 + $0xf4] sm:$0xf]
  %v2179 = vld [vmem:[%s2116 + $0xf8] sm:$0xf]
  %v2180 = vld [vmem:[%s2116 + $0xfc] sm:$0xf]
  %v2245 = vunpack.c.l.b16 %v2117
  %v2246 = vunpack.c.l.b16 %v2118
  %v2247 = vunpack.c.l.b16 %v2119
  %v2248 = vunpack.c.l.b16 %v2120
  %v2249 = vunpack.c.l.b16 %v2121
  %v2250 = vunpack.c.l.b16 %v2122
  %v2251 = vunpack.c.l.b16 %v2123
  %v2252 = vunpack.c.l.b16 %v2124
  %v2253 = vunpack.c.l.b16 %v2125
  %v2254 = vunpack.c.l.b16 %v2126
  %v2255 = vunpack.c.l.b16 %v2127
  %v2256 = vunpack.c.l.b16 %v2128
  %v2257 = vunpack.c.l.b16 %v2129
  %v2258 = vunpack.c.l.b16 %v2130
  %v2259 = vunpack.c.l.b16 %v2131
  %v2260 = vunpack.c.l.b16 %v2132
  %v2261 = vunpack.c.l.b16 %v2133
  %v2262 = vunpack.c.l.b16 %v2134
  %v2263 = vunpack.c.l.b16 %v2135
  %v2264 = vunpack.c.l.b16 %v2136
  %v2265 = vunpack.c.l.b16 %v2137
  %v2266 = vunpack.c.l.b16 %v2138
  %v2267 = vunpack.c.l.b16 %v2139
  %v2268 = vunpack.c.l.b16 %v2140
  %v2269 = vunpack.c.l.b16 %v2141
  %v2270 = vunpack.c.l.b16 %v2142
  %v2271 = vunpack.c.l.b16 %v2143
  %v2272 = vunpack.c.l.b16 %v2144
  %v2273 = vunpack.c.l.b16 %v2145
  %v2274 = vunpack.c.l.b16 %v2146
  %v2275 = vunpack.c.l.b16 %v2147
  %v2276 = vunpack.c.l.b16 %v2148
  %v2277 = vunpack.c.l.b16 %v2149
  %v2278 = vunpack.c.l.b16 %v2150
  %v2279 = vunpack.c.l.b16 %v2151
  %v2280 = vunpack.c.l.b16 %v2152
  %v2281 = vunpack.c.l.b16 %v2153
  %v2282 = vunpack.c.l.b16 %v2154
  %v2283 = vunpack.c.l.b16 %v2155
  %v2284 = vunpack.c.l.b16 %v2156
  %v2285 = vunpack.c.l.b16 %v2157
  %v2286 = vunpack.c.l.b16 %v2158
  %v2287 = vunpack.c.l.b16 %v2159
  %v2288 = vunpack.c.l.b16 %v2160
  %v2289 = vunpack.c.l.b16 %v2161
  %v2290 = vunpack.c.l.b16 %v2162
  %v2291 = vunpack.c.l.b16 %v2163
  %v2292 = vunpack.c.l.b16 %v2164
  %v2293 = vunpack.c.l.b16 %v2165
  %v2294 = vunpack.c.l.b16 %v2166
  %v2295 = vunpack.c.l.b16 %v2167
  %v2296 = vunpack.c.l.b16 %v2168
  %v2297 = vunpack.c.l.b16 %v2169
  %v2298 = vunpack.c.l.b16 %v2170
  %v2299 = vunpack.c.l.b16 %v2171
  %v2300 = vunpack.c.l.b16 %v2172
  %v2301 = vunpack.c.l.b16 %v2173
  %v2302 = vunpack.c.l.b16 %v2174
  %v2303 = vunpack.c.l.b16 %v2175
  %v2304 = vunpack.c.l.b16 %v2176
  %v2305 = vunpack.c.l.b16 %v2177
  %v2306 = vunpack.c.l.b16 %v2178
  %v2307 = vunpack.c.l.b16 %v2179
  %v2308 = vunpack.c.l.b16 %v2180
  %v2309 = vpack.c.b16 %v2246, %v2245
  %v2310 = vpack.c.b16 %v2248, %v2247
  %v2311 = vpack.c.b16 %v2250, %v2249
  %v2312 = vpack.c.b16 %v2252, %v2251
  %v2313 = vpack.c.b16 %v2254, %v2253
  %v2314 = vpack.c.b16 %v2256, %v2255
  %v2315 = vpack.c.b16 %v2258, %v2257
  %v2316 = vpack.c.b16 %v2260, %v2259
  %v2317 = vpack.c.b16 %v2262, %v2261
  %v2318 = vpack.c.b16 %v2264, %v2263
  %v2319 = vpack.c.b16 %v2266, %v2265
  %v2320 = vpack.c.b16 %v2268, %v2267
  %v2321 = vpack.c.b16 %v2270, %v2269
  %v2322 = vpack.c.b16 %v2272, %v2271
  %v2323 = vpack.c.b16 %v2274, %v2273
  %v2324 = vpack.c.b16 %v2276, %v2275
  %v2325 = vpack.c.b16 %v2278, %v2277
  %v2326 = vpack.c.b16 %v2280, %v2279
  %v2327 = vpack.c.b16 %v2282, %v2281
  %v2328 = vpack.c.b16 %v2284, %v2283
  %v2329 = vpack.c.b16 %v2286, %v2285
  %v2330 = vpack.c.b16 %v2288, %v2287
  %v2331 = vpack.c.b16 %v2290, %v2289
  %v2332 = vpack.c.b16 %v2292, %v2291
  %v2333 = vpack.c.b16 %v2294, %v2293
  %v2334 = vpack.c.b16 %v2296, %v2295
  %v2335 = vpack.c.b16 %v2298, %v2297
  %v2336 = vpack.c.b16 %v2300, %v2299
  %v2337 = vpack.c.b16 %v2302, %v2301
  %v2338 = vpack.c.b16 %v2304, %v2303
  %v2339 = vpack.c.b16 %v2306, %v2305
  %v2340 = vpack.c.b16 %v2308, %v2307
  %2373 = vmatprep.subr.bf16.mxu0 0
  %2374 = vmatpush1.bf16.msra.mxu0 %v2316
  %2375 = vmatprep.subr.bf16.mxu0 0
  %2376 = vmatpush1.bf16.msra.mxu0 %v2315
  %2377 = vmatprep.subr.bf16.mxu0 0
  %2378 = vmatpush1.bf16.msra.mxu0 %v2314
  %2379 = vmatprep.subr.bf16.mxu0 0
  %2380 = vmatpush1.bf16.msra.mxu0 %v2313
  %2381 = vmatprep.subr.bf16.mxu0 0
  %2382 = vmatpush1.bf16.msra.mxu0 %v2312
  %2383 = vmatprep.subr.bf16.mxu0 0
  %2384 = vmatpush1.bf16.msra.mxu0 %v2311
  %2385 = vmatprep.subr.bf16.mxu0 0
  %2386 = vmatpush1.bf16.msra.mxu0 %v2310
  %2387 = vmatprep.subr.bf16.mxu0 0
  %2388 = vmatpush1.bf16.msra.mxu0 %v2309
  %2389 = vmatprep.subr.bf16.mxu0 0
  %2390 = vmatpush2.bf16.msra.mxu0 %v2324
  %2391 = vmatprep.subr.bf16.mxu0 0
  %2392 = vmatpush2.bf16.msra.mxu0 %v2323
  %2393 = vmatprep.subr.bf16.mxu0 0
  %2394 = vmatpush2.bf16.msra.mxu0 %v2322
  %2395 = vmatprep.subr.bf16.mxu0 0
  %2396 = vmatpush2.bf16.msra.mxu0 %v2321
  %2397 = vmatprep.subr.bf16.mxu0 0
  %2398 = vmatpush2.bf16.msra.mxu0 %v2320
  %2399 = vmatprep.subr.bf16.mxu0 0
  %2400 = vmatpush2.bf16.msra.mxu0 %v2319
  %2401 = vmatprep.subr.bf16.mxu0 0
  %2402 = vmatpush2.bf16.msra.mxu0 %v2318
  %2403 = vmatprep.subr.bf16.mxu0 0
  %2404 = vmatpush2.bf16.msra.mxu0 %v2317
  %2405 = vmatprep.mubr.bf16.mxu0 %v2109
  %2406 = vmatmul.mubr.bf16.gmra.mxu0 %v2108
  %v2407 = vpop.f32.mrf.mxu0
  %v2408 = vadd.f32 0.0, %v2407
  %v2409 = vpop.f32.mrf.mxu0
  %v2410 = vpop.f32.mrf.mxu0
  %v2411 = vadd.f32 0.0, %v2410
  %v2412 = vpop.f32.mrf.mxu0
  %2413 = vmatprep.mubr.bf16.mxu0 %v2113
  %2414 = vmatmul.mubr.bf16.gmra.mxu0 %v2112
  %v2415 = vpop.f32.mrf.mxu0
  %v2416 = vadd.f32 0.0, %v2415
  %v2417 = vpop.f32.mrf.mxu0
  %v2418 = vpop.f32.mrf.mxu0
  %v2419 = vadd.f32 0.0, %v2418
  %v2420 = vpop.f32.mrf.mxu0
  %2421 = vdwg.mxu0
  %2422 = vmatprep.subr.bf16.mxu0 0
  %2423 = vmatpush1.bf16.msra.mxu0 %v2332
  %2424 = vmatprep.subr.bf16.mxu0 0
  %2425 = vmatpush1.bf16.msra.mxu0 %v2331
  %2426 = vmatprep.subr.bf16.mxu0 0
  %2427 = vmatpush1.bf16.msra.mxu0 %v2330
  %2428 = vmatprep.subr.bf16.mxu0 0
  %2429 = vmatpush1.bf16.msra.mxu0 %v2329
  %2430 = vmatprep.subr.bf16.mxu0 0
  %2431 = vmatpush1.bf16.msra.mxu0 %v2328
  %2432 = vmatprep.subr.bf16.mxu0 0
  %2433 = vmatpush1.bf16.msra.mxu0 %v2327
  %2434 = vmatprep.subr.bf16.mxu0 0
  %2435 = vmatpush1.bf16.msra.mxu0 %v2326
  %2436 = vmatprep.subr.bf16.mxu0 0
  %2437 = vmatpush1.bf16.msra.mxu0 %v2325
  %2438 = vmatprep.subr.bf16.mxu0 0
  %2439 = vmatpush2.bf16.msra.mxu0 %v2340
  %2440 = vmatprep.subr.bf16.mxu0 0
  %2441 = vmatpush2.bf16.msra.mxu0 %v2339
  %2442 = vmatprep.subr.bf16.mxu0 0
  %2443 = vmatpush2.bf16.msra.mxu0 %v2338
  %2444 = vmatprep.subr.bf16.mxu0 0
  %2445 = vmatpush2.bf16.msra.mxu0 %v2337
  %2446 = vmatprep.subr.bf16.mxu0 0
  %2447 = vmatpush2.bf16.msra.mxu0 %v2336
  %2448 = vmatprep.subr.bf16.mxu0 0
  %2449 = vmatpush2.bf16.msra.mxu0 %v2335
  %2450 = vmatprep.subr.bf16.mxu0 0
  %2451 = vmatpush2.bf16.msra.mxu0 %v2334
  %2452 = vmatprep.subr.bf16.mxu0 0
  %2453 = vmatpush2.bf16.msra.mxu0 %v2333
  %2454 = vmatprep.mubr.bf16.mxu0 %v2111
  %2455 = vmatmul.mubr.bf16.gmra.mxu0 %v2110
  %v2456 = vpop.f32.mrf.mxu0
  %v2457 = vadd.f32 %v2408, %v2456
  %v2458 = vpop.f32.mrf.mxu0
  %v2459 = vpop.f32.mrf.mxu0
  %v2460 = vadd.f32 %v2411, %v2459
  %v2461 = vpop.f32.mrf.mxu0
  %2462 = vmatprep.mubr.bf16.mxu0 %v2115
  %2463 = vmatmul.mubr.bf16.gmra.mxu0 %v2114
  %v2464 = vpop.f32.mrf.mxu0
  %v2465 = vadd.f32 %v2416, %v2464
  %v2466 = vpop.f32.mrf.mxu0
  %v2467 = vpop.f32.mrf.mxu0
  %v2468 = vadd.f32 %v2419, %v2467
  %v2469 = vpop.f32.mrf.mxu0
  %2470 = vdwg.mxu0
  %v2471 = vadd.f32 %v1900, %v2457
  %v2472 = vadd.f32 %v1903, %v2460
  %v2473 = vadd.f32 %v1908, %v2465
  %v2474 = vadd.f32 %v1911, %v2468
  %s2475 = scalar_lea.vmem %s3, 192
  %v2476 = vld [vmem:[%s2475] sm:$0xff]
  %v2477 = vld [vmem:[%s2475 + $0x8] sm:$0xff]
  %v2478 = vld [vmem:[%s2475 + $0x10] sm:$0xff]
  %v2479 = vld [vmem:[%s2475 + $0x18] sm:$0xff]
  %v2480 = vld [vmem:[%s2475 + $0x20] sm:$0xff]
  %v2481 = vld [vmem:[%s2475 + $0x28] sm:$0xff]
  %v2482 = vld [vmem:[%s2475 + $0x30] sm:$0xff]
  %v2483 = vld [vmem:[%s2475 + $0x38] sm:$0xff]
  %s2484 = scalar_lea.vmem %s4, 12
  %v2485 = vld [vmem:[%s2484] sm:$0xf]
  %v2487 = vlaneseq
  %v2488 = vshrl.u32 %v2487, 7
  %v2489 = vsub.s32 0, %v2488
  %v2490 = vrot.slane %v2485, %v2489
  %v2491 = vlaneseq
  %v2492 = vshrl.u32 %v2491, 7
  %v2493 = vsub.s32 1, %v2492
  %v2494 = vrot.slane %v2485, %v2493
  %v2495 = vlaneseq
  %v2496 = vshrl.u32 %v2495, 7
  %v2497 = vsub.s32 2, %v2496
  %v2498 = vrot.slane %v2485, %v2497
  %v2499 = vlaneseq
  %v2500 = vshrl.u32 %v2499, 7
  %v2501 = vsub.s32 3, %v2500
  %v2502 = vrot.slane %v2485, %v2501
  %v2515 = vunpack.c.l.b16 %v2476
  %v2516 = vunpack.c.h.b16 %v2476
  %v2517 = vunpack.c.l.b16 %v2477
  %v2518 = vunpack.c.h.b16 %v2477
  %v2519 = vunpack.c.l.b16 %v2478
  %v2520 = vunpack.c.h.b16 %v2478
  %v2521 = vunpack.c.l.b16 %v2479
  %v2522 = vunpack.c.h.b16 %v2479
  %v2523 = vunpack.c.l.b16 %v2480
  %v2524 = vunpack.c.h.b16 %v2480
  %v2525 = vunpack.c.l.b16 %v2481
  %v2526 = vunpack.c.h.b16 %v2481
  %v2527 = vunpack.c.l.b16 %v2482
  %v2528 = vunpack.c.h.b16 %v2482
  %v2529 = vunpack.c.l.b16 %v2483
  %v2530 = vunpack.c.h.b16 %v2483
  %v2531 = vpack.c.b16 %v2519, %v2515
  %v2532 = vpack.c.b16 %v2520, %v2516
  %v2533 = vpack.c.b16 %v2521, %v2517
  %v2534 = vpack.c.b16 %v2522, %v2518
  %v2535 = vpack.c.b16 %v2527, %v2523
  %v2536 = vpack.c.b16 %v2528, %v2524
  %v2537 = vpack.c.b16 %v2529, %v2525
  %v2538 = vpack.c.b16 %v2530, %v2526
  %2547 = vmatprep.subr.bf16.mxu0 0
  %2548 = vmatpush1.bf16.msra.mxu0 0
  %2549 = vmatprep.subr.bf16.mxu0 0
  %2550 = vmatpush1.bf16.msra.mxu0 0
  %2551 = vmatprep.subr.bf16.mxu0 0
  %2552 = vmatpush1.bf16.msra.mxu0 0
  %2553 = vmatprep.subr.bf16.mxu0 0
  %2554 = vmatpush1.bf16.msra.mxu0 0
  %2555 = vmatprep.subr.bf16.mxu0 0
  %2556 = vmatpush1.bf16.msra.mxu0 0
  %2557 = vmatprep.subr.bf16.mxu0 0
  %2558 = vmatpush1.bf16.msra.mxu0 0
  %2559 = vmatprep.subr.bf16.mxu0 %v2536
  %2560 = vmatpush1.bf16.msra.mxu0 %v2535
  %2561 = vmatprep.subr.bf16.mxu0 %v2532
  %2562 = vmatpush1.bf16.msra.mxu0 %v2531
  %2563 = vmatprep.subr.bf16.mxu0 0
  %2564 = vmatpush2.bf16.msra.mxu0 0
  %2565 = vmatprep.subr.bf16.mxu0 0
  %2566 = vmatpush2.bf16.msra.mxu0 0
  %2567 = vmatprep.subr.bf16.mxu0 0
  %2568 = vmatpush2.bf16.msra.mxu0 0
  %2569 = vmatprep.subr.bf16.mxu0 0
  %2570 = vmatpush2.bf16.msra.mxu0 0
  %2571 = vmatprep.subr.bf16.mxu0 0
  %2572 = vmatpush2.bf16.msra.mxu0 0
  %2573 = vmatprep.subr.bf16.mxu0 0
  %2574 = vmatpush2.bf16.msra.mxu0 0
  %2575 = vmatprep.subr.bf16.mxu0 0
  %2576 = vmatpush2.bf16.msra.mxu0 0
  %2577 = vmatprep.subr.bf16.mxu0 0
  %2578 = vmatpush2.bf16.msra.mxu0 0
  %2579 = vmatprep.mubr.bf16.mxu0 0
  %2580 = vmatmul.mubr.bf16.gmra.mxu0 %v868
  %v2581 = vpop.f32.mrf.mxu0
  %v2582 = vadd.f32 %v2490, %v2581
  %v2583 = vpop.f32.mrf.mxu0
  %v2584 = vadd.f32 %v2494, %v2583
  %v2585 = vpop.f32.mrf.mxu0
  %v2586 = vadd.f32 %v2490, %v2585
  %v2587 = vpop.f32.mrf.mxu0
  %v2588 = vadd.f32 %v2494, %v2587
  %2589 = vmatprep.mubr.bf16.mxu0 0
  %2590 = vmatmul.mubr.bf16.gmra.mxu0 %v871
  %v2591 = vpop.f32.mrf.mxu0
  %v2592 = vadd.f32 %v2490, %v2591
  %v2593 = vpop.f32.mrf.mxu0
  %v2594 = vadd.f32 %v2494, %v2593
  %v2595 = vpop.f32.mrf.mxu0
  %v2596 = vadd.f32 %v2490, %v2595
  %v2597 = vpop.f32.mrf.mxu0
  %v2598 = vadd.f32 %v2494, %v2597
  %2599 = vdwg.mxu0
  %2600 = vmatprep.subr.bf16.mxu0 0
  %2601 = vmatpush1.bf16.msra.mxu0 0
  %2602 = vmatprep.subr.bf16.mxu0 0
  %2603 = vmatpush1.bf16.msra.mxu0 0
  %2604 = vmatprep.subr.bf16.mxu0 0
  %2605 = vmatpush1.bf16.msra.mxu0 0
  %2606 = vmatprep.subr.bf16.mxu0 0
  %2607 = vmatpush1.bf16.msra.mxu0 0
  %2608 = vmatprep.subr.bf16.mxu0 0
  %2609 = vmatpush1.bf16.msra.mxu0 0
  %2610 = vmatprep.subr.bf16.mxu0 0
  %2611 = vmatpush1.bf16.msra.mxu0 0
  %2612 = vmatprep.subr.bf16.mxu0 %v2538
  %2613 = vmatpush1.bf16.msra.mxu0 %v2537
  %2614 = vmatprep.subr.bf16.mxu0 %v2534
  %2615 = vmatpush1.bf16.msra.mxu0 %v2533
  %2616 = vmatprep.subr.bf16.mxu0 0
  %2617 = vmatpush2.bf16.msra.mxu0 0
  %2618 = vmatprep.subr.bf16.mxu0 0
  %2619 = vmatpush2.bf16.msra.mxu0 0
  %2620 = vmatprep.subr.bf16.mxu0 0
  %2621 = vmatpush2.bf16.msra.mxu0 0
  %2622 = vmatprep.subr.bf16.mxu0 0
  %2623 = vmatpush2.bf16.msra.mxu0 0
  %2624 = vmatprep.subr.bf16.mxu0 0
  %2625 = vmatpush2.bf16.msra.mxu0 0
  %2626 = vmatprep.subr.bf16.mxu0 0
  %2627 = vmatpush2.bf16.msra.mxu0 0
  %2628 = vmatprep.subr.bf16.mxu0 0
  %2629 = vmatpush2.bf16.msra.mxu0 0
  %2630 = vmatprep.subr.bf16.mxu0 0
  %2631 = vmatpush2.bf16.msra.mxu0 0
  %2632 = vmatprep.mubr.bf16.mxu0 0
  %2633 = vmatmul.mubr.bf16.gmra.mxu0 %v868
  %v2634 = vpop.f32.mrf.mxu0
  %v2635 = vadd.f32 %v2498, %v2634
  %v2636 = vpop.f32.mrf.mxu0
  %v2637 = vadd.f32 %v2502, %v2636
  %v2638 = vpop.f32.mrf.mxu0
  %v2639 = vadd.f32 %v2498, %v2638
  %v2640 = vpop.f32.mrf.mxu0
  %v2641 = vadd.f32 %v2502, %v2640
  %2642 = vmatprep.mubr.bf16.mxu0 0
  %2643 = vmatmul.mubr.bf16.gmra.mxu0 %v871
  %v2644 = vpop.f32.mrf.mxu0
  %v2645 = vadd.f32 %v2498, %v2644
  %v2646 = vpop.f32.mrf.mxu0
  %v2647 = vadd.f32 %v2502, %v2646
  %v2648 = vpop.f32.mrf.mxu0
  %v2649 = vadd.f32 %v2498, %v2648
  %v2650 = vpop.f32.mrf.mxu0
  %v2651 = vadd.f32 %v2502, %v2650
  %2652 = vdwg.mxu0
  %v2653 = vmax.f32 %v2582, 0.0
  %v2654 = vmax.f32 %v2584, 0.0
  %v2655 = vmax.f32 %v2635, 0.0
  %v2656 = vmax.f32 %v2637, 0.0
  %v2657 = vmax.f32 %v2586, 0.0
  %v2658 = vmax.f32 %v2588, 0.0
  %v2659 = vmax.f32 %v2639, 0.0
  %v2660 = vmax.f32 %v2641, 0.0
  %v2661 = vmax.f32 %v2592, 0.0
  %v2662 = vmax.f32 %v2594, 0.0
  %v2663 = vmax.f32 %v2645, 0.0
  %v2664 = vmax.f32 %v2647, 0.0
  %v2665 = vmax.f32 %v2596, 0.0
  %v2666 = vmax.f32 %v2598, 0.0
  %v2667 = vmax.f32 %v2649, 0.0
  %v2668 = vmax.f32 %v2651, 0.0
  %v2669 = vpack.c.bf16 %v2657, %v2653
  %v2670 = vpack.c.bf16 %v2658, %v2654
  %v2671 = vpack.c.bf16 %v2659, %v2655
  %v2672 = vpack.c.bf16 %v2660, %v2656
  %v2673 = vpack.c.bf16 %v2665, %v2661
  %v2674 = vpack.c.bf16 %v2666, %v2662
  %v2675 = vpack.c.bf16 %v2667, %v2663
  %v2676 = vpack.c.bf16 %v2668, %v2664
  %s2677 = scalar_lea.vmem %s5, 768
  %v2678 = vld [vmem:[%s2677] sm:$0xf]
  %v2679 = vld [vmem:[%s2677 + $0x4] sm:$0xf]
  %v2680 = vld [vmem:[%s2677 + $0x8] sm:$0xf]
  %v2681 = vld [vmem:[%s2677 + $0xc] sm:$0xf]
  %v2682 = vld [vmem:[%s2677 + $0x10] sm:$0xf]
  %v2683 = vld [vmem:[%s2677 + $0x14] sm:$0xf]
  %v2684 = vld [vmem:[%s2677 + $0x18] sm:$0xf]
  %v2685 = vld [vmem:[%s2677 + $0x1c] sm:$0xf]
  %v2686 = vld [vmem:[%s2677 + $0x20] sm:$0xf]
  %v2687 = vld [vmem:[%s2677 + $0x24] sm:$0xf]
  %v2688 = vld [vmem:[%s2677 + $0x28] sm:$0xf]
  %v2689 = vld [vmem:[%s2677 + $0x2c] sm:$0xf]
  %v2690 = vld [vmem:[%s2677 + $0x30] sm:$0xf]
  %v2691 = vld [vmem:[%s2677 + $0x34] sm:$0xf]
  %v2692 = vld [vmem:[%s2677 + $0x38] sm:$0xf]
  %v2693 = vld [vmem:[%s2677 + $0x3c] sm:$0xf]
  %v2694 = vld [vmem:[%s2677 + $0x40] sm:$0xf]
  %v2695 = vld [vmem:[%s2677 + $0x44] sm:$0xf]
  %v2696 = vld [vmem:[%s2677 + $0x48] sm:$0xf]
  %v2697 = vld [vmem:[%s2677 + $0x4c] sm:$0xf]
  %v2698 = vld [vmem:[%s2677 + $0x50] sm:$0xf]
  %v2699 = vld [vmem:[%s2677 + $0x54] sm:$0xf]
  %v2700 = vld [vmem:[%s2677 + $0x58] sm:$0xf]
  %v2701 = vld [vmem:[%s2677 + $0x5c] sm:$0xf]
  %v2702 = vld [vmem:[%s2677 + $0x60] sm:$0xf]
  %v2703 = vld [vmem:[%s2677 + $0x64] sm:$0xf]
  %v2704 = vld [vmem:[%s2677 + $0x68] sm:$0xf]
  %v2705 = vld [vmem:[%s2677 + $0x6c] sm:$0xf]
  %v2706 = vld [vmem:[%s2677 + $0x70] sm:$0xf]
  %v2707 = vld [vmem:[%s2677 + $0x74] sm:$0xf]
  %v2708 = vld [vmem:[%s2677 + $0x78] sm:$0xf]
  %v2709 = vld [vmem:[%s2677 + $0x7c] sm:$0xf]
  %v2710 = vld [vmem:[%s2677 + $0x80] sm:$0xf]
  %v2711 = vld [vmem:[%s2677 + $0x84] sm:$0xf]
  %v2712 = vld [vmem:[%s2677 + $0x88] sm:$0xf]
  %v2713 = vld [vmem:[%s2677 + $0x8c] sm:$0xf]
  %v2714 = vld [vmem:[%s2677 + $0x90] sm:$0xf]
  %v2715 = vld [vmem:[%s2677 + $0x94] sm:$0xf]
  %v2716 = vld [vmem:[%s2677 + $0x98] sm:$0xf]
  %v2717 = vld [vmem:[%s2677 + $0x9c] sm:$0xf]
  %v2718 = vld [vmem:[%s2677 + $0xa0] sm:$0xf]
  %v2719 = vld [vmem:[%s2677 + $0xa4] sm:$0xf]
  %v2720 = vld [vmem:[%s2677 + $0xa8] sm:$0xf]
  %v2721 = vld [vmem:[%s2677 + $0xac] sm:$0xf]
  %v2722 = vld [vmem:[%s2677 + $0xb0] sm:$0xf]
  %v2723 = vld [vmem:[%s2677 + $0xb4] sm:$0xf]
  %v2724 = vld [vmem:[%s2677 + $0xb8] sm:$0xf]
  %v2725 = vld [vmem:[%s2677 + $0xbc] sm:$0xf]
  %v2726 = vld [vmem:[%s2677 + $0xc0] sm:$0xf]
  %v2727 = vld [vmem:[%s2677 + $0xc4] sm:$0xf]
  %v2728 = vld [vmem:[%s2677 + $0xc8] sm:$0xf]
  %v2729 = vld [vmem:[%s2677 + $0xcc] sm:$0xf]
  %v2730 = vld [vmem:[%s2677 + $0xd0] sm:$0xf]
  %v2731 = vld [vmem:[%s2677 + $0xd4] sm:$0xf]
  %v2732 = vld [vmem:[%s2677 + $0xd8] sm:$0xf]
  %v2733 = vld [vmem:[%s2677 + $0xdc] sm:$0xf]
  %v2734 = vld [vmem:[%s2677 + $0xe0] sm:$0xf]
  %v2735 = vld [vmem:[%s2677 + $0xe4] sm:$0xf]
  %v2736 = vld [vmem:[%s2677 + $0xe8] sm:$0xf]
  %v2737 = vld [vmem:[%s2677 + $0xec] sm:$0xf]
  %v2738 = vld [vmem:[%s2677 + $0xf0] sm:$0xf]
  %v2739 = vld [vmem:[%s2677 + $0xf4] sm:$0xf]
  %v2740 = vld [vmem:[%s2677 + $0xf8] sm:$0xf]
  %v2741 = vld [vmem:[%s2677 + $0xfc] sm:$0xf]
  %v2806 = vunpack.c.l.b16 %v2678
  %v2807 = vunpack.c.l.b16 %v2679
  %v2808 = vunpack.c.l.b16 %v2680
  %v2809 = vunpack.c.l.b16 %v2681
  %v2810 = vunpack.c.l.b16 %v2682
  %v2811 = vunpack.c.l.b16 %v2683
  %v2812 = vunpack.c.l.b16 %v2684
  %v2813 = vunpack.c.l.b16 %v2685
  %v2814 = vunpack.c.l.b16 %v2686
  %v2815 = vunpack.c.l.b16 %v2687
  %v2816 = vunpack.c.l.b16 %v2688
  %v2817 = vunpack.c.l.b16 %v2689
  %v2818 = vunpack.c.l.b16 %v2690
  %v2819 = vunpack.c.l.b16 %v2691
  %v2820 = vunpack.c.l.b16 %v2692
  %v2821 = vunpack.c.l.b16 %v2693
  %v2822 = vunpack.c.l.b16 %v2694
  %v2823 = vunpack.c.l.b16 %v2695
  %v2824 = vunpack.c.l.b16 %v2696
  %v2825 = vunpack.c.l.b16 %v2697
  %v2826 = vunpack.c.l.b16 %v2698
  %v2827 = vunpack.c.l.b16 %v2699
  %v2828 = vunpack.c.l.b16 %v2700
  %v2829 = vunpack.c.l.b16 %v2701
  %v2830 = vunpack.c.l.b16 %v2702
  %v2831 = vunpack.c.l.b16 %v2703
  %v2832 = vunpack.c.l.b16 %v2704
  %v2833 = vunpack.c.l.b16 %v2705
  %v2834 = vunpack.c.l.b16 %v2706
  %v2835 = vunpack.c.l.b16 %v2707
  %v2836 = vunpack.c.l.b16 %v2708
  %v2837 = vunpack.c.l.b16 %v2709
  %v2838 = vunpack.c.l.b16 %v2710
  %v2839 = vunpack.c.l.b16 %v2711
  %v2840 = vunpack.c.l.b16 %v2712
  %v2841 = vunpack.c.l.b16 %v2713
  %v2842 = vunpack.c.l.b16 %v2714
  %v2843 = vunpack.c.l.b16 %v2715
  %v2844 = vunpack.c.l.b16 %v2716
  %v2845 = vunpack.c.l.b16 %v2717
  %v2846 = vunpack.c.l.b16 %v2718
  %v2847 = vunpack.c.l.b16 %v2719
  %v2848 = vunpack.c.l.b16 %v2720
  %v2849 = vunpack.c.l.b16 %v2721
  %v2850 = vunpack.c.l.b16 %v2722
  %v2851 = vunpack.c.l.b16 %v2723
  %v2852 = vunpack.c.l.b16 %v2724
  %v2853 = vunpack.c.l.b16 %v2725
  %v2854 = vunpack.c.l.b16 %v2726
  %v2855 = vunpack.c.l.b16 %v2727
  %v2856 = vunpack.c.l.b16 %v2728
  %v2857 = vunpack.c.l.b16 %v2729
  %v2858 = vunpack.c.l.b16 %v2730
  %v2859 = vunpack.c.l.b16 %v2731
  %v2860 = vunpack.c.l.b16 %v2732
  %v2861 = vunpack.c.l.b16 %v2733
  %v2862 = vunpack.c.l.b16 %v2734
  %v2863 = vunpack.c.l.b16 %v2735
  %v2864 = vunpack.c.l.b16 %v2736
  %v2865 = vunpack.c.l.b16 %v2737
  %v2866 = vunpack.c.l.b16 %v2738
  %v2867 = vunpack.c.l.b16 %v2739
  %v2868 = vunpack.c.l.b16 %v2740
  %v2869 = vunpack.c.l.b16 %v2741
  %v2870 = vpack.c.b16 %v2807, %v2806
  %v2871 = vpack.c.b16 %v2809, %v2808
  %v2872 = vpack.c.b16 %v2811, %v2810
  %v2873 = vpack.c.b16 %v2813, %v2812
  %v2874 = vpack.c.b16 %v2815, %v2814
  %v2875 = vpack.c.b16 %v2817, %v2816
  %v2876 = vpack.c.b16 %v2819, %v2818
  %v2877 = vpack.c.b16 %v2821, %v2820
  %v2878 = vpack.c.b16 %v2823, %v2822
  %v2879 = vpack.c.b16 %v2825, %v2824
  %v2880 = vpack.c.b16 %v2827, %v2826
  %v2881 = vpack.c.b16 %v2829, %v2828
  %v2882 = vpack.c.b16 %v2831, %v2830
  %v2883 = vpack.c.b16 %v2833, %v2832
  %v2884 = vpack.c.b16 %v2835, %v2834
  %v2885 = vpack.c.b16 %v2837, %v2836
  %v2886 = vpack.c.b16 %v2839, %v2838
  %v2887 = vpack.c.b16 %v2841, %v2840
  %v2888 = vpack.c.b16 %v2843, %v2842
  %v2889 = vpack.c.b16 %v2845, %v2844
  %v2890 = vpack.c.b16 %v2847, %v2846
  %v2891 = vpack.c.b16 %v2849, %v2848
  %v2892 = vpack.c.b16 %v2851, %v2850
  %v2893 = vpack.c.b16 %v2853, %v2852
  %v2894 = vpack.c.b16 %v2855, %v2854
  %v2895 = vpack.c.b16 %v2857, %v2856
  %v2896 = vpack.c.b16 %v2859, %v2858
  %v2897 = vpack.c.b16 %v2861, %v2860
  %v2898 = vpack.c.b16 %v2863, %v2862
  %v2899 = vpack.c.b16 %v2865, %v2864
  %v2900 = vpack.c.b16 %v2867, %v2866
  %v2901 = vpack.c.b16 %v2869, %v2868
  %2934 = vmatprep.subr.bf16.mxu0 0
  %2935 = vmatpush1.bf16.msra.mxu0 %v2877
  %2936 = vmatprep.subr.bf16.mxu0 0
  %2937 = vmatpush1.bf16.msra.mxu0 %v2876
  %2938 = vmatprep.subr.bf16.mxu0 0
  %2939 = vmatpush1.bf16.msra.mxu0 %v2875
  %2940 = vmatprep.subr.bf16.mxu0 0
  %2941 = vmatpush1.bf16.msra.mxu0 %v2874
  %2942 = vmatprep.subr.bf16.mxu0 0
  %2943 = vmatpush1.bf16.msra.mxu0 %v2873
  %2944 = vmatprep.subr.bf16.mxu0 0
  %2945 = vmatpush1.bf16.msra.mxu0 %v2872
  %2946 = vmatprep.subr.bf16.mxu0 0
  %2947 = vmatpush1.bf16.msra.mxu0 %v2871
  %2948 = vmatprep.subr.bf16.mxu0 0
  %2949 = vmatpush1.bf16.msra.mxu0 %v2870
  %2950 = vmatprep.subr.bf16.mxu0 0
  %2951 = vmatpush2.bf16.msra.mxu0 %v2885
  %2952 = vmatprep.subr.bf16.mxu0 0
  %2953 = vmatpush2.bf16.msra.mxu0 %v2884
  %2954 = vmatprep.subr.bf16.mxu0 0
  %2955 = vmatpush2.bf16.msra.mxu0 %v2883
  %2956 = vmatprep.subr.bf16.mxu0 0
  %2957 = vmatpush2.bf16.msra.mxu0 %v2882
  %2958 = vmatprep.subr.bf16.mxu0 0
  %2959 = vmatpush2.bf16.msra.mxu0 %v2881
  %2960 = vmatprep.subr.bf16.mxu0 0
  %2961 = vmatpush2.bf16.msra.mxu0 %v2880
  %2962 = vmatprep.subr.bf16.mxu0 0
  %2963 = vmatpush2.bf16.msra.mxu0 %v2879
  %2964 = vmatprep.subr.bf16.mxu0 0
  %2965 = vmatpush2.bf16.msra.mxu0 %v2878
  %2966 = vmatprep.mubr.bf16.mxu0 %v2670
  %2967 = vmatmul.mubr.bf16.gmra.mxu0 %v2669
  %v2968 = vpop.f32.mrf.mxu0
  %v2969 = vadd.f32 0.0, %v2968
  %v2970 = vpop.f32.mrf.mxu0
  %v2971 = vpop.f32.mrf.mxu0
  %v2972 = vadd.f32 0.0, %v2971
  %v2973 = vpop.f32.mrf.mxu0
  %2974 = vmatprep.mubr.bf16.mxu0 %v2674
  %2975 = vmatmul.mubr.bf16.gmra.mxu0 %v2673
  %v2976 = vpop.f32.mrf.mxu0
  %v2977 = vadd.f32 0.0, %v2976
  %v2978 = vpop.f32.mrf.mxu0
  %v2979 = vpop.f32.mrf.mxu0
  %v2980 = vadd.f32 0.0, %v2979
  %v2981 = vpop.f32.mrf.mxu0
  %2982 = vdwg.mxu0
  %2983 = vmatprep.subr.bf16.mxu0 0
  %2984 = vmatpush1.bf16.msra.mxu0 %v2893
  %2985 = vmatprep.subr.bf16.mxu0 0
  %2986 = vmatpush1.bf16.msra.mxu0 %v2892
  %2987 = vmatprep.subr.bf16.mxu0 0
  %2988 = vmatpush1.bf16.msra.mxu0 %v2891
  %2989 = vmatprep.subr.bf16.mxu0 0
  %2990 = vmatpush1.bf16.msra.mxu0 %v2890
  %2991 = vmatprep.subr.bf16.mxu0 0
  %2992 = vmatpush1.bf16.msra.mxu0 %v2889
  %2993 = vmatprep.subr.bf16.mxu0 0
  %2994 = vmatpush1.bf16.msra.mxu0 %v2888
  %2995 = vmatprep.subr.bf16.mxu0 0
  %2996 = vmatpush1.bf16.msra.mxu0 %v2887
  %2997 = vmatprep.subr.bf16.mxu0 0
  %2998 = vmatpush1.bf16.msra.mxu0 %v2886
  %2999 = vmatprep.subr.bf16.mxu0 0
  %3000 = vmatpush2.bf16.msra.mxu0 %v2901
  %3001 = vmatprep.subr.bf16.mxu0 0
  %3002 = vmatpush2.bf16.msra.mxu0 %v2900
  %3003 = vmatprep.subr.bf16.mxu0 0
  %3004 = vmatpush2.bf16.msra.mxu0 %v2899
  %3005 = vmatprep.subr.bf16.mxu0 0
  %3006 = vmatpush2.bf16.msra.mxu0 %v2898
  %3007 = vmatprep.subr.bf16.mxu0 0
  %3008 = vmatpush2.bf16.msra.mxu0 %v2897
  %3009 = vmatprep.subr.bf16.mxu0 0
  %3010 = vmatpush2.bf16.msra.mxu0 %v2896
  %3011 = vmatprep.subr.bf16.mxu0 0
  %3012 = vmatpush2.bf16.msra.mxu0 %v2895
  %3013 = vmatprep.subr.bf16.mxu0 0
  %3014 = vmatpush2.bf16.msra.mxu0 %v2894
  %3015 = vmatprep.mubr.bf16.mxu0 %v2672
  %3016 = vmatmul.mubr.bf16.gmra.mxu0 %v2671
  %v3017 = vpop.f32.mrf.mxu0
  %v3018 = vadd.f32 %v2969, %v3017
  %v3019 = vpop.f32.mrf.mxu0
  %v3020 = vpop.f32.mrf.mxu0
  %v3021 = vadd.f32 %v2972, %v3020
  %v3022 = vpop.f32.mrf.mxu0
  %3023 = vmatprep.mubr.bf16.mxu0 %v2676
  %3024 = vmatmul.mubr.bf16.gmra.mxu0 %v2675
  %v3025 = vpop.f32.mrf.mxu0
  %v3026 = vadd.f32 %v2977, %v3025
  %v3027 = vpop.f32.mrf.mxu0
  %v3028 = vpop.f32.mrf.mxu0
  %v3029 = vadd.f32 %v2980, %v3028
  %v3030 = vpop.f32.mrf.mxu0
  %3031 = vdwg.mxu0
  %v3032 = vadd.f32 %v2471, %v3018
  %v3033 = vadd.f32 %v2472, %v3021
  %v3034 = vadd.f32 %v2473, %v3026
  %v3035 = vadd.f32 %v2474, %v3029
  %v3036 = vld [vmem:[%s6 + $0x25] sm:$0x1]
  %v3037 = vlaneseq
  %v3038 = vshrl.u32 %v3037, 7
  %v3039 = vsub.s32 0, %v3038
  %v3040 = vrot.slane %v3036, %v3039
  %v3041 = vadd.f32 %v3032, %v3040
  %v3042 = vadd.f32 %v3033, %v3040
  %v3043 = vadd.f32 %v3034, %v3040
  %v3044 = vadd.f32 %v3035, %v3040
  %v3045 = vadd.f32 %v791, %v3041
  %v3046 = vadd.f32 %v792, %v3042
  %v3047 = vadd.f32 %v793, %v3043
  %v3048 = vadd.f32 %v794, %v3044
  %v3049 = vld [vmem:[%s6 + $0x23] sm:$0x1]
  %v3050 = vld [vmem:[%s6 + $0x24] sm:$0x1]
  %v3051 = vsel %vm256, %v3045, 0.0
  %3052 = vadd.xlane.f32.xlu0 %v3051
  %v3053 = vpop.xlane.xlu0 %3052
  %v3054 = vsel %vm256, %v3046, 0.0
  %3055 = vadd.xlane.f32.xlu0 %v3054
  %v3056 = vpop.xlane.xlu0 %3055
  %v3057 = vsel %vm256, %v3047, 0.0
  %3058 = vadd.xlane.f32.xlu0 %v3057
  %v3059 = vpop.xlane.xlu0 %3058
  %v3060 = vsel %vm256, %v3048, 0.0
  %3061 = vadd.xlane.f32.xlu0 %v3060
  %v3062 = vpop.xlane.xlu0 %3061
  %v3063 = vmul.f32 %v3053, %v738
  %v3064 = vmul.f32 %v3056, %v738
  %v3065 = vmul.f32 %v3059, %v738
  %v3066 = vmul.f32 %v3062, %v738
  %v3067 = vsub.f32 %v3045, %v3063
  %v3068 = vsub.f32 %v3046, %v3064
  %v3069 = vsub.f32 %v3047, %v3065
  %v3070 = vsub.f32 %v3048, %v3066
  %v3071 = vmul.f32 %v3067, %v3067
  %v3072 = vmul.f32 %v3068, %v3068
  %v3073 = vmul.f32 %v3069, %v3069
  %v3074 = vmul.f32 %v3070, %v3070
  %v3075 = vsel %vm256, %v3071, 0.0
  %3076 = vadd.xlane.f32.xlu0 %v3075
  %v3077 = vpop.xlane.xlu0 %3076
  %v3078 = vsel %vm256, %v3072, 0.0
  %3079 = vadd.xlane.f32.xlu0 %v3078
  %v3080 = vpop.xlane.xlu0 %3079
  %v3081 = vsel %vm256, %v3073, 0.0
  %3082 = vadd.xlane.f32.xlu0 %v3081
  %v3083 = vpop.xlane.xlu0 %3082
  %v3084 = vsel %vm256, %v3074, 0.0
  %3085 = vadd.xlane.f32.xlu0 %v3084
  %v3086 = vpop.xlane.xlu0 %3085
  %v3087 = vmul.f32 %v3077, %v738
  %v3088 = vmul.f32 %v3080, %v738
  %v3089 = vmul.f32 %v3083, %v738
  %v3090 = vmul.f32 %v3086, %v738
  %v3091 = vadd.f32 %v3087, 1e-05
  %v3092 = vadd.f32 %v3088, 1e-05
  %v3093 = vadd.f32 %v3089, 1e-05
  %v3094 = vadd.f32 %v3090, 1e-05
  %v3095 = vrsqrt.pop %v3091
  %v3096 = vrsqrt.pop %v3092
  %v3097 = vrsqrt.pop %v3093
  %v3098 = vrsqrt.pop %v3094
  %v3099 = vmul.f32 %v3067, %v3095
  %v3100 = vmul.f32 %v3068, %v3096
  %v3101 = vmul.f32 %v3069, %v3097
  %v3102 = vmul.f32 %v3070, %v3098
  %v3103 = vlaneseq
  %v3104 = vshrl.u32 %v3103, 7
  %v3105 = vsub.s32 0, %v3104
  %v3106 = vrot.slane %v3049, %v3105
  %v3107 = vmul.f32 %v3099, %v3106
  %v3108 = vmul.f32 %v3100, %v3106
  %v3109 = vmul.f32 %v3101, %v3106
  %v3110 = vmul.f32 %v3102, %v3106
  %v3111 = vlaneseq
  %v3112 = vshrl.u32 %v3111, 7
  %v3113 = vsub.s32 0, %v3112
  %v3114 = vrot.slane %v3050, %v3113
  %v3115 = vadd.f32 %v3107, %v3114
  %v3116 = vadd.f32 %v3108, %v3114
  %v3117 = vadd.f32 %v3109, %v3114
  %v3118 = vadd.f32 %v3110, %v3114
  %v3119 = vld [vmem:[%s6] sm:$0xff]
  %v3120 = vld [vmem:[%s6 + $0x8] sm:$0xff]
  %v3121 = vld [vmem:[%s6 + $0x10] sm:$0xff]
  %v3122 = vld [vmem:[%s6 + $0x18] sm:$0xff]
  %v3123 = vld [vmem:[%s6 + $0x26] sm:$0x1]
  %v3124 = vlaneseq
  %v3125 = vshrl.u32 %v3124, 7
  %v3126 = vsub.s32 0, %v3125
  %v3127 = vrot.slane %v3123, %v3126
  %v3132 = vrot.slane %v3115, 1
  %vm3133 = vcmask 1041409
  %v3134 = vsel %vm3133, %v3116, %v3132
  %v3135 = vrot.slane %v3117, 7
  %vm3136 = vcmask 1042434
  %v3137 = vsel %vm3136, %v3135, %v3134
  %v3138 = vrot.slane %v3118, 6
  %vm3139 = vcmask 1043459
  %v3140 = vsel %vm3139, %v3138, %v3137
  %v3141 = vsel %vm256, %v3140, 0
  %3143 = vmatprep.subr.mxu0 0.0
  %3144 = vmatpush1.msra.mxu0 0.0
  %3145 = vmatprep.subr.mxu0 0.0
  %3146 = vmatpush1.msra.mxu0 0.0
  %3147 = vmatprep.subr.mxu0 0.0
  %3148 = vmatpush1.msra.mxu0 0.0
  %3149 = vmatprep.subr.mxu0 0.0
  %3150 = vmatpush1.msra.mxu0 0.0
  %3151 = vmatprep.subr.mxu0 0.0
  %3152 = vmatpush1.msra.mxu0 0.0
  %3153 = vmatprep.subr.mxu0 0.0
  %3154 = vmatpush1.msra.mxu0 0.0
  %3155 = vmatprep.subr.mxu0 0.0
  %3156 = vmatpush1.msra.mxu0 0.0
  %3157 = vmatprep.subr.mxu0 0.0
  %3158 = vmatpush1.msra.mxu0 0.0
  %3159 = vmatprep.subr.mxu0 0.0
  %3160 = vmatpush1.msra.mxu0 0.0
  %3161 = vmatprep.subr.mxu0 0.0
  %3162 = vmatpush1.msra.mxu0 0.0
  %3163 = vmatprep.subr.mxu0 0.0
  %3164 = vmatpush1.msra.mxu0 0.0
  %3165 = vmatprep.subr.mxu0 0.0
  %3166 = vmatpush1.msra.mxu0 0.0
  %3167 = vmatprep.subr.mxu0 0.0
  %3168 = vmatpush1.msra.mxu0 %v3122
  %3169 = vmatprep.subr.mxu0 0.0
  %3170 = vmatpush1.msra.mxu0 %v3121
  %3171 = vmatprep.subr.mxu0 0.0
  %3172 = vmatpush1.msra.mxu0 %v3120
  %3173 = vmatprep.subr.mxu0 0.0
  %3174 = vmatpush1.msra.mxu0 %v3119
  %3175 = vmatprep.subr.mxu0 0.0
  %3176 = vmatpush2.msra.mxu0 0.0
  %3177 = vmatprep.subr.mxu0 0.0
  %3178 = vmatpush2.msra.mxu0 0.0
  %3179 = vmatprep.subr.mxu0 0.0
  %3180 = vmatpush2.msra.mxu0 0.0
  %3181 = vmatprep.subr.mxu0 0.0
  %3182 = vmatpush2.msra.mxu0 0.0
  %3183 = vmatprep.subr.mxu0 0.0
  %3184 = vmatpush2.msra.mxu0 0.0
  %3185 = vmatprep.subr.mxu0 0.0
  %3186 = vmatpush2.msra.mxu0 0.0
  %3187 = vmatprep.subr.mxu0 0.0
  %3188 = vmatpush2.msra.mxu0 0.0
  %3189 = vmatprep.subr.mxu0 0.0
  %3190 = vmatpush2.msra.mxu0 0.0
  %3191 = vmatprep.subr.mxu0 0.0
  %3192 = vmatpush2.msra.mxu0 0.0
  %3193 = vmatprep.subr.mxu0 0.0
  %3194 = vmatpush2.msra.mxu0 0.0
  %3195 = vmatprep.subr.mxu0 0.0
  %3196 = vmatpush2.msra.mxu0 0.0
  %3197 = vmatprep.subr.mxu0 0.0
  %3198 = vmatpush2.msra.mxu0 0.0
  %3199 = vmatprep.subr.mxu0 0.0
  %3200 = vmatpush2.msra.mxu0 0.0
  %3201 = vmatprep.subr.mxu0 0.0
  %3202 = vmatpush2.msra.mxu0 0.0
  %3203 = vmatprep.subr.mxu0 0.0
  %3204 = vmatpush2.msra.mxu0 0.0
  %3205 = vmatprep.subr.mxu0 0.0
  %3206 = vmatpush2.msra.mxu0 0.0
  %3207 = vmatprep.mubr.f32.mxu0 0.0
  %3208 = vmatmul.mubr.f32.gmra.mxu0 %v3141
  %v3209 = vpop.f32.mrf.mxu0
  %v3210 = vadd.f32 %v3127, %v3209
  %v3211 = vpop.f32.mrf.mxu0
  %3212 = vdwg.mxu0
  %v3213 = vmax.f32 %v3210, 0.0
  %v3214 = vld [vmem:[%s6 + $0x27] sm:$0x1]
  %v3215 = vld [vmem:[%s6 + $0x28] sm:$0x1]
  %v3216 = vlaneseq
  %v3217 = vshrl.u32 %v3216, 7
  %v3218 = vsub.s32 0, %v3217
  %v3219 = vrot.slane %v3214, %v3218
  %v3220 = vmul.f32 %v3213, %v3219
  %vm3221 = vcmask 1043456
  %v3222 = vsel %vm3221, %v3220, 0.0
  %3223 = vadd.xlane.f32.xlu0 %v3222
  %v3224 = vpop.xlane.xlu0 %3223
  %v3225 = vlaneseq
  %v3226 = vshrl.u32 %v3225, 7
  %v3227 = vsub.s32 0, %v3226
  %v3228 = vrot.slane %v3215, %v3227
  %v3229 = vadd.f32 %v3224, %v3228
  %v3230 = vxor.u32 %v3229, 2147483648
  %v3231 = vmul.f32 %v3230, 1.442695
  %v3232 = vpow.pop %v3231
  %v3233 = vadd.f32 %v3232, 1.0
  %v3234 = vrcp.pop %v3233
  %v3235 = vmul.f32 1.0, %v3234
  %vm3236 = vcmask 3072
  %3237 = vst.msk [vmem:[%s7] sm:$0xf] %vm3236, %v3235
  // Predicated region
  $region30: #{tpu_custom_call.1} parent=0 // pred_check
    _
  $region31: #{tpu_custom_call.1} parent=0 // pred_check_branch
    %3239 = sbr.rel (0) target = $region33
  $region32: #{tpu_custom_call.1} parent=0 // pred_region
    _
  $region33: #{tpu_custom_call.1} parent=0 // pred_fallthru
    _
  // Predicated region
  $region34: #{tpu_custom_call.1} parent=0 // pred_check
    _
  $region35: #{tpu_custom_call.1} parent=0 // pred_check_branch
    %3241 = sbr.rel (0) target = $region37
  $region36: #{tpu_custom_call.1} parent=0 // pred_region
    _
  $region37: #{tpu_custom_call.1} parent=0 // pred_fallthru
    _

</llo_original>
